<compile_context>
chip_gen: v7x
topology: tpu7x:2x2x1
jax: 0.10.0
libtpu: 0.0.40
codegen_flags: <defaults>
</compile_context>

<pallas_src>
import functools

import jax
import jax.numpy as jnp
from jax.experimental import pallas as pl
from jax.experimental.pallas import tpu as pltpu

NEG_INF = -1e9   # additive/select mask value; exp() underflows to 0, same as -inf


def _sw_msa_kernel(regr_ref, regc_ref, x_ref, wqkv_ref, bqkv_ref,
                   wproj_ref, bproj_ref, o_ref, *,
                   num_heads, head_dim, scale, tile_windows, tokens_per_window):
    # regr_ref : (TM, Vp, 1)  int32 region ids (token along sublanes)
    # regc_ref : (TM, 1, Vp)  int32 region ids (token along lanes)
    # x_ref    : (TM*Vp, D)   windowed tokens, flattened over the tile
    # wqkv_ref : (D, 3D)      transposed:  qkv = x @ wqkv + bqkv
    # bqkv_ref : (1, 3D)
    # wproj_ref: (D, D)       transposed output projection
    # bproj_ref: (1, D)
    # o_ref    : (TM*Vp, D)
    TM, Vp, hd = tile_windows, tokens_per_window, head_dim
    N, D = x_ref.shape                                   # N = TM * Vp

    # --- fused QKV projection: one (N, D) @ (D, 3D) MXU matmul per tile ---
    qkv = jnp.dot(x_ref[...], wqkv_ref[...],
                  preferred_element_type=jnp.float32) + bqkv_ref[...]        # (N, 3D) f32
    qkv = qkv.reshape(TM, Vp, 3 * D)                     # Vp % 8 == 0 -> layout no-op

    # --- attention mask rebuilt in-kernel from int region ids (VPU compare) ---
    same_region = regr_ref[...] == regc_ref[...]         # (TM, Vp, Vp) bool

    # --- attention core, batched over windows; the only loop is over heads ---
    head_outs = []
    for h in range(num_heads):                           # small static unroll (nh)
        lo = h * hd
        q = qkv[:, :, lo:lo + hd]                        # (TM, Vp, hd)
        k = qkv[:, :, D + lo:D + lo + hd]
        v = qkv[:, :, 2 * D + lo:2 * D + lo + hd]
        s = jnp.einsum("wqd,wkd->wqk", q, k,
                       preferred_element_type=jnp.float32)                   # (TM, Vp, Vp)
        s = jnp.where(same_region, s * scale, NEG_INF)
        s = s - jnp.max(s, axis=-1, keepdims=True)
        p = jnp.exp(s)
        p = p * pl.reciprocal(jnp.sum(p, axis=-1, keepdims=True), approx=True)
        head_outs.append(jnp.einsum("wqk,wkd->wqd", p, v,
                                    preferred_element_type=jnp.float32))     # (TM, Vp, hd)

    attn = jnp.concatenate(head_outs, axis=-1).reshape(N, D)   # aligned -> layout no-op

    # --- output projection: one (N, D) @ (D, D) matmul, ONE contiguous store ---
    out = jnp.dot(attn, wproj_ref[...],
                  preferred_element_type=jnp.float32) + bproj_ref[...]
    o_ref[...] = out.astype(o_ref.dtype)


def _window_region_ids(H, W, ss, ws):
    """Per-window int region ids; same partition as the torch `mask()` helper."""
    region = jnp.zeros((H, W), jnp.int32)
    region = region.at[:ss, ss:].set(1)
    region = region.at[ss:, :ss].set(2)
    region = region.at[ss:, ss:].set(3)
    region = jnp.roll(region, shift=(-ss, -ss), axis=(0, 1))
    region = region.reshape(H // ws, ws, W // ws, ws).transpose(0, 2, 1, 3)
    return region.reshape(-1, ws * ws)                          # (nW, V)


def _pick_tile_windows(nW, M, cap, min_steps):
    """Largest divisor of nW (<= cap) that still leaves >= min_steps grid steps."""
    divisors = [t for t in range(1, max(1, min(nW, cap)) + 1) if nW % t == 0]
    good = [t for t in divisors if M // t >= min_steps]
    return max(good) if good else 1


def sw_msa(x, w_qkv, b_qkv, w_proj, b_proj, *,
           window_size=6, shift_size=3, num_heads=8,
           max_tile_windows=64, min_grid_steps=4):
    """x: (B, H, W, D).  w_qkv: (3D, D), b_qkv: (3D,), w_proj: (D, D), b_proj: (D,)
    (torch nn.Linear layouts).  Returns (B, H, W, D)."""
    B, H, W, D = x.shape
    ws, ss = window_size, shift_size
    assert H % ws == 0 and W % ws == 0, "H, W must be multiples of window_size"
    assert D % num_heads == 0, "dim must be divisible by num_heads"
    hd = D // num_heads
    scale = float(hd) ** -0.5
    V = ws * ws
    Vp = -(-V // 8) * 8                     # pad tokens/window to a sublane multiple
    nWh, nWw = H // ws, W // ws
    nW = nWh * nWw
    M = B * nW

    # --- glue (pure data movement): cyclic shift + window partition + token pad ---
    # TODO(synk): fold this gather (and its inverse) into the kernel via a
    # scalar-prefetched row-offset table + manual DMA to remove ~2x HBM traffic.
    xr = jnp.roll(x, shift=(-ss, -ss), axis=(1, 2))
    xw = xr.reshape(B, nWh, ws, nWw, ws, D).transpose(0, 1, 3, 2, 4, 5).reshape(M, V, D)
    if Vp != V:
        xw = jnp.pad(xw, ((0, 0), (0, Vp - V), (0, 0)))
    x_flat = xw.reshape(M * Vp, D)

    # per-window region-id table (tiny); padded tokens get -1 -> never match real ones
    region = _window_region_ids(H, W, ss, ws)                    # (nW, V) int32
    if Vp != V:
        region = jnp.pad(region, ((0, 0), (0, Vp - V)), constant_values=-1)
    reg_rows = region[:, :, None]                                # (nW, Vp, 1)
    reg_cols = region[:, None, :]                                # (nW, 1, Vp)

    # weights in "x @ W" orientation
    wqkv_t = w_qkv.T                                             # (D, 3D)
    bqkv2 = b_qkv.reshape(1, 3 * D)
    wproj_t = w_proj.T                                           # (D, D)
    bproj2 = b_proj.reshape(1, D)

    # tile over windows: TM | nW, grid kept >= min_grid_steps (pipelining + both v7x TCs)
    TM = _pick_tile_windows(nW, M, max_tile_windows, min_grid_steps)
    grid = (M // TM,)
    nblk = nW // TM
    reg_map = (lambda i: (0, 0, 0)) if nblk == 1 else (lambda i: (i % nblk, 0, 0))

    kernel = functools.partial(_sw_msa_kernel, num_heads=num_heads, head_dim=hd,
                               scale=scale, tile_windows=TM, tokens_per_window=Vp)

    # Weight/bias blocks are grid-constant (index_map always (0,0)), so Pallas keeps
    # them resident in VMEM.  For very large D on v7x (64 MiB VMEM), additionally
    # single-buffer them with pipeline_mode=pl.Buffered(1) and cap TM lower.
    out_flat = pl.pallas_call(
        kernel,
        out_shape=jax.ShapeDtypeStruct((M * Vp, D), x.dtype),
        grid_spec=pltpu.PrefetchScalarGridSpec(
            num_scalar_prefetch=0,
            grid=grid,
            in_specs=[
                pl.BlockSpec((TM, Vp, 1), reg_map),              # region ids (rows)
                pl.BlockSpec((TM, 1, Vp), reg_map),              # region ids (cols)
                pl.BlockSpec((TM * Vp, D), lambda i: (i, 0)),    # x tokens (flat)
                pl.BlockSpec((D, 3 * D), lambda i: (0, 0)),      # wqkv (resident)
                pl.BlockSpec((1, 3 * D), lambda i: (0, 0)),      # bqkv
                pl.BlockSpec((D, D), lambda i: (0, 0)),          # wproj (resident)
                pl.BlockSpec((1, D), lambda i: (0, 0)),          # bproj
            ],
            out_specs=pl.BlockSpec((TM * Vp, D), lambda i: (i, 0)),
        ),
        compiler_params=pltpu.CompilerParams(
            dimension_semantics=("parallel",)),
    )(reg_rows, reg_cols, x_flat, wqkv_t, bqkv2, wproj_t, bproj2)

    # --- reverse: drop token padding, un-window, reverse cyclic shift (glue) ---
    out = out_flat.reshape(M, Vp, D)[:, :V, :]
    out = out.reshape(B, nWh, nWw, ws, ws, D).transpose(0, 1, 3, 2, 4, 5).reshape(B, H, W, D)
    out = jnp.roll(out, shift=(ss, ss), axis=(1, 2))
    return out


def _reference(x, w_qkv, b_qkv, w_proj, b_proj, *, ws, ss, num_heads):
    """Pure-JAX mirror of torch SW_MSA.forward (full f32 precision)."""
    B, H, W, D = x.shape
    hd = D // num_heads
    scale = float(hd) ** -0.5
    hi = jax.lax.Precision.HIGHEST
    nWh, nWw = H // ws, W // ws
    xr = jnp.roll(x, shift=(-ss, -ss), axis=(1, 2))
    xw = xr.reshape(B, nWh, ws, nWw, ws, D).transpose(0, 1, 3, 2, 4, 5).reshape(-1, ws * ws, D)
    M, V, _ = xw.shape
    region = _window_region_ids(H, W, ss, ws)
    eq = region[:, :, None] == region[:, None, :]
    attn_mask = jnp.where(eq, 0.0, -jnp.inf).astype(jnp.float32)          # (nW, V, V)
    attn_mask = jnp.broadcast_to(attn_mask[None], (B, nWh * nWw, V, V)).reshape(M, V, V)
    qkv = jnp.einsum("mvd,ed->mve", xw, w_qkv, precision=hi) + b_qkv      # (M, V, 3D)
    qkv = qkv.reshape(M, V, 3, num_heads, hd).transpose(2, 0, 3, 1, 4)
    q, k, v = qkv[0], qkv[1], qkv[2]                                      # (M, nh, V, hd)
    s = jnp.einsum("mhqd,mhkd->mhqk", q, k, precision=hi) * scale
    s = s + attn_mask[:, None]
    p = jax.nn.softmax(s, axis=-1)
    o = jnp.einsum("mhqk,mhkd->mhqd", p, v, precision=hi)
    o = o.transpose(0, 2, 1, 3).reshape(M, V, D)
    o = o.reshape(B, nWh, nWw, ws, ws, D).transpose(0, 1, 3, 2, 4, 5).reshape(B, H, W, D)
    o = jnp.roll(o, shift=(ss, ss), axis=(1, 2))
    return jnp.einsum("bhwd,od->bhwo", o, w_proj, precision=hi) + b_proj


if __name__ == "__main__":
    key = jax.random.PRNGKey(0)
    B, H, W = 2, 12, 12               # spatial dims must be multiples of window_size=6
    dim, ws, ss, nh = 32, 6, 3, 8     # head_dim = 4

    k1, k2, k3, k4, k5 = jax.random.split(key, 5)
    x = jax.random.normal(k1, (B, H, W, dim), dtype=jnp.float32)
    # torch nn.Linear(dim, 3*dim, bias=True): weight (3D, D), bias (3D,)
    w_qkv = jax.random.normal(k2, (3 * dim, dim), dtype=jnp.float32) * (dim ** -0.5)
    b_qkv = 0.02 * jax.random.normal(k3, (3 * dim,), dtype=jnp.float32)
    # torch nn.Linear(dim, dim): weight (D, D), bias (D,)
    w_proj = jax.random.normal(k4, (dim, dim), dtype=jnp.float32) * (dim ** -0.5)
    b_proj = 0.02 * jax.random.normal(k5, (dim,), dtype=jnp.float32)

    out = sw_msa(x, w_qkv, b_qkv, w_proj, b_proj,
                 window_size=ws, shift_size=ss, num_heads=nh)
    out = jax.block_until_ready(out)

    ref = _reference(x, w_qkv, b_qkv, w_proj, b_proj, ws=ws, ss=ss, num_heads=nh)
    assert out.shape == (B, H, W, dim)
    # Kernel matmuls use default MXU precision (bf16 passes, f32 accumulate) and the
    # softmax uses the EUP approximate reciprocal (per perf review), so the check
    # against the full-f32 reference uses a correspondingly relaxed tolerance.
    max_err = float(jnp.max(jnp.abs(out - ref)))
    assert jnp.allclose(out, ref, atol=5e-2, rtol=5e-2), max_err
    print("KERNEL_OK")
</pallas_src>

<mosaic_0001>
module attributes {stable_mosaic.version = 11 : i64} {
  func.func @_sw_msa_kernel(%arg0: i32, %arg1: memref<2x40x1xi32, #tpu.memory_space<vmem>>, %arg2: memref<2x1x40xi32, #tpu.memory_space<vmem>>, %arg3: memref<80x32xf32, #tpu.memory_space<vmem>>, %arg4: memref<32x96xf32, #tpu.memory_space<vmem>>, %arg5: memref<1x96xf32, #tpu.memory_space<vmem>>, %arg6: memref<32x32xf32, #tpu.memory_space<vmem>>, %arg7: memref<1x32xf32, #tpu.memory_space<vmem>>, %arg8: memref<80x32xf32, #tpu.memory_space<vmem>>) attributes {dimension_semantics = [#tpu.dimension_semantics<parallel>], iteration_bounds = array<i64: 4>, scalar_prefetch = 0 : i64, scratch_operands = 0 : i64, tpu.core_type = #tpu.core_type<tc>, window_params = [{transform_indices = @transform_0, window_bounds = array<i64: 2, 40, 1>}, {transform_indices = @transform_1, window_bounds = array<i64: 2, 1, 40>}, {transform_indices = @transform_2, window_bounds = array<i64: 80, 32>}, {pipeline_mode = #tpu.pipeline_mode<synchronous>, transform_indices = @transform_3, window_bounds = array<i64: 32, 96>}, {pipeline_mode = #tpu.pipeline_mode<synchronous>, transform_indices = @transform_4, window_bounds = array<i64: 1, 96>}, {pipeline_mode = #tpu.pipeline_mode<synchronous>, transform_indices = @transform_5, window_bounds = array<i64: 32, 32>}, {pipeline_mode = #tpu.pipeline_mode<synchronous>, transform_indices = @transform_6, window_bounds = array<i64: 1, 32>}, {transform_indices = @transform_7, window_bounds = array<i64: 80, 32>}]} {
    %c0 = arith.constant 0 : index
    %c0_0 = arith.constant 0 : index
    %0 = vector.load %arg3[%c0, %c0_0] : memref<80x32xf32, #tpu.memory_space<vmem>>, vector<80x32xf32>
    %c0_1 = arith.constant 0 : index
    %c0_2 = arith.constant 0 : index
    %1 = vector.load %arg4[%c0_1, %c0_2] : memref<32x96xf32, #tpu.memory_space<vmem>>, vector<32x96xf32>
    %cst = arith.constant dense<0.000000e+00> : vector<80x96xf32>
    %2 = tpu.matmul %0, %1, %cst {dimension_numbers = #tpu.dot_dimension_numbers<[1], [0], [0], [1], [0, 0, 1, 1], [], []>} : vector<80x32xf32>, vector<32x96xf32>, vector<80x96xf32> -> vector<80x96xf32>
    %c0_3 = arith.constant 0 : index
    %c0_4 = arith.constant 0 : index
    %3 = vector.load %arg5[%c0_3, %c0_4] : memref<1x96xf32, #tpu.memory_space<vmem>>, vector<1x96xf32>
    %4 = vector.broadcast %3 : vector<1x96xf32> to vector<80x96xf32>
    %5 = arith.addf %2, %4 : vector<80x96xf32>
    %6 = vector.shape_cast %5 : vector<80x96xf32> to vector<2x40x96xf32>
    %c0_5 = arith.constant 0 : index
    %c0_6 = arith.constant 0 : index
    %c0_7 = arith.constant 0 : index
    %7 = vector.load %arg1[%c0_5, %c0_6, %c0_7] : memref<2x40x1xi32, #tpu.memory_space<vmem>>, vector<2x40x1xi32>
    %c0_8 = arith.constant 0 : index
    %c0_9 = arith.constant 0 : index
    %c0_10 = arith.constant 0 : index
    %8 = vector.load %arg2[%c0_8, %c0_9, %c0_10] : memref<2x1x40xi32, #tpu.memory_space<vmem>>, vector<2x1x40xi32>
    %9 = vector.broadcast %7 : vector<2x40x1xi32> to vector<2x40x40xi32>
    %10 = vector.broadcast %8 : vector<2x1x40xi32> to vector<2x40x40xi32>
    %11 = arith.cmpi eq, %9, %10 : vector<2x40x40xi32>
    %12 = vector.extract_strided_slice %6 {offsets = [0, 0, 0], sizes = [2, 40, 4], strides = [1, 1, 1]} : vector<2x40x96xf32> to vector<2x40x4xf32>
    %13 = vector.extract_strided_slice %6 {offsets = [0, 0, 32], sizes = [2, 40, 4], strides = [1, 1, 1]} : vector<2x40x96xf32> to vector<2x40x4xf32>
    %14 = vector.extract_strided_slice %6 {offsets = [0, 0, 64], sizes = [2, 40, 4], strides = [1, 1, 1]} : vector<2x40x96xf32> to vector<2x40x4xf32>
    "tpu.trace_start"() <{level = 10 : i32, message = "wqd,wkd->wqk"}> : () -> ()
    %cst_11 = arith.constant dense<0.000000e+00> : vector<2x40x40xf32>
    %15 = tpu.matmul %12, %13, %cst_11 {dimension_numbers = #tpu.dot_dimension_numbers<[2], [2], [1], [1], [0, 0, 0, 1, 1, 1], [0], [0]>} : vector<2x40x4xf32>, vector<2x40x4xf32>, vector<2x40x40xf32> -> vector<2x40x40xf32>
    "tpu.trace_stop"() : () -> ()
    %cst_12 = arith.constant 5.000000e-01 : f32
    %16 = vector.broadcast %cst_12 : f32 to vector<2x40x40xf32>
    %17 = arith.mulf %15, %16 : vector<2x40x40xf32>
    %cst_13 = arith.constant -1.000000e+09 : f32
    %18 = vector.broadcast %cst_13 : f32 to vector<2x40x40xf32>
    %19 = arith.select %11, %17, %18 : vector<2x40x40xi1>, vector<2x40x40xf32>
    %cst_14 = arith.constant dense<0xFF800000> : vector<2x40xf32>
    %20 = vector.multi_reduction <maximumf>, %19, %cst_14 [2] : vector<2x40x40xf32> to vector<2x40xf32>
    %21 = vector.shape_cast %20 : vector<2x40xf32> to vector<2x40x1xf32>
    %22 = vector.broadcast %21 : vector<2x40x1xf32> to vector<2x40x40xf32>
    %23 = arith.subf %19, %22 : vector<2x40x40xf32>
    %24 = math.exp %23 : vector<2x40x40xf32>
    %cst_15 = arith.constant dense<0.000000e+00> : vector<2x40xf32>
    %25 = vector.multi_reduction <add>, %24, %cst_15 [2] : vector<2x40x40xf32> to vector<2x40xf32>
    %26 = vector.shape_cast %25 : vector<2x40xf32> to vector<2x40x1xf32>
    %27 = tpu.reciprocal %26 {approx = true} : vector<2x40x1xf32> -> vector<2x40x1xf32>
    %28 = vector.broadcast %27 : vector<2x40x1xf32> to vector<2x40x40xf32>
    %29 = arith.mulf %24, %28 : vector<2x40x40xf32>
    "tpu.trace_start"() <{level = 10 : i32, message = "wqk,wkd->wqd"}> : () -> ()
    %cst_16 = arith.constant dense<0.000000e+00> : vector<2x40x4xf32>
    %30 = tpu.matmul %29, %14, %cst_16 {dimension_numbers = #tpu.dot_dimension_numbers<[2], [1], [1], [2], [0, 0, 0, 1, 1, 2], [0], [0]>} : vector<2x40x40xf32>, vector<2x40x4xf32>, vector<2x40x4xf32> -> vector<2x40x4xf32>
    "tpu.trace_stop"() : () -> ()
    %31 = vector.extract_strided_slice %6 {offsets = [0, 0, 4], sizes = [2, 40, 4], strides = [1, 1, 1]} : vector<2x40x96xf32> to vector<2x40x4xf32>
    %32 = vector.extract_strided_slice %6 {offsets = [0, 0, 36], sizes = [2, 40, 4], strides = [1, 1, 1]} : vector<2x40x96xf32> to vector<2x40x4xf32>
    %33 = vector.extract_strided_slice %6 {offsets = [0, 0, 68], sizes = [2, 40, 4], strides = [1, 1, 1]} : vector<2x40x96xf32> to vector<2x40x4xf32>
    "tpu.trace_start"() <{level = 10 : i32, message = "wqd,wkd->wqk"}> : () -> ()
    %cst_17 = arith.constant dense<0.000000e+00> : vector<2x40x40xf32>
    %34 = tpu.matmul %31, %32, %cst_17 {dimension_numbers = #tpu.dot_dimension_numbers<[2], [2], [1], [1], [0, 0, 0, 1, 1, 1], [0], [0]>} : vector<2x40x4xf32>, vector<2x40x4xf32>, vector<2x40x40xf32> -> vector<2x40x40xf32>
    "tpu.trace_stop"() : () -> ()
    %cst_18 = arith.constant 5.000000e-01 : f32
    %35 = vector.broadcast %cst_18 : f32 to vector<2x40x40xf32>
    %36 = arith.mulf %34, %35 : vector<2x40x40xf32>
    %cst_19 = arith.constant -1.000000e+09 : f32
    %37 = vector.broadcast %cst_19 : f32 to vector<2x40x40xf32>
    %38 = arith.select %11, %36, %37 : vector<2x40x40xi1>, vector<2x40x40xf32>
    %cst_20 = arith.constant dense<0xFF800000> : vector<2x40xf32>
    %39 = vector.multi_reduction <maximumf>, %38, %cst_20 [2] : vector<2x40x40xf32> to vector<2x40xf32>
    %40 = vector.shape_cast %39 : vector<2x40xf32> to vector<2x40x1xf32>
    %41 = vector.broadcast %40 : vector<2x40x1xf32> to vector<2x40x40xf32>
    %42 = arith.subf %38, %41 : vector<2x40x40xf32>
    %43 = math.exp %42 : vector<2x40x40xf32>
    %cst_21 = arith.constant dense<0.000000e+00> : vector<2x40xf32>
    %44 = vector.multi_reduction <add>, %43, %cst_21 [2] : vector<2x40x40xf32> to vector<2x40xf32>
    %45 = vector.shape_cast %44 : vector<2x40xf32> to vector<2x40x1xf32>
    %46 = tpu.reciprocal %45 {approx = true} : vector<2x40x1xf32> -> vector<2x40x1xf32>
    %47 = vector.broadcast %46 : vector<2x40x1xf32> to vector<2x40x40xf32>
    %48 = arith.mulf %43, %47 : vector<2x40x40xf32>
    "tpu.trace_start"() <{level = 10 : i32, message = "wqk,wkd->wqd"}> : () -> ()
    %cst_22 = arith.constant dense<0.000000e+00> : vector<2x40x4xf32>
    %49 = tpu.matmul %48, %33, %cst_22 {dimension_numbers = #tpu.dot_dimension_numbers<[2], [1], [1], [2], [0, 0, 0, 1, 1, 2], [0], [0]>} : vector<2x40x40xf32>, vector<2x40x4xf32>, vector<2x40x4xf32> -> vector<2x40x4xf32>
    "tpu.trace_stop"() : () -> ()
    %50 = vector.extract_strided_slice %6 {offsets = [0, 0, 8], sizes = [2, 40, 4], strides = [1, 1, 1]} : vector<2x40x96xf32> to vector<2x40x4xf32>
    %51 = vector.extract_strided_slice %6 {offsets = [0, 0, 40], sizes = [2, 40, 4], strides = [1, 1, 1]} : vector<2x40x96xf32> to vector<2x40x4xf32>
    %52 = vector.extract_strided_slice %6 {offsets = [0, 0, 72], sizes = [2, 40, 4], strides = [1, 1, 1]} : vector<2x40x96xf32> to vector<2x40x4xf32>
    "tpu.trace_start"() <{level = 10 : i32, message = "wqd,wkd->wqk"}> : () -> ()
    %cst_23 = arith.constant dense<0.000000e+00> : vector<2x40x40xf32>
    %53 = tpu.matmul %50, %51, %cst_23 {dimension_numbers = #tpu.dot_dimension_numbers<[2], [2], [1], [1], [0, 0, 0, 1, 1, 1], [0], [0]>} : vector<2x40x4xf32>, vector<2x40x4xf32>, vector<2x40x40xf32> -> vector<2x40x40xf32>
    "tpu.trace_stop"() : () -> ()
    %cst_24 = arith.constant 5.000000e-01 : f32
    %54 = vector.broadcast %cst_24 : f32 to vector<2x40x40xf32>
    %55 = arith.mulf %53, %54 : vector<2x40x40xf32>
    %cst_25 = arith.constant -1.000000e+09 : f32
    %56 = vector.broadcast %cst_25 : f32 to vector<2x40x40xf32>
    %57 = arith.select %11, %55, %56 : vector<2x40x40xi1>, vector<2x40x40xf32>
    %cst_26 = arith.constant dense<0xFF800000> : vector<2x40xf32>
    %58 = vector.multi_reduction <maximumf>, %57, %cst_26 [2] : vector<2x40x40xf32> to vector<2x40xf32>
    %59 = vector.shape_cast %58 : vector<2x40xf32> to vector<2x40x1xf32>
    %60 = vector.broadcast %59 : vector<2x40x1xf32> to vector<2x40x40xf32>
    %61 = arith.subf %57, %60 : vector<2x40x40xf32>
    %62 = math.exp %61 : vector<2x40x40xf32>
    %cst_27 = arith.constant dense<0.000000e+00> : vector<2x40xf32>
    %63 = vector.multi_reduction <add>, %62, %cst_27 [2] : vector<2x40x40xf32> to vector<2x40xf32>
    %64 = vector.shape_cast %63 : vector<2x40xf32> to vector<2x40x1xf32>
    %65 = tpu.reciprocal %64 {approx = true} : vector<2x40x1xf32> -> vector<2x40x1xf32>
    %66 = vector.broadcast %65 : vector<2x40x1xf32> to vector<2x40x40xf32>
    %67 = arith.mulf %62, %66 : vector<2x40x40xf32>
    "tpu.trace_start"() <{level = 10 : i32, message = "wqk,wkd->wqd"}> : () -> ()
    %cst_28 = arith.constant dense<0.000000e+00> : vector<2x40x4xf32>
    %68 = tpu.matmul %67, %52, %cst_28 {dimension_numbers = #tpu.dot_dimension_numbers<[2], [1], [1], [2], [0, 0, 0, 1, 1, 2], [0], [0]>} : vector<2x40x40xf32>, vector<2x40x4xf32>, vector<2x40x4xf32> -> vector<2x40x4xf32>
    "tpu.trace_stop"() : () -> ()
    %69 = vector.extract_strided_slice %6 {offsets = [0, 0, 12], sizes = [2, 40, 4], strides = [1, 1, 1]} : vector<2x40x96xf32> to vector<2x40x4xf32>
    %70 = vector.extract_strided_slice %6 {offsets = [0, 0, 44], sizes = [2, 40, 4], strides = [1, 1, 1]} : vector<2x40x96xf32> to vector<2x40x4xf32>
    %71 = vector.extract_strided_slice %6 {offsets = [0, 0, 76], sizes = [2, 40, 4], strides = [1, 1, 1]} : vector<2x40x96xf32> to vector<2x40x4xf32>
    "tpu.trace_start"() <{level = 10 : i32, message = "wqd,wkd->wqk"}> : () -> ()
    %cst_29 = arith.constant dense<0.000000e+00> : vector<2x40x40xf32>
    %72 = tpu.matmul %69, %70, %cst_29 {dimension_numbers = #tpu.dot_dimension_numbers<[2], [2], [1], [1], [0, 0, 0, 1, 1, 1], [0], [0]>} : vector<2x40x4xf32>, vector<2x40x4xf32>, vector<2x40x40xf32> -> vector<2x40x40xf32>
    "tpu.trace_stop"() : () -> ()
    %cst_30 = arith.constant 5.000000e-01 : f32
    %73 = vector.broadcast %cst_30 : f32 to vector<2x40x40xf32>
    %74 = arith.mulf %72, %73 : vector<2x40x40xf32>
    %cst_31 = arith.constant -1.000000e+09 : f32
    %75 = vector.broadcast %cst_31 : f32 to vector<2x40x40xf32>
    %76 = arith.select %11, %74, %75 : vector<2x40x40xi1>, vector<2x40x40xf32>
    %cst_32 = arith.constant dense<0xFF800000> : vector<2x40xf32>
    %77 = vector.multi_reduction <maximumf>, %76, %cst_32 [2] : vector<2x40x40xf32> to vector<2x40xf32>
    %78 = vector.shape_cast %77 : vector<2x40xf32> to vector<2x40x1xf32>
    %79 = vector.broadcast %78 : vector<2x40x1xf32> to vector<2x40x40xf32>
    %80 = arith.subf %76, %79 : vector<2x40x40xf32>
    %81 = math.exp %80 : vector<2x40x40xf32>
    %cst_33 = arith.constant dense<0.000000e+00> : vector<2x40xf32>
    %82 = vector.multi_reduction <add>, %81, %cst_33 [2] : vector<2x40x40xf32> to vector<2x40xf32>
    %83 = vector.shape_cast %82 : vector<2x40xf32> to vector<2x40x1xf32>
    %84 = tpu.reciprocal %83 {approx = true} : vector<2x40x1xf32> -> vector<2x40x1xf32>
    %85 = vector.broadcast %84 : vector<2x40x1xf32> to vector<2x40x40xf32>
    %86 = arith.mulf %81, %85 : vector<2x40x40xf32>
    "tpu.trace_start"() <{level = 10 : i32, message = "wqk,wkd->wqd"}> : () -> ()
    %cst_34 = arith.constant dense<0.000000e+00> : vector<2x40x4xf32>
    %87 = tpu.matmul %86, %71, %cst_34 {dimension_numbers = #tpu.dot_dimension_numbers<[2], [1], [1], [2], [0, 0, 0, 1, 1, 2], [0], [0]>} : vector<2x40x40xf32>, vector<2x40x4xf32>, vector<2x40x4xf32> -> vector<2x40x4xf32>
    "tpu.trace_stop"() : () -> ()
    %88 = vector.extract_strided_slice %6 {offsets = [0, 0, 16], sizes = [2, 40, 4], strides = [1, 1, 1]} : vector<2x40x96xf32> to vector<2x40x4xf32>
    %89 = vector.extract_strided_slice %6 {offsets = [0, 0, 48], sizes = [2, 40, 4], strides = [1, 1, 1]} : vector<2x40x96xf32> to vector<2x40x4xf32>
    %90 = vector.extract_strided_slice %6 {offsets = [0, 0, 80], sizes = [2, 40, 4], strides = [1, 1, 1]} : vector<2x40x96xf32> to vector<2x40x4xf32>
    "tpu.trace_start"() <{level = 10 : i32, message = "wqd,wkd->wqk"}> : () -> ()
    %cst_35 = arith.constant dense<0.000000e+00> : vector<2x40x40xf32>
    %91 = tpu.matmul %88, %89, %cst_35 {dimension_numbers = #tpu.dot_dimension_numbers<[2], [2], [1], [1], [0, 0, 0, 1, 1, 1], [0], [0]>} : vector<2x40x4xf32>, vector<2x40x4xf32>, vector<2x40x40xf32> -> vector<2x40x40xf32>
    "tpu.trace_stop"() : () -> ()
    %cst_36 = arith.constant 5.000000e-01 : f32
    %92 = vector.broadcast %cst_36 : f32 to vector<2x40x40xf32>
    %93 = arith.mulf %91, %92 : vector<2x40x40xf32>
    %cst_37 = arith.constant -1.000000e+09 : f32
    %94 = vector.broadcast %cst_37 : f32 to vector<2x40x40xf32>
    %95 = arith.select %11, %93, %94 : vector<2x40x40xi1>, vector<2x40x40xf32>
    %cst_38 = arith.constant dense<0xFF800000> : vector<2x40xf32>
    %96 = vector.multi_reduction <maximumf>, %95, %cst_38 [2] : vector<2x40x40xf32> to vector<2x40xf32>
    %97 = vector.shape_cast %96 : vector<2x40xf32> to vector<2x40x1xf32>
    %98 = vector.broadcast %97 : vector<2x40x1xf32> to vector<2x40x40xf32>
    %99 = arith.subf %95, %98 : vector<2x40x40xf32>
    %100 = math.exp %99 : vector<2x40x40xf32>
    %cst_39 = arith.constant dense<0.000000e+00> : vector<2x40xf32>
    %101 = vector.multi_reduction <add>, %100, %cst_39 [2] : vector<2x40x40xf32> to vector<2x40xf32>
    %102 = vector.shape_cast %101 : vector<2x40xf32> to vector<2x40x1xf32>
    %103 = tpu.reciprocal %102 {approx = true} : vector<2x40x1xf32> -> vector<2x40x1xf32>
    %104 = vector.broadcast %103 : vector<2x40x1xf32> to vector<2x40x40xf32>
    %105 = arith.mulf %100, %104 : vector<2x40x40xf32>
    "tpu.trace_start"() <{level = 10 : i32, message = "wqk,wkd->wqd"}> : () -> ()
    %cst_40 = arith.constant dense<0.000000e+00> : vector<2x40x4xf32>
    %106 = tpu.matmul %105, %90, %cst_40 {dimension_numbers = #tpu.dot_dimension_numbers<[2], [1], [1], [2], [0, 0, 0, 1, 1, 2], [0], [0]>} : vector<2x40x40xf32>, vector<2x40x4xf32>, vector<2x40x4xf32> -> vector<2x40x4xf32>
    "tpu.trace_stop"() : () -> ()
    %107 = vector.extract_strided_slice %6 {offsets = [0, 0, 20], sizes = [2, 40, 4], strides = [1, 1, 1]} : vector<2x40x96xf32> to vector<2x40x4xf32>
    %108 = vector.extract_strided_slice %6 {offsets = [0, 0, 52], sizes = [2, 40, 4], strides = [1, 1, 1]} : vector<2x40x96xf32> to vector<2x40x4xf32>
    %109 = vector.extract_strided_slice %6 {offsets = [0, 0, 84], sizes = [2, 40, 4], strides = [1, 1, 1]} : vector<2x40x96xf32> to vector<2x40x4xf32>
    "tpu.trace_start"() <{level = 10 : i32, message = "wqd,wkd->wqk"}> : () -> ()
    %cst_41 = arith.constant dense<0.000000e+00> : vector<2x40x40xf32>
    %110 = tpu.matmul %107, %108, %cst_41 {dimension_numbers = #tpu.dot_dimension_numbers<[2], [2], [1], [1], [0, 0, 0, 1, 1, 1], [0], [0]>} : vector<2x40x4xf32>, vector<2x40x4xf32>, vector<2x40x40xf32> -> vector<2x40x40xf32>
    "tpu.trace_stop"() : () -> ()
    %cst_42 = arith.constant 5.000000e-01 : f32
    %111 = vector.broadcast %cst_42 : f32 to vector<2x40x40xf32>
    %112 = arith.mulf %110, %111 : vector<2x40x40xf32>
    %cst_43 = arith.constant -1.000000e+09 : f32
    %113 = vector.broadcast %cst_43 : f32 to vector<2x40x40xf32>
    %114 = arith.select %11, %112, %113 : vector<2x40x40xi1>, vector<2x40x40xf32>
    %cst_44 = arith.constant dense<0xFF800000> : vector<2x40xf32>
    %115 = vector.multi_reduction <maximumf>, %114, %cst_44 [2] : vector<2x40x40xf32> to vector<2x40xf32>
    %116 = vector.shape_cast %115 : vector<2x40xf32> to vector<2x40x1xf32>
    %117 = vector.broadcast %116 : vector<2x40x1xf32> to vector<2x40x40xf32>
    %118 = arith.subf %114, %117 : vector<2x40x40xf32>
    %119 = math.exp %118 : vector<2x40x40xf32>
    %cst_45 = arith.constant dense<0.000000e+00> : vector<2x40xf32>
    %120 = vector.multi_reduction <add>, %119, %cst_45 [2] : vector<2x40x40xf32> to vector<2x40xf32>
    %121 = vector.shape_cast %120 : vector<2x40xf32> to vector<2x40x1xf32>
    %122 = tpu.reciprocal %121 {approx = true} : vector<2x40x1xf32> -> vector<2x40x1xf32>
    %123 = vector.broadcast %122 : vector<2x40x1xf32> to vector<2x40x40xf32>
    %124 = arith.mulf %119, %123 : vector<2x40x40xf32>
    "tpu.trace_start"() <{level = 10 : i32, message = "wqk,wkd->wqd"}> : () -> ()
    %cst_46 = arith.constant dense<0.000000e+00> : vector<2x40x4xf32>
    %125 = tpu.matmul %124, %109, %cst_46 {dimension_numbers = #tpu.dot_dimension_numbers<[2], [1], [1], [2], [0, 0, 0, 1, 1, 2], [0], [0]>} : vector<2x40x40xf32>, vector<2x40x4xf32>, vector<2x40x4xf32> -> vector<2x40x4xf32>
    "tpu.trace_stop"() : () -> ()
    %126 = vector.extract_strided_slice %6 {offsets = [0, 0, 24], sizes = [2, 40, 4], strides = [1, 1, 1]} : vector<2x40x96xf32> to vector<2x40x4xf32>
    %127 = vector.extract_strided_slice %6 {offsets = [0, 0, 56], sizes = [2, 40, 4], strides = [1, 1, 1]} : vector<2x40x96xf32> to vector<2x40x4xf32>
    %128 = vector.extract_strided_slice %6 {offsets = [0, 0, 88], sizes = [2, 40, 4], strides = [1, 1, 1]} : vector<2x40x96xf32> to vector<2x40x4xf32>
    "tpu.trace_start"() <{level = 10 : i32, message = "wqd,wkd->wqk"}> : () -> ()
    %cst_47 = arith.constant dense<0.000000e+00> : vector<2x40x40xf32>
    %129 = tpu.matmul %126, %127, %cst_47 {dimension_numbers = #tpu.dot_dimension_numbers<[2], [2], [1], [1], [0, 0, 0, 1, 1, 1], [0], [0]>} : vector<2x40x4xf32>, vector<2x40x4xf32>, vector<2x40x40xf32> -> vector<2x40x40xf32>
    "tpu.trace_stop"() : () -> ()
    %cst_48 = arith.constant 5.000000e-01 : f32
    %130 = vector.broadcast %cst_48 : f32 to vector<2x40x40xf32>
    %131 = arith.mulf %129, %130 : vector<2x40x40xf32>
    %cst_49 = arith.constant -1.000000e+09 : f32
    %132 = vector.broadcast %cst_49 : f32 to vector<2x40x40xf32>
    %133 = arith.select %11, %131, %132 : vector<2x40x40xi1>, vector<2x40x40xf32>
    %cst_50 = arith.constant dense<0xFF800000> : vector<2x40xf32>
    %134 = vector.multi_reduction <maximumf>, %133, %cst_50 [2] : vector<2x40x40xf32> to vector<2x40xf32>
    %135 = vector.shape_cast %134 : vector<2x40xf32> to vector<2x40x1xf32>
    %136 = vector.broadcast %135 : vector<2x40x1xf32> to vector<2x40x40xf32>
    %137 = arith.subf %133, %136 : vector<2x40x40xf32>
    %138 = math.exp %137 : vector<2x40x40xf32>
    %cst_51 = arith.constant dense<0.000000e+00> : vector<2x40xf32>
    %139 = vector.multi_reduction <add>, %138, %cst_51 [2] : vector<2x40x40xf32> to vector<2x40xf32>
    %140 = vector.shape_cast %139 : vector<2x40xf32> to vector<2x40x1xf32>
    %141 = tpu.reciprocal %140 {approx = true} : vector<2x40x1xf32> -> vector<2x40x1xf32>
    %142 = vector.broadcast %141 : vector<2x40x1xf32> to vector<2x40x40xf32>
    %143 = arith.mulf %138, %142 : vector<2x40x40xf32>
    "tpu.trace_start"() <{level = 10 : i32, message = "wqk,wkd->wqd"}> : () -> ()
    %cst_52 = arith.constant dense<0.000000e+00> : vector<2x40x4xf32>
    %144 = tpu.matmul %143, %128, %cst_52 {dimension_numbers = #tpu.dot_dimension_numbers<[2], [1], [1], [2], [0, 0, 0, 1, 1, 2], [0], [0]>} : vector<2x40x40xf32>, vector<2x40x4xf32>, vector<2x40x4xf32> -> vector<2x40x4xf32>
    "tpu.trace_stop"() : () -> ()
    %145 = vector.extract_strided_slice %6 {offsets = [0, 0, 28], sizes = [2, 40, 4], strides = [1, 1, 1]} : vector<2x40x96xf32> to vector<2x40x4xf32>
    %146 = vector.extract_strided_slice %6 {offsets = [0, 0, 60], sizes = [2, 40, 4], strides = [1, 1, 1]} : vector<2x40x96xf32> to vector<2x40x4xf32>
    %147 = vector.extract_strided_slice %6 {offsets = [0, 0, 92], sizes = [2, 40, 4], strides = [1, 1, 1]} : vector<2x40x96xf32> to vector<2x40x4xf32>
    "tpu.trace_start"() <{level = 10 : i32, message = "wqd,wkd->wqk"}> : () -> ()
    %cst_53 = arith.constant dense<0.000000e+00> : vector<2x40x40xf32>
    %148 = tpu.matmul %145, %146, %cst_53 {dimension_numbers = #tpu.dot_dimension_numbers<[2], [2], [1], [1], [0, 0, 0, 1, 1, 1], [0], [0]>} : vector<2x40x4xf32>, vector<2x40x4xf32>, vector<2x40x40xf32> -> vector<2x40x40xf32>
    "tpu.trace_stop"() : () -> ()
    %cst_54 = arith.constant 5.000000e-01 : f32
    %149 = vector.broadcast %cst_54 : f32 to vector<2x40x40xf32>
    %150 = arith.mulf %148, %149 : vector<2x40x40xf32>
    %cst_55 = arith.constant -1.000000e+09 : f32
    %151 = vector.broadcast %cst_55 : f32 to vector<2x40x40xf32>
    %152 = arith.select %11, %150, %151 : vector<2x40x40xi1>, vector<2x40x40xf32>
    %cst_56 = arith.constant dense<0xFF800000> : vector<2x40xf32>
    %153 = vector.multi_reduction <maximumf>, %152, %cst_56 [2] : vector<2x40x40xf32> to vector<2x40xf32>
    %154 = vector.shape_cast %153 : vector<2x40xf32> to vector<2x40x1xf32>
    %155 = vector.broadcast %154 : vector<2x40x1xf32> to vector<2x40x40xf32>
    %156 = arith.subf %152, %155 : vector<2x40x40xf32>
    %157 = math.exp %156 : vector<2x40x40xf32>
    %cst_57 = arith.constant dense<0.000000e+00> : vector<2x40xf32>
    %158 = vector.multi_reduction <add>, %157, %cst_57 [2] : vector<2x40x40xf32> to vector<2x40xf32>
    %159 = vector.shape_cast %158 : vector<2x40xf32> to vector<2x40x1xf32>
    %160 = tpu.reciprocal %159 {approx = true} : vector<2x40x1xf32> -> vector<2x40x1xf32>
    %161 = vector.broadcast %160 : vector<2x40x1xf32> to vector<2x40x40xf32>
    %162 = arith.mulf %157, %161 : vector<2x40x40xf32>
    "tpu.trace_start"() <{level = 10 : i32, message = "wqk,wkd->wqd"}> : () -> ()
    %cst_58 = arith.constant dense<0.000000e+00> : vector<2x40x4xf32>
    %163 = tpu.matmul %162, %147, %cst_58 {dimension_numbers = #tpu.dot_dimension_numbers<[2], [1], [1], [2], [0, 0, 0, 1, 1, 2], [0], [0]>} : vector<2x40x40xf32>, vector<2x40x4xf32>, vector<2x40x4xf32> -> vector<2x40x4xf32>
    "tpu.trace_stop"() : () -> ()
    %164 = tpu.concatenate %30, %49, %68, %87, %106, %125, %144, %163 in 2 : vector<2x40x4xf32>, vector<2x40x4xf32>, vector<2x40x4xf32>, vector<2x40x4xf32>, vector<2x40x4xf32>, vector<2x40x4xf32>, vector<2x40x4xf32>, vector<2x40x4xf32> -> vector<2x40x32xf32>
    %165 = vector.shape_cast %164 : vector<2x40x32xf32> to vector<80x32xf32>
    %c0_59 = arith.constant 0 : index
    %c0_60 = arith.constant 0 : index
    %166 = vector.load %arg6[%c0_59, %c0_60] : memref<32x32xf32, #tpu.memory_space<vmem>>, vector<32x32xf32>
    %cst_61 = arith.constant dense<0.000000e+00> : vector<80x32xf32>
    %167 = tpu.matmul %165, %166, %cst_61 {dimension_numbers = #tpu.dot_dimension_numbers<[1], [0], [0], [1], [0, 0, 1, 1], [], []>} : vector<80x32xf32>, vector<32x32xf32>, vector<80x32xf32> -> vector<80x32xf32>
    %c0_62 = arith.constant 0 : index
    %c0_63 = arith.constant 0 : index
    %168 = vector.load %arg7[%c0_62, %c0_63] : memref<1x32xf32, #tpu.memory_space<vmem>>, vector<1x32xf32>
    %169 = vector.broadcast %168 : vector<1x32xf32> to vector<80x32xf32>
    %170 = arith.addf %167, %169 : vector<80x32xf32>
    %c0_64 = arith.constant 0 : index
    %c0_65 = arith.constant 0 : index
    %171 = vector.load %arg8[%c0_64, %c0_65] : memref<80x32xf32, #tpu.memory_space<vmem>>, vector<80x32xf32>
    tpu.vector_store %arg8[%c0_64, %c0_65], %170 {strides = array<i32>} : memref<80x32xf32, #tpu.memory_space<vmem>>, vector<80x32xf32>,
    return
  }
  func.func @transform_0(%arg0: i32) -> (i32, i32, i32) {
    %c2_i32 = arith.constant 2 : i32
    %c0_i32 = arith.constant 0 : i32
    %0 = arith.cmpi eq, %c2_i32, %c0_i32 : i32
    %c1_i32 = arith.constant 1 : i32
    %1 = arith.select %0, %c1_i32, %c2_i32 : i32
    %2 = arith.remsi %arg0, %1 : i32
    %c0_i32_0 = arith.constant 0 : i32
    %3 = arith.cmpi ne, %2, %c0_i32_0 : i32
    %c0_i32_1 = arith.constant 0 : i32
    %4 = arith.cmpi slt, %2, %c0_i32_1 : i32
    %c0_i32_2 = arith.constant 0 : i32
    %5 = arith.cmpi slt, %1, %c0_i32_2 : i32
    %6 = arith.xori %4, %5 : i1
    %7 = arith.andi %6, %3 : i1
    %8 = arith.addi %2, %1 : i32
    %9 = arith.select %7, %8, %2 : i32
    %c0_i32_3 = arith.constant 0 : i32
    %c0_i32_4 = arith.constant 0 : i32
    %c0_i32_5 = arith.constant 0 : i32
    return %9, %c0_i32_3, %c0_i32_4 : i32, i32, i32
  }
  func.func @transform_1(%arg0: i32) -> (i32, i32, i32) {
    %c2_i32 = arith.constant 2 : i32
    %c0_i32 = arith.constant 0 : i32
    %0 = arith.cmpi eq, %c2_i32, %c0_i32 : i32
    %c1_i32 = arith.constant 1 : i32
    %1 = arith.select %0, %c1_i32, %c2_i32 : i32
    %2 = arith.remsi %arg0, %1 : i32
    %c0_i32_0 = arith.constant 0 : i32
    %3 = arith.cmpi ne, %2, %c0_i32_0 : i32
    %c0_i32_1 = arith.constant 0 : i32
    %4 = arith.cmpi slt, %2, %c0_i32_1 : i32
    %c0_i32_2 = arith.constant 0 : i32
    %5 = arith.cmpi slt, %1, %c0_i32_2 : i32
    %6 = arith.xori %4, %5 : i1
    %7 = arith.andi %6, %3 : i1
    %8 = arith.addi %2, %1 : i32
    %9 = arith.select %7, %8, %2 : i32
    %c0_i32_3 = arith.constant 0 : i32
    %c0_i32_4 = arith.constant 0 : i32
    %c0_i32_5 = arith.constant 0 : i32
    return %9, %c0_i32_3, %c0_i32_4 : i32, i32, i32
  }
  func.func @transform_2(%arg0: i32) -> (i32, i32) {
    %c0_i32 = arith.constant 0 : i32
    %c0_i32_0 = arith.constant 0 : i32
    return %arg0, %c0_i32 : i32, i32
  }
  func.func @transform_3(%arg0: i32) -> (i32, i32) {
    %c0_i32 = arith.constant 0 : i32
    %c0_i32_0 = arith.constant 0 : i32
    %c0_i32_1 = arith.constant 0 : i32
    return %c0_i32, %c0_i32_0 : i32, i32
  }
  func.func @transform_4(%arg0: i32) -> (i32, i32) {
    %c0_i32 = arith.constant 0 : i32
    %c0_i32_0 = arith.constant 0 : i32
    %c0_i32_1 = arith.constant 0 : i32
    return %c0_i32, %c0_i32_0 : i32, i32
  }
  func.func @transform_5(%arg0: i32) -> (i32, i32) {
    %c0_i32 = arith.constant 0 : i32
    %c0_i32_0 = arith.constant 0 : i32
    %c0_i32_1 = arith.constant 0 : i32
    return %c0_i32, %c0_i32_0 : i32, i32
  }
  func.func @transform_6(%arg0: i32) -> (i32, i32) {
    %c0_i32 = arith.constant 0 : i32
    %c0_i32_0 = arith.constant 0 : i32
    %c0_i32_1 = arith.constant 0 : i32
    return %c0_i32, %c0_i32_0 : i32, i32
  }
  func.func @transform_7(%arg0: i32) -> (i32, i32) {
    %c0_i32 = arith.constant 0 : i32
    %c0_i32_0 = arith.constant 0 : i32
    return %arg0, %c0_i32 : i32, i32
  }
}

</mosaic_0001>

<llo_original>
// kernel: tpu_custom_call.1
$region0: #{tpu_custom_call.1}
  #allocation0 [shape = 'u32[]', space=smem, size = 0x4, offset = 0x4, fixed_abs, tag = 'smem constant byte address 0x4 - core index']
  #allocation1 [shape = 'u32[144,128]{1,0:T(1,128)}', space=vmem, size = 0x12000, scoped, tag = 'internal scratch']
  %s0 = inlined_call_operand.vmem [shape: s32[4,40,1], index: 0, kind: input, shape index: {}]
  %s1 = inlined_call_operand.vmem [shape: s32[4,1,40], index: 1, kind: input, shape index: {}]
  %s2 = inlined_call_operand.vmem [shape: f32[320,32], index: 2, kind: input, shape index: {}]
  %s3 = inlined_call_operand.vmem [shape: f32[32,96], index: 3, kind: input, shape index: {}]
  %s4 = inlined_call_operand.vmem [shape: f32[1,96], index: 4, kind: input, shape index: {}]
  %s5 = inlined_call_operand.vmem [shape: f32[32,32], index: 5, kind: input, shape index: {}]
  %s6 = inlined_call_operand.vmem [shape: f32[1,32], index: 6, kind: input, shape index: {}]
  %s7 = inlined_call_operand.vmem [shape: f32[320,32], index: 7, kind: output, shape index: {}]
  %s8 = sld [smem:[#allocation0]]
  $region61: #{tpu_custom_call.1} parent=0
    _
  %s10 = ssub.s32 1, %s8
  %s11 = scalar_select 0, %s10, %s8
  loop: start=0, step=1, limit=6
  $region2: #{tpu_custom_call.1} parent=0 // loop_pre_header
    _
  $region3: #{tpu_custom_call.1} parent=0 // loop_header
    %s13 = sphi 0, %s17
    %p14 = scmp.ge.s32.totalorder %s13, 6
    %s47 = sphi 0, %s49
    %s50 = sphi 0, %s47
    %s51 = sphi 0, %s50
    %s67 = sphi 0, %s51
    %s97 = sphi 0, %s99
    %s100 = sphi 0, %s97
    %s101 = sphi 0, %s100
    %s117 = sphi 0, %s101
    %s123 = sphi 0, %s125
    %s126 = sphi 0, %s123
    %s127 = sphi 0, %s126
    %s143 = sphi 0, %s127
    %s147 = sphi 0, %s147
    %s149 = sphi 0, %s147
    %s150 = sphi 0, %s149
    %s164 = sphi 0, %s150
    %s168 = sphi 0, %s168
    %s170 = sphi 0, %s168
    %s171 = sphi 0, %s170
    %s185 = sphi 0, %s171
    %s189 = sphi 0, %s189
    %s191 = sphi 0, %s189
    %s192 = sphi 0, %s191
    %s206 = sphi 0, %s192
    %s210 = sphi 0, %s210
    %s212 = sphi 0, %s210
    %s213 = sphi 0, %s212
    %s227 = sphi 0, %s213
    %s233 = sphi 0, %s235
    %s236 = sphi 0, %s233
    %s237 = sphi 0, %s236
    %s253 = sphi 0, %s237
  $region4: #{tpu_custom_call.1} parent=0 // loop_header_branch
    %16 = sbr.rel (%p14) target = $region8
  $region5: #{tpu_custom_call.1} parent=0 // loop_body
    %s18 = ssub.s32 %s13, 1
    %s19 = ssub.s32 %s13, 2
    %s20 = sadd.s32 %s13, 1
    %p21 = scmp.lt.s32.totalorder %s13, 0
    %s22 = ssub.s32 0, %s13
    %s23 = scalar_select %p21, %s22, %s13
    %s24 = sand.u32 %s23, 1
    %s25 = ssub.s32 0, %s24
    %s26 = scalar_select %p21, %s25, %s24
    %p27 = scmp.ne.s32.totalorder %s26, 0
    %p28 = scmp.lt.s32.totalorder %s26, 0
    %p29 = pnand %p28, %p27
    %p30 = pneg %p29
    %s31 = sadd.s32 %s26, 2
    %s32 = scalar_select %p30, %s31, %s26
    %p33 = scmp.lt.s32.totalorder %s20, 0
    %s34 = ssub.s32 0, %s20
    %s35 = scalar_select %p33, %s34, %s20
    %s36 = sand.u32 %s35, 1
    %s37 = ssub.s32 0, %s36
    %s38 = scalar_select %p33, %s37, %s36
    %p39 = scmp.ne.s32.totalorder %s38, 0
    %p40 = scmp.lt.s32.totalorder %s38, 0
    %p41 = pnand %p40, %p39
    %p42 = pneg %p41
    %s43 = sadd.s32 %s38, 2
    %s44 = scalar_select %p42, %s43, %s38
    %s45 = ssub.s32 %s32, %s44
    %p46 = scmp.eq.s32.totalorder %s45, 0
    %s48 = sadd.s32 %s47, 1
    %s49 = scalar_select %p46, %s47, %s48
    %p52 = pneg %p46
    %p53 = scmp.eq.s32.totalorder %s13, 3
    %p54 = por %p52, %p53
    %p55 = scmp.ne.s32.totalorder %s47, %s50
    %p56 = scmp.eq.s32.totalorder %s13, 0
    %p57 = por %p55, %p56
    %p58 = scmp.ne.s32.totalorder %s47, %s50
    %p59 = scmp.eq.s32.totalorder %s18, 3
    %p60 = por %p58, %p59
    %p61 = scmp.ne.s32.totalorder %s50, %s51
    %p62 = scmp.eq.s32.totalorder %s18, 0
    %p63 = por %p61, %p62
    %p64 = scmp.ne.s32.totalorder %s50, %s51
    %p65 = scmp.eq.s32.totalorder %s19, 3
    %p66 = por %p64, %p65
    %p68 = scmp.ne.s32.totalorder %s51, %s67
    %p69 = scmp.eq.s32.totalorder %s19, 0
    %p70 = por %p68, %p69
    %p71 = scmp.lt.s32.totalorder %s13, 0
    %s72 = ssub.s32 0, %s13
    %s73 = scalar_select %p71, %s72, %s13
    %s74 = sand.u32 %s73, 1
    %s75 = ssub.s32 0, %s74
    %s76 = scalar_select %p71, %s75, %s74
    %p77 = scmp.ne.s32.totalorder %s76, 0
    %p78 = scmp.lt.s32.totalorder %s76, 0
    %p79 = pnand %p78, %p77
    %p80 = pneg %p79
    %s81 = sadd.s32 %s76, 2
    %s82 = scalar_select %p80, %s81, %s76
    %p83 = scmp.lt.s32.totalorder %s20, 0
    %s84 = ssub.s32 0, %s20
    %s85 = scalar_select %p83, %s84, %s20
    %s86 = sand.u32 %s85, 1
    %s87 = ssub.s32 0, %s86
    %s88 = scalar_select %p83, %s87, %s86
    %p89 = scmp.ne.s32.totalorder %s88, 0
    %p90 = scmp.lt.s32.totalorder %s88, 0
    %p91 = pnand %p90, %p89
    %p92 = pneg %p91
    %s93 = sadd.s32 %s88, 2
    %s94 = scalar_select %p92, %s93, %s88
    %s95 = ssub.s32 %s82, %s94
    %p96 = scmp.eq.s32.totalorder %s95, 0
    %s98 = sadd.s32 %s97, 1
    %s99 = scalar_select %p96, %s97, %s98
    %p102 = pneg %p96
    %p103 = scmp.eq.s32.totalorder %s13, 3
    %p104 = por %p102, %p103
    %p105 = scmp.ne.s32.totalorder %s97, %s100
    %p106 = scmp.eq.s32.totalorder %s13, 0
    %p107 = por %p105, %p106
    %p108 = scmp.ne.s32.totalorder %s97, %s100
    %p109 = scmp.eq.s32.totalorder %s18, 3
    %p110 = por %p108, %p109
    %p111 = scmp.ne.s32.totalorder %s100, %s101
    %p112 = scmp.eq.s32.totalorder %s18, 0
    %p113 = por %p111, %p112
    %p114 = scmp.ne.s32.totalorder %s100, %s101
    %p115 = scmp.eq.s32.totalorder %s19, 3
    %p116 = por %p114, %p115
    %p118 = scmp.ne.s32.totalorder %s101, %s117
    %p119 = scmp.eq.s32.totalorder %s19, 0
    %p120 = por %p118, %p119
    %s121 = ssub.s32 %s13, %s20
    %p122 = scmp.eq.s32.totalorder %s121, 0
    %s124 = sadd.s32 %s123, 1
    %s125 = scalar_select %p122, %s123, %s124
    %p128 = pneg %p122
    %p129 = scmp.eq.s32.totalorder %s13, 3
    %p130 = por %p128, %p129
    %p131 = scmp.ne.s32.totalorder %s123, %s126
    %p132 = scmp.eq.s32.totalorder %s13, 0
    %p133 = por %p131, %p132
    %p134 = scmp.ne.s32.totalorder %s123, %s126
    %p135 = scmp.eq.s32.totalorder %s18, 3
    %p136 = por %p134, %p135
    %p137 = scmp.ne.s32.totalorder %s126, %s127
    %p138 = scmp.eq.s32.totalorder %s18, 0
    %p139 = por %p137, %p138
    %p140 = scmp.ne.s32.totalorder %s126, %s127
    %p141 = scmp.eq.s32.totalorder %s19, 3
    %p142 = por %p140, %p141
    %p144 = scmp.ne.s32.totalorder %s127, %s143
    %p145 = scmp.eq.s32.totalorder %s19, 0
    %p146 = por %p144, %p145
    %s148 = sadd.s32 %s147, 1
    %p151 = scmp.eq.s32.totalorder %s13, 3
    %p152 = scmp.ne.s32.totalorder %s147, %s149
    %p153 = scmp.eq.s32.totalorder %s13, 0
    %p154 = por %p152, %p153
    %p155 = scmp.ne.s32.totalorder %s147, %s149
    %p156 = scmp.eq.s32.totalorder %s18, 3
    %p157 = por %p155, %p156
    %p158 = scmp.ne.s32.totalorder %s149, %s150
    %p159 = scmp.eq.s32.totalorder %s18, 0
    %p160 = por %p158, %p159
    %p161 = scmp.ne.s32.totalorder %s149, %s150
    %p162 = scmp.eq.s32.totalorder %s19, 3
    %p163 = por %p161, %p162
    %p165 = scmp.ne.s32.totalorder %s150, %s164
    %p166 = scmp.eq.s32.totalorder %s19, 0
    %p167 = por %p165, %p166
    %s169 = sadd.s32 %s168, 1
    %p172 = scmp.eq.s32.totalorder %s13, 3
    %p173 = scmp.ne.s32.totalorder %s168, %s170
    %p174 = scmp.eq.s32.totalorder %s13, 0
    %p175 = por %p173, %p174
    %p176 = scmp.ne.s32.totalorder %s168, %s170
    %p177 = scmp.eq.s32.totalorder %s18, 3
    %p178 = por %p176, %p177
    %p179 = scmp.ne.s32.totalorder %s170, %s171
    %p180 = scmp.eq.s32.totalorder %s18, 0
    %p181 = por %p179, %p180
    %p182 = scmp.ne.s32.totalorder %s170, %s171
    %p183 = scmp.eq.s32.totalorder %s19, 3
    %p184 = por %p182, %p183
    %p186 = scmp.ne.s32.totalorder %s171, %s185
    %p187 = scmp.eq.s32.totalorder %s19, 0
    %p188 = por %p186, %p187
    %s190 = sadd.s32 %s189, 1
    %p193 = scmp.eq.s32.totalorder %s13, 3
    %p194 = scmp.ne.s32.totalorder %s189, %s191
    %p195 = scmp.eq.s32.totalorder %s13, 0
    %p196 = por %p194, %p195
    %p197 = scmp.ne.s32.totalorder %s189, %s191
    %p198 = scmp.eq.s32.totalorder %s18, 3
    %p199 = por %p197, %p198
    %p200 = scmp.ne.s32.totalorder %s191, %s192
    %p201 = scmp.eq.s32.totalorder %s18, 0
    %p202 = por %p200, %p201
    %p203 = scmp.ne.s32.totalorder %s191, %s192
    %p204 = scmp.eq.s32.totalorder %s19, 3
    %p205 = por %p203, %p204
    %p207 = scmp.ne.s32.totalorder %s192, %s206
    %p208 = scmp.eq.s32.totalorder %s19, 0
    %p209 = por %p207, %p208
    %s211 = sadd.s32 %s210, 1
    %p214 = scmp.eq.s32.totalorder %s13, 3
    %p215 = scmp.ne.s32.totalorder %s210, %s212
    %p216 = scmp.eq.s32.totalorder %s13, 0
    %p217 = por %p215, %p216
    %p218 = scmp.ne.s32.totalorder %s210, %s212
    %p219 = scmp.eq.s32.totalorder %s18, 3
    %p220 = por %p218, %p219
    %p221 = scmp.ne.s32.totalorder %s212, %s213
    %p222 = scmp.eq.s32.totalorder %s18, 0
    %p223 = por %p221, %p222
    %p224 = scmp.ne.s32.totalorder %s212, %s213
    %p225 = scmp.eq.s32.totalorder %s19, 3
    %p226 = por %p224, %p225
    %p228 = scmp.ne.s32.totalorder %s213, %s227
    %p229 = scmp.eq.s32.totalorder %s19, 0
    %p230 = por %p228, %p229
    %s231 = ssub.s32 %s13, %s20
    %p232 = scmp.eq.s32.totalorder %s231, 0
    %s234 = sadd.s32 %s233, 1
    %s235 = scalar_select %p232, %s233, %s234
    %p238 = pneg %p232
    %p239 = scmp.eq.s32.totalorder %s13, 3
    %p240 = por %p238, %p239
    %p241 = scmp.ne.s32.totalorder %s233, %s236
    %p242 = scmp.eq.s32.totalorder %s13, 0
    %p243 = por %p241, %p242
    %p244 = scmp.ne.s32.totalorder %s233, %s236
    %p245 = scmp.eq.s32.totalorder %s18, 3
    %p246 = por %p244, %p245
    %p247 = scmp.ne.s32.totalorder %s236, %s237
    %p248 = scmp.eq.s32.totalorder %s18, 0
    %p249 = por %p247, %p248
    %p250 = scmp.ne.s32.totalorder %s236, %s237
    %p251 = scmp.eq.s32.totalorder %s19, 3
    %p252 = por %p250, %p251
    %p254 = scmp.ne.s32.totalorder %s237, %s253
    %p255 = scmp.eq.s32.totalorder %s19, 0
    %p256 = por %p254, %p255
    %p257 = scmp.le.s32.totalorder 1, %s13
    %p258 = scmp.lt.s32.totalorder %s13, 5
    %p259 = pnand %p257, %p258
    %p260 = pneg %p259
    // Predicated region
    $region9: #{tpu_custom_call.1} parent=5 // pred_check
      _
    $region10: #{tpu_custom_call.1} parent=5 // pred_check_branch
      %262 = sbr.rel (%p259) target = $region12
    $region11: #{tpu_custom_call.1} parent=5 // pred_region
      %s263 = ssub.s32 %s13, 1
      // Predicated region
      $region13: #{tpu_custom_call.1} parent=11 // pred_check
        %p264 = pneg %p160
      $region14: #{tpu_custom_call.1} parent=11 // pred_check_branch
        %266 = sbr.rel (%p264) target = $region16
      $region15: #{tpu_custom_call.1} parent=11 // pred_region
        _
      $region16: #{tpu_custom_call.1} parent=11 // pred_fallthru
        _
      // Predicated region
      $region17: #{tpu_custom_call.1} parent=11 // pred_check
        %p267 = pneg %p181
      $region18: #{tpu_custom_call.1} parent=11 // pred_check_branch
        %269 = sbr.rel (%p267) target = $region20
      $region19: #{tpu_custom_call.1} parent=11 // pred_region
        _
      $region20: #{tpu_custom_call.1} parent=11 // pred_fallthru
        _
      // Predicated region
      $region21: #{tpu_custom_call.1} parent=11 // pred_check
        %p270 = pneg %p202
      $region22: #{tpu_custom_call.1} parent=11 // pred_check_branch
        %272 = sbr.rel (%p270) target = $region24
      $region23: #{tpu_custom_call.1} parent=11 // pred_region
        _
      $region24: #{tpu_custom_call.1} parent=11 // pred_fallthru
        _
      // Predicated region
      $region25: #{tpu_custom_call.1} parent=11 // pred_check
        %p273 = pneg %p223
      $region26: #{tpu_custom_call.1} parent=11 // pred_check_branch
        %275 = sbr.rel (%p273) target = $region28
      $region27: #{tpu_custom_call.1} parent=11 // pred_region
        _
      $region28: #{tpu_custom_call.1} parent=11 // pred_fallthru
        _
    $region12: #{tpu_custom_call.1} parent=5 // pred_fallthru
      _
    %p276 = scmp.lt.s32.totalorder %s13, 4
    // Predicated region
    $region29: #{tpu_custom_call.1} parent=5 // pred_check
      %p277 = pneg %p276
    $region30: #{tpu_custom_call.1} parent=5 // pred_check_branch
      %279 = sbr.rel (%p277) target = $region32
    $region31: #{tpu_custom_call.1} parent=5 // pred_region
      // Predicated region
      $region33: #{tpu_custom_call.1} parent=31 // pred_check
        %p280 = pneg %p57
      $region34: #{tpu_custom_call.1} parent=31 // pred_check_branch
        %282 = sbr.rel (%p280) target = $region36
      $region35: #{tpu_custom_call.1} parent=31 // pred_region
        %p283 = scmp.lt.s32.totalorder %s13, 0
        %s284 = ssub.s32 0, %s13
        %s285 = scalar_select %p283, %s284, %s13
        %s286 = sand.u32 %s285, 1
        %s287 = ssub.s32 0, %s286
        %s288 = scalar_select %p283, %s287, %s286
        %p289 = scmp.ne.s32.totalorder %s288, 0
        %p290 = scmp.lt.s32.totalorder %s288, 0
        %p291 = pnand %p290, %p289
        %p292 = pneg %p291
        %s293 = sadd.s32 %s288, 2
        %s294 = scalar_select %p292, %s293, %s288
        %s295 = smul.u32 2, %s294
        %p296 = scmp.lt.s32.totalorder %s295, 3
        %s297 = scalar_select %p296, %s295, 3
        %s298 = smul.addr %s297, 5
        %s299 = smul.addr %s298, 8
        %s300 = scalar_lea.vmem %s0, %s299
        %p301 = scmp.lt.s32.totalorder %s13, 0
        %s302 = ssub.s32 0, %s13
        %s303 = scalar_select %p301, %s302, %s13
        %s304 = sand.u32 %s303, 1
        %s305 = ssub.s32 0, %s304
        %s306 = scalar_select %p301, %s305, %s304
        %p307 = scmp.ne.s32.totalorder %s306, 0
        %p308 = scmp.lt.s32.totalorder %s306, 0
        %p309 = pnand %p308, %p307
        %p310 = pneg %p309
        %s311 = sadd.s32 %s306, 2
        %s312 = scalar_select %p310, %s311, %s306
        %s313 = smul.u32 2, %s312
      $region36: #{tpu_custom_call.1} parent=31 // pred_fallthru
        _
      // Predicated region
      $region37: #{tpu_custom_call.1} parent=31 // pred_check
        %p314 = pneg %p107
      $region38: #{tpu_custom_call.1} parent=31 // pred_check_branch
        %316 = sbr.rel (%p314) target = $region40
      $region39: #{tpu_custom_call.1} parent=31 // pred_region
        %p317 = scmp.lt.s32.totalorder %s13, 0
        %s318 = ssub.s32 0, %s13
        %s319 = scalar_select %p317, %s318, %s13
        %s320 = sand.u32 %s319, 1
        %s321 = ssub.s32 0, %s320
        %s322 = scalar_select %p317, %s321, %s320
        %p323 = scmp.ne.s32.totalorder %s322, 0
        %p324 = scmp.lt.s32.totalorder %s322, 0
        %p325 = pnand %p324, %p323
        %p326 = pneg %p325
        %s327 = sadd.s32 %s322, 2
        %s328 = scalar_select %p326, %s327, %s322
        %s329 = smul.u32 2, %s328
        %p330 = scmp.lt.s32.totalorder %s329, 3
        %s331 = scalar_select %p330, %s329, 3
        %s332 = scalar_lea.vmem %s1, %s331
        %p333 = scmp.lt.s32.totalorder %s13, 0
        %s334 = ssub.s32 0, %s13
        %s335 = scalar_select %p333, %s334, %s13
        %s336 = sand.u32 %s335, 1
        %s337 = ssub.s32 0, %s336
        %s338 = scalar_select %p333, %s337, %s336
        %p339 = scmp.ne.s32.totalorder %s338, 0
        %p340 = scmp.lt.s32.totalorder %s338, 0
        %p341 = pnand %p340, %p339
        %p342 = pneg %p341
        %s343 = sadd.s32 %s338, 2
        %s344 = scalar_select %p342, %s343, %s338
        %s345 = smul.u32 2, %s344
      $region40: #{tpu_custom_call.1} parent=31 // pred_fallthru
        _
      // Predicated region
      $region41: #{tpu_custom_call.1} parent=31 // pred_check
        %p346 = pneg %p133
      $region42: #{tpu_custom_call.1} parent=31 // pred_check_branch
        %348 = sbr.rel (%p346) target = $region44
      $region43: #{tpu_custom_call.1} parent=31 // pred_region
        %s349 = smul.u32 10, %s13
        %p350 = scmp.lt.s32.totalorder %s349, 39
        %s351 = scalar_select %p350, %s349, 39
        %s352 = smul.addr %s351, 8
        %s353 = scalar_lea.vmem %s2, %s352
        %s354 = smul.u32 10, %s13
      $region44: #{tpu_custom_call.1} parent=31 // pred_fallthru
        _
    $region32: #{tpu_custom_call.1} parent=5 // pred_fallthru
      _
    %p355 = scmp.le.s32.totalorder 1, %s13
    %p356 = scmp.lt.s32.totalorder %s13, 5
    %p357 = pnand %p355, %p356
    %p358 = pneg %p357
    // Predicated region
    $region45: #{tpu_custom_call.1} parent=5 // pred_check
      _
    $region46: #{tpu_custom_call.1} parent=5 // pred_check_branch
      %360 = sbr.rel (%p357) target = $region48
    $region47: #{tpu_custom_call.1} parent=5 // pred_region
      %s361 = ssub.s32 %s13, 1
      %p362 = scmp.lt.s32.totalorder %s18, 0
      %s363 = ssub.s32 0, %s18
      %s364 = scalar_select %p362, %s363, %s18
      %s365 = sand.u32 %s364, 1
      %s366 = ssub.s32 0, %s365
      %s367 = scalar_select %p362, %s366, %s365
      %p368 = scmp.ne.s32.totalorder %s367, 0
      %p369 = scmp.lt.s32.totalorder %s367, 0
      %p370 = pnand %p369, %p368
      %p371 = pneg %p370
      %s372 = sadd.s32 %s367, 2
      %s373 = scalar_select %p371, %s372, %s367
      %s374 = smul.u32 2, %s373
      %p375 = scmp.lt.s32.totalorder %s374, 3
      %s376 = scalar_select %p375, %s374, 3
      %s377 = smul.addr %s376, 5
      %s378 = smul.addr %s377, 8
      %s379 = scalar_lea.vmem %s0, %s378
      %p380 = pneg %p63
      %p381 = pneg %p60
      %p382 = scmp.lt.s32.totalorder %s18, 0
      %s383 = ssub.s32 0, %s18
      %s384 = scalar_select %p382, %s383, %s18
      %s385 = sand.u32 %s384, 1
      %s386 = ssub.s32 0, %s385
      %s387 = scalar_select %p382, %s386, %s385
      %p388 = scmp.ne.s32.totalorder %s387, 0
      %p389 = scmp.lt.s32.totalorder %s387, 0
      %p390 = pnand %p389, %p388
      %p391 = pneg %p390
      %s392 = sadd.s32 %s387, 2
      %s393 = scalar_select %p391, %s392, %s387
      %s394 = smul.u32 2, %s393
      %p395 = scmp.lt.s32.totalorder %s394, 3
      %s396 = scalar_select %p395, %s394, 3
      %s397 = scalar_lea.vmem %s1, %s396
      %p398 = pneg %p113
      %p399 = pneg %p110
      %s400 = smul.u32 10, %s18
      %p401 = scmp.lt.s32.totalorder %s400, 39
      %s402 = scalar_select %p401, %s400, 39
      %s403 = smul.addr %s402, 8
      %s404 = scalar_lea.vmem %s2, %s403
      %p405 = pneg %p139
      %p406 = pneg %p136
      %p407 = pneg %p160
      %p408 = pneg %p157
      %p409 = pneg %p181
      %p410 = pneg %p178
      %p411 = pneg %p202
      %p412 = pneg %p199
      %p413 = pneg %p223
      %p414 = pneg %p220
      %p415 = pneg %p249
      %p416 = pneg %p246
      %s417 = smul.u32 10, %s18
      %p418 = scmp.lt.s32.totalorder %s417, 39
      %s419 = scalar_select %p418, %s417, 39
      %s420 = smul.addr %s419, 8
      %s421 = scalar_lea.vmem %s7, %s420
      %p422 = scmp.lt.s32.totalorder %s18, 0
      %s423 = ssub.s32 0, %s18
      %s424 = scalar_select %p422, %s423, %s18
      %s425 = sand.u32 %s424, 1
      %s426 = ssub.s32 0, %s425
      %s427 = scalar_select %p422, %s426, %s425
      %p428 = scmp.ne.s32.totalorder %s427, 0
      %p429 = scmp.lt.s32.totalorder %s427, 0
      %p430 = pnand %p429, %p428
      %p431 = pneg %p430
      %s432 = sadd.s32 %s427, 2
      %s433 = scalar_select %p431, %s432, %s427
      %s434 = smul.u32 2, %s433
      %p435 = scmp.lt.s32.totalorder %s434, 3
      %s436 = scalar_select %p435, %s434, 3
      %s437 = smul.addr %s436, 5
      %s438 = smul.addr %s437, 8
      %s439 = scalar_lea.vmem %s0, %s438
      %p440 = scmp.lt.s32.totalorder %s18, 0
      %s441 = ssub.s32 0, %s18
      %s442 = scalar_select %p440, %s441, %s18
      %s443 = sand.u32 %s442, 1
      %s444 = ssub.s32 0, %s443
      %s445 = scalar_select %p440, %s444, %s443
      %p446 = scmp.ne.s32.totalorder %s445, 0
      %p447 = scmp.lt.s32.totalorder %s445, 0
      %p448 = pnand %p447, %p446
      %p449 = pneg %p448
      %s450 = sadd.s32 %s445, 2
      %s451 = scalar_select %p449, %s450, %s445
      %s452 = smul.u32 2, %s451
      %p453 = scmp.lt.s32.totalorder %s18, 0
      %s454 = ssub.s32 0, %s18
      %s455 = scalar_select %p453, %s454, %s18
      %s456 = sand.u32 %s455, 1
      %s457 = ssub.s32 0, %s456
      %s458 = scalar_select %p453, %s457, %s456
      %p459 = scmp.ne.s32.totalorder %s458, 0
      %p460 = scmp.lt.s32.totalorder %s458, 0
      %p461 = pnand %p460, %p459
      %p462 = pneg %p461
      %s463 = sadd.s32 %s458, 2
      %s464 = scalar_select %p462, %s463, %s458
      %s465 = smul.u32 2, %s464
      %p466 = scmp.lt.s32.totalorder %s465, 3
      %s467 = scalar_select %p466, %s465, 3
      %s468 = scalar_lea.vmem %s1, %s467
      %p469 = scmp.lt.s32.totalorder %s18, 0
      %s470 = ssub.s32 0, %s18
      %s471 = scalar_select %p469, %s470, %s18
      %s472 = sand.u32 %s471, 1
      %s473 = ssub.s32 0, %s472
      %s474 = scalar_select %p469, %s473, %s472
      %p475 = scmp.ne.s32.totalorder %s474, 0
      %p476 = scmp.lt.s32.totalorder %s474, 0
      %p477 = pnand %p476, %p475
      %p478 = pneg %p477
      %s479 = sadd.s32 %s474, 2
      %s480 = scalar_select %p478, %s479, %s474
      %s481 = smul.u32 2, %s480
      %s482 = smul.u32 10, %s18
      %p483 = scmp.lt.s32.totalorder %s482, 39
      %s484 = scalar_select %p483, %s482, 39
      %s485 = smul.addr %s484, 8
      %s486 = scalar_lea.vmem %s2, %s485
      %s487 = smul.u32 10, %s18
      %s488 = smul.u32 10, %s18
      %p489 = scmp.lt.s32.totalorder %s488, 39
      %s490 = scalar_select %p489, %s488, 39
      %s491 = smul.addr %s490, 8
      %s492 = scalar_lea.vmem %s7, %s491
      %s493 = smul.u32 10, %s18
      %v494 = vld [vmem:[%s486] sm:$0xff]
      %v495 = vld [vmem:[%s486 + $0x8] sm:$0xff]
      %v496 = vld [vmem:[%s486 + $0x10] sm:$0xff]
      %v497 = vld [vmem:[%s486 + $0x18] sm:$0xff]
      %v498 = vld [vmem:[%s486 + $0x20] sm:$0xff]
      %v499 = vld [vmem:[%s486 + $0x28] sm:$0xff]
      %v500 = vld [vmem:[%s486 + $0x30] sm:$0xff]
      %v501 = vld [vmem:[%s486 + $0x38] sm:$0xff]
      %v502 = vld [vmem:[%s486 + $0x40] sm:$0xff]
      %v503 = vld [vmem:[%s486 + $0x48] sm:$0xff]
      %v504 = vld [vmem:[%s3] sm:$0xff]
      %v505 = vld [vmem:[%s3 + $0x8] sm:$0xff]
      %v506 = vld [vmem:[%s3 + $0x10] sm:$0xff]
      %v507 = vld [vmem:[%s3 + $0x18] sm:$0xff]
      %v508 = vld [vmem:[%s4] sm:$0x1]
      %v510 = vlaneseq
      %v511 = vshrl.u32 %v510, 7
      %v512 = vsub.s32 0, %v511
      %v513 = vrot.slane %v508, %v512
      %vm515 = vcmask 261120
      %v517 = vsel %vm515, %v494, 0
      %v520 = vsel %vm515, %v495, 0
      %v523 = vsel %vm515, %v496, 0
      %v526 = vsel %vm515, %v497, 0
      %v529 = vsel %vm515, %v498, 0
      %v532 = vsel %vm515, %v499, 0
      %v535 = vsel %vm515, %v500, 0
      %v538 = vsel %vm515, %v501, 0
      %v541 = vsel %vm515, %v502, 0
      %v544 = vsel %vm515, %v503, 0
      %546 = vmatprep.subr.mxu0 0.0
      %547 = vmatpush1.msra.mxu0 %v504
      %548 = vmatprep.subr.mxu0 0.0
      %549 = vmatpush1.msra.mxu0 %v505
      %550 = vmatprep.subr.mxu0 0.0
      %551 = vmatpush1.msra.mxu0 %v506
      %552 = vmatprep.subr.mxu0 0.0
      %553 = vmatpush1.msra.mxu0 %v507
      %554 = vmatprep.subr.mxu0 0.0
      %555 = vmatpush1.msra.mxu0 0.0
      %556 = vmatprep.subr.mxu0 0.0
      %557 = vmatpush1.msra.mxu0 0.0
      %558 = vmatprep.subr.mxu0 0.0
      %559 = vmatpush1.msra.mxu0 0.0
      %560 = vmatprep.subr.mxu0 0.0
      %561 = vmatpush1.msra.mxu0 0.0
      %562 = vmatprep.subr.mxu0 0.0
      %563 = vmatpush1.msra.mxu0 0.0
      %564 = vmatprep.subr.mxu0 0.0
      %565 = vmatpush1.msra.mxu0 0.0
      %566 = vmatprep.subr.mxu0 0.0
      %567 = vmatpush1.msra.mxu0 0.0
      %568 = vmatprep.subr.mxu0 0.0
      %569 = vmatpush1.msra.mxu0 0.0
      %570 = vmatprep.subr.mxu0 0.0
      %571 = vmatpush1.msra.mxu0 0.0
      %572 = vmatprep.subr.mxu0 0.0
      %573 = vmatpush1.msra.mxu0 0.0
      %574 = vmatprep.subr.mxu0 0.0
      %575 = vmatpush1.msra.mxu0 0.0
      %576 = vmatprep.subr.mxu0 0.0
      %577 = vmatpush1.msra.mxu0 0.0
      %578 = vmatprep.subr.mxu0 0.0
      %579 = vmatpush1.msra.mxu0 0.0
      %580 = vmatprep.subr.mxu0 0.0
      %581 = vmatpush1.msra.mxu0 0.0
      %582 = vmatprep.subr.mxu0 0.0
      %583 = vmatpush1.msra.mxu0 0.0
      %584 = vmatprep.subr.mxu0 0.0
      %585 = vmatpush1.msra.mxu0 0.0
      %586 = vmatprep.subr.mxu0 0.0
      %587 = vmatpush1.msra.mxu0 0.0
      %588 = vmatprep.subr.mxu0 0.0
      %589 = vmatpush1.msra.mxu0 0.0
      %590 = vmatprep.subr.mxu0 0.0
      %591 = vmatpush1.msra.mxu0 0.0
      %592 = vmatprep.subr.mxu0 0.0
      %593 = vmatpush1.msra.mxu0 0.0
      %594 = vmatprep.subr.mxu0 0.0
      %595 = vmatpush1.msra.mxu0 0.0
      %596 = vmatprep.subr.mxu0 0.0
      %597 = vmatpush1.msra.mxu0 0.0
      %598 = vmatprep.subr.mxu0 0.0
      %599 = vmatpush1.msra.mxu0 0.0
      %600 = vmatprep.subr.mxu0 0.0
      %601 = vmatpush1.msra.mxu0 0.0
      %602 = vmatprep.subr.mxu0 0.0
      %603 = vmatpush1.msra.mxu0 0.0
      %604 = vmatprep.subr.mxu0 0.0
      %605 = vmatpush1.msra.mxu0 0.0
      %606 = vmatprep.subr.mxu0 0.0
      %607 = vmatpush1.msra.mxu0 0.0
      %608 = vmatprep.subr.mxu0 0.0
      %609 = vmatpush1.msra.mxu0 0.0
      %610 = vmatprep.mubr.f32.mxu0 0.0
      %611 = vmatmul.mubr.f32.gmra.mrb[0].mxu0 %v517
      %v612 = vpop.f32.mrb[0].mxu0
      %v613 = vadd.f32 %v513, %v612
      %v614 = vpop.f32.mrb[0].mxu0
      %615 = vmatprep.mubr.f32.mxu0 0.0
      %616 = vmatmul.mubr.f32.gmra.mrb[0].mxu0 %v520
      %v617 = vpop.f32.mrb[0].mxu0
      %v618 = vadd.f32 %v513, %v617
      %v619 = vpop.f32.mrb[0].mxu0
      %620 = vmatprep.mubr.f32.mxu0 0.0
      %621 = vmatmul.mubr.f32.gmra.mrb[0].mxu0 %v523
      %v622 = vpop.f32.mrb[0].mxu0
      %v623 = vadd.f32 %v513, %v622
      %v624 = vpop.f32.mrb[0].mxu0
      %625 = vmatprep.mubr.f32.mxu0 0.0
      %626 = vmatmul.mubr.f32.gmra.mrb[0].mxu0 %v526
      %v627 = vpop.f32.mrb[0].mxu0
      %v628 = vadd.f32 %v513, %v627
      %v629 = vpop.f32.mrb[0].mxu0
      %630 = vmatprep.mubr.f32.mxu0 0.0
      %631 = vmatmul.mubr.f32.gmra.mrb[0].mxu0 %v529
      %v632 = vpop.f32.mrb[0].mxu0
      %v633 = vadd.f32 %v513, %v632
      %v634 = vpop.f32.mrb[0].mxu0
      %635 = vmatprep.mubr.f32.mxu0 0.0
      %636 = vmatmul.mubr.f32.gmra.mrb[0].mxu0 %v532
      %v637 = vpop.f32.mrb[0].mxu0
      %v638 = vadd.f32 %v513, %v637
      %v639 = vpop.f32.mrb[0].mxu0
      %640 = vmatprep.mubr.f32.mxu0 0.0
      %641 = vmatmul.mubr.f32.gmra.mrb[0].mxu0 %v535
      %v642 = vpop.f32.mrb[0].mxu0
      %v643 = vadd.f32 %v513, %v642
      %v644 = vpop.f32.mrb[0].mxu0
      %645 = vmatprep.mubr.f32.mxu0 0.0
      %646 = vmatmul.mubr.f32.gmra.mrb[0].mxu0 %v538
      %v647 = vpop.f32.mrb[0].mxu0
      %v648 = vadd.f32 %v513, %v647
      %v649 = vpop.f32.mrb[0].mxu0
      %650 = vmatprep.mubr.f32.mxu0 0.0
      %651 = vmatmul.mubr.f32.gmra.mrb[0].mxu0 %v541
      %v652 = vpop.f32.mrb[0].mxu0
      %v653 = vadd.f32 %v513, %v652
      %v654 = vpop.f32.mrb[0].mxu0
      %655 = vmatprep.mubr.f32.mxu0 0.0
      %656 = vmatmul.mubr.f32.gmra.mrb[0].mxu0 %v544
      %v657 = vpop.f32.mrb[0].mxu0
      %v658 = vadd.f32 %v513, %v657
      %v659 = vpop.f32.mrb[0].mxu0
      %660 = vdwg.mxu0
      %v661 = vld [vmem:[%s439] sm:$0xff]
      %v662 = vld [vmem:[%s439 + $0x8] sm:$0xff]
      %v663 = vld [vmem:[%s439 + $0x10] sm:$0xff]
      %v664 = vld [vmem:[%s439 + $0x18] sm:$0xff]
      %v665 = vld [vmem:[%s439 + $0x20] sm:$0xff]
      %v666 = vld [vmem:[%s439 + $0x28] sm:$0xff]
      %v667 = vld [vmem:[%s439 + $0x30] sm:$0xff]
      %v668 = vld [vmem:[%s439 + $0x38] sm:$0xff]
      %v669 = vld [vmem:[%s439 + $0x40] sm:$0xff]
      %v670 = vld [vmem:[%s439 + $0x48] sm:$0xff]
      %v671 = vld [vmem:[%s468] sm:$0x1]
      %v672 = vld [vmem:[%s468 + $0x1] sm:$0x1]
      %673 = vset.pattern.permute.xlu0 0
      %674 = vperm.xlu0 %673, %v661
      %v675 = vpop.permute.xlu0 %674
      %676 = vset.pattern.permute.xlu0 0
      %677 = vperm.xlu0 %676, %v662
      %v678 = vpop.permute.xlu0 %677
      %679 = vset.pattern.permute.xlu0 0
      %680 = vperm.xlu0 %679, %v663
      %v681 = vpop.permute.xlu0 %680
      %682 = vset.pattern.permute.xlu0 0
      %683 = vperm.xlu0 %682, %v664
      %v684 = vpop.permute.xlu0 %683
      %685 = vset.pattern.permute.xlu0 0
      %686 = vperm.xlu0 %685, %v665
      %v687 = vpop.permute.xlu0 %686
      %688 = vset.pattern.permute.xlu0 0
      %689 = vperm.xlu0 %688, %v666
      %v690 = vpop.permute.xlu0 %689
      %691 = vset.pattern.permute.xlu0 0
      %692 = vperm.xlu0 %691, %v667
      %v693 = vpop.permute.xlu0 %692
      %694 = vset.pattern.permute.xlu0 0
      %695 = vperm.xlu0 %694, %v668
      %v696 = vpop.permute.xlu0 %695
      %697 = vset.pattern.permute.xlu0 0
      %698 = vperm.xlu0 %697, %v669
      %v699 = vpop.permute.xlu0 %698
      %700 = vset.pattern.permute.xlu0 0
      %701 = vperm.xlu0 %700, %v670
      %v702 = vpop.permute.xlu0 %701
      %v703 = vlaneseq
      %v704 = vshrl.u32 %v703, 7
      %v705 = vsub.s32 0, %v704
      %v706 = vrot.slane %v671, %v705
      %v707 = vlaneseq
      %v708 = vshrl.u32 %v707, 7
      %v709 = vsub.s32 0, %v708
      %v710 = vrot.slane %v672, %v709
      %vm711 = vcmp.eq.s32.totalorder %v675, %v706
      %vm712 = vcmp.eq.s32.totalorder %v678, %v706
      %vm713 = vcmp.eq.s32.totalorder %v681, %v706
      %vm714 = vcmp.eq.s32.totalorder %v684, %v706
      %vm715 = vcmp.eq.s32.totalorder %v687, %v706
      %vm716 = vcmp.eq.s32.totalorder %v690, %v710
      %vm717 = vcmp.eq.s32.totalorder %v693, %v710
      %vm718 = vcmp.eq.s32.totalorder %v696, %v710
      %vm719 = vcmp.eq.s32.totalorder %v699, %v710
      %vm720 = vcmp.eq.s32.totalorder %v702, %v710
      %726 = vrot.lane.b32.xlu0 %v613, 96
      %v727 = vpop.permute.xlu0 %726
      %728 = vrot.lane.b32.xlu0 %v618, 96
      %v729 = vpop.permute.xlu0 %728
      %730 = vrot.lane.b32.xlu0 %v623, 96
      %v731 = vpop.permute.xlu0 %730
      %732 = vrot.lane.b32.xlu0 %v628, 96
      %v733 = vpop.permute.xlu0 %732
      %734 = vrot.lane.b32.xlu0 %v633, 96
      %v735 = vpop.permute.xlu0 %734
      %vm736 = vcmask 31744
      %v737 = vsel %vm736, %v613, 0
      %v739 = vsel %vm736, %v618, 0
      %v741 = vsel %vm736, %v623, 0
      %v743 = vsel %vm736, %v628, 0
      %v745 = vsel %vm736, %v633, 0
      %v747 = vsel %vm736, %v727, 0
      %v749 = vsel %vm736, %v729, 0
      %v751 = vsel %vm736, %v731, 0
      %v753 = vsel %vm736, %v733, 0
      %v755 = vsel %vm736, %v735, 0
      %757 = vmatprep.subr.mxu0 0.0
      %758 = vmatpush1.xpose.msra.mxu0 %v747
      %759 = vmatprep.subr.mxu0 0.0
      %760 = vmatpush1.xpose.msra.mxu0 %v749
      %761 = vmatprep.subr.mxu0 0.0
      %762 = vmatpush1.xpose.msra.mxu0 %v751
      %763 = vmatprep.subr.mxu0 0.0
      %764 = vmatpush1.xpose.msra.mxu0 %v753
      %765 = vmatprep.subr.mxu0 0.0
      %766 = vmatpush1.xpose.msra.mxu0 %v755
      %767 = vmatprep.subr.mxu0 0.0
      %768 = vmatpush1.xpose.msra.mxu0 0.0
      %769 = vmatprep.subr.mxu0 0.0
      %770 = vmatpush1.xpose.msra.mxu0 0.0
      %771 = vmatprep.subr.mxu0 0.0
      %772 = vmatpush1.xpose.msra.mxu0 0.0
      %773 = vmatprep.subr.mxu0 0.0
      %774 = vmatpush1.xpose.msra.mxu0 0.0
      %775 = vmatprep.subr.mxu0 0.0
      %776 = vmatpush1.xpose.msra.mxu0 0.0
      %777 = vmatprep.subr.mxu0 0.0
      %778 = vmatpush1.xpose.msra.mxu0 0.0
      %779 = vmatprep.subr.mxu0 0.0
      %780 = vmatpush1.xpose.msra.mxu0 0.0
      %781 = vmatprep.subr.mxu0 0.0
      %782 = vmatpush1.xpose.msra.mxu0 0.0
      %783 = vmatprep.subr.mxu0 0.0
      %784 = vmatpush1.xpose.msra.mxu0 0.0
      %785 = vmatprep.subr.mxu0 0.0
      %786 = vmatpush1.xpose.msra.mxu0 0.0
      %787 = vmatprep.subr.mxu0 0.0
      %788 = vmatpush1.xpose.msra.mxu0 0.0
      %789 = vmatprep.subr.mxu0 0.0
      %790 = vmatpush1.xpose.msra.mxu0 0.0
      %791 = vmatprep.subr.mxu0 0.0
      %792 = vmatpush1.xpose.msra.mxu0 0.0
      %793 = vmatprep.subr.mxu0 0.0
      %794 = vmatpush1.xpose.msra.mxu0 0.0
      %795 = vmatprep.subr.mxu0 0.0
      %796 = vmatpush1.xpose.msra.mxu0 0.0
      %797 = vmatprep.subr.mxu0 0.0
      %798 = vmatpush1.xpose.msra.mxu0 0.0
      %799 = vmatprep.subr.mxu0 0.0
      %800 = vmatpush1.xpose.msra.mxu0 0.0
      %801 = vmatprep.subr.mxu0 0.0
      %802 = vmatpush1.xpose.msra.mxu0 0.0
      %803 = vmatprep.subr.mxu0 0.0
      %804 = vmatpush1.xpose.msra.mxu0 0.0
      %805 = vmatprep.subr.mxu0 0.0
      %806 = vmatpush1.xpose.msra.mxu0 0.0
      %807 = vmatprep.subr.mxu0 0.0
      %808 = vmatpush1.xpose.msra.mxu0 0.0
      %809 = vmatprep.subr.mxu0 0.0
      %810 = vmatpush1.xpose.msra.mxu0 0.0
      %811 = vmatprep.subr.mxu0 0.0
      %812 = vmatpush1.xpose.msra.mxu0 0.0
      %813 = vmatprep.subr.mxu0 0.0
      %814 = vmatpush1.xpose.msra.mxu0 0.0
      %815 = vmatprep.subr.mxu0 0.0
      %816 = vmatpush1.xpose.msra.mxu0 0.0
      %817 = vmatprep.subr.mxu0 0.0
      %818 = vmatpush1.xpose.msra.mxu0 0.0
      %819 = vmatprep.subr.mxu0 0.0
      %820 = vmatpush1.xpose.msra.mxu0 0.0
      %821 = vmatprep.mubr.f32.mxu0 0.0
      %822 = vmatmul.mubr.f32.gmra.mrb[0].mxu0 %v737
      %v823 = vpop.f32.mrb[0].mxu0
      %v824 = vadd.f32 0.0, %v823
      %v825 = vpop.f32.mrb[0].mxu0
      %826 = vmatprep.mubr.f32.mxu0 0.0
      %827 = vmatmul.mubr.f32.gmra.mrb[0].mxu0 %v739
      %v828 = vpop.f32.mrb[0].mxu0
      %v829 = vadd.f32 0.0, %v828
      %v830 = vpop.f32.mrb[0].mxu0
      %831 = vmatprep.mubr.f32.mxu0 0.0
      %832 = vmatmul.mubr.f32.gmra.mrb[0].mxu0 %v741
      %v833 = vpop.f32.mrb[0].mxu0
      %v834 = vadd.f32 0.0, %v833
      %v835 = vpop.f32.mrb[0].mxu0
      %836 = vmatprep.mubr.f32.mxu0 0.0
      %837 = vmatmul.mubr.f32.gmra.mrb[0].mxu0 %v743
      %v838 = vpop.f32.mrb[0].mxu0
      %v839 = vadd.f32 0.0, %v838
      %v840 = vpop.f32.mrb[0].mxu0
      %841 = vmatprep.mubr.f32.mxu0 0.0
      %842 = vmatmul.mubr.f32.gmra.mrb[0].mxu0 %v745
      %v843 = vpop.f32.mrb[0].mxu0
      %v844 = vadd.f32 0.0, %v843
      %v845 = vpop.f32.mrb[0].mxu0
      %846 = vdwg.mxu0
      %852 = vrot.lane.b32.xlu0 %v638, 96
      %v853 = vpop.permute.xlu0 %852
      %854 = vrot.lane.b32.xlu0 %v643, 96
      %v855 = vpop.permute.xlu0 %854
      %856 = vrot.lane.b32.xlu0 %v648, 96
      %v857 = vpop.permute.xlu0 %856
      %858 = vrot.lane.b32.xlu0 %v653, 96
      %v859 = vpop.permute.xlu0 %858
      %860 = vrot.lane.b32.xlu0 %v658, 96
      %v861 = vpop.permute.xlu0 %860
      %v862 = vsel %vm736, %v638, 0
      %v864 = vsel %vm736, %v643, 0
      %v866 = vsel %vm736, %v648, 0
      %v868 = vsel %vm736, %v653, 0
      %v870 = vsel %vm736, %v658, 0
      %v872 = vsel %vm736, %v853, 0
      %v874 = vsel %vm736, %v855, 0
      %v876 = vsel %vm736, %v857, 0
      %v878 = vsel %vm736, %v859, 0
      %v880 = vsel %vm736, %v861, 0
      %882 = vmatprep.subr.mxu0 0.0
      %883 = vmatpush1.xpose.msra.mxu0 %v872
      %884 = vmatprep.subr.mxu0 0.0
      %885 = vmatpush1.xpose.msra.mxu0 %v874
      %886 = vmatprep.subr.mxu0 0.0
      %887 = vmatpush1.xpose.msra.mxu0 %v876
      %888 = vmatprep.subr.mxu0 0.0
      %889 = vmatpush1.xpose.msra.mxu0 %v878
      %890 = vmatprep.subr.mxu0 0.0
      %891 = vmatpush1.xpose.msra.mxu0 %v880
      %892 = vmatprep.subr.mxu0 0.0
      %893 = vmatpush1.xpose.msra.mxu0 0.0
      %894 = vmatprep.subr.mxu0 0.0
      %895 = vmatpush1.xpose.msra.mxu0 0.0
      %896 = vmatprep.subr.mxu0 0.0
      %897 = vmatpush1.xpose.msra.mxu0 0.0
      %898 = vmatprep.subr.mxu0 0.0
      %899 = vmatpush1.xpose.msra.mxu0 0.0
      %900 = vmatprep.subr.mxu0 0.0
      %901 = vmatpush1.xpose.msra.mxu0 0.0
      %902 = vmatprep.subr.mxu0 0.0
      %903 = vmatpush1.xpose.msra.mxu0 0.0
      %904 = vmatprep.subr.mxu0 0.0
      %905 = vmatpush1.xpose.msra.mxu0 0.0
      %906 = vmatprep.subr.mxu0 0.0
      %907 = vmatpush1.xpose.msra.mxu0 0.0
      %908 = vmatprep.subr.mxu0 0.0
      %909 = vmatpush1.xpose.msra.mxu0 0.0
      %910 = vmatprep.subr.mxu0 0.0
      %911 = vmatpush1.xpose.msra.mxu0 0.0
      %912 = vmatprep.subr.mxu0 0.0
      %913 = vmatpush1.xpose.msra.mxu0 0.0
      %914 = vmatprep.subr.mxu0 0.0
      %915 = vmatpush1.xpose.msra.mxu0 0.0
      %916 = vmatprep.subr.mxu0 0.0
      %917 = vmatpush1.xpose.msra.mxu0 0.0
      %918 = vmatprep.subr.mxu0 0.0
      %919 = vmatpush1.xpose.msra.mxu0 0.0
      %920 = vmatprep.subr.mxu0 0.0
      %921 = vmatpush1.xpose.msra.mxu0 0.0
      %922 = vmatprep.subr.mxu0 0.0
      %923 = vmatpush1.xpose.msra.mxu0 0.0
      %924 = vmatprep.subr.mxu0 0.0
      %925 = vmatpush1.xpose.msra.mxu0 0.0
      %926 = vmatprep.subr.mxu0 0.0
      %927 = vmatpush1.xpose.msra.mxu0 0.0
      %928 = vmatprep.subr.mxu0 0.0
      %929 = vmatpush1.xpose.msra.mxu0 0.0
      %930 = vmatprep.subr.mxu0 0.0
      %931 = vmatpush1.xpose.msra.mxu0 0.0
      %932 = vmatprep.subr.mxu0 0.0
      %933 = vmatpush1.xpose.msra.mxu0 0.0
      %934 = vmatprep.subr.mxu0 0.0
      %935 = vmatpush1.xpose.msra.mxu0 0.0
      %936 = vmatprep.subr.mxu0 0.0
      %937 = vmatpush1.xpose.msra.mxu0 0.0
      %938 = vmatprep.subr.mxu0 0.0
      %939 = vmatpush1.xpose.msra.mxu0 0.0
      %940 = vmatprep.subr.mxu0 0.0
      %941 = vmatpush1.xpose.msra.mxu0 0.0
      %942 = vmatprep.subr.mxu0 0.0
      %943 = vmatpush1.xpose.msra.mxu0 0.0
      %944 = vmatprep.subr.mxu0 0.0
      %945 = vmatpush1.xpose.msra.mxu0 0.0
      %946 = vmatprep.mubr.f32.mxu0 0.0
      %947 = vmatmul.mubr.f32.gmra.mrb[0].mxu0 %v862
      %v948 = vpop.f32.mrb[0].mxu0
      %v949 = vadd.f32 0.0, %v948
      %v950 = vpop.f32.mrb[0].mxu0
      %951 = vmatprep.mubr.f32.mxu0 0.0
      %952 = vmatmul.mubr.f32.gmra.mrb[0].mxu0 %v864
      %v953 = vpop.f32.mrb[0].mxu0
      %v954 = vadd.f32 0.0, %v953
      %v955 = vpop.f32.mrb[0].mxu0
      %956 = vmatprep.mubr.f32.mxu0 0.0
      %957 = vmatmul.mubr.f32.gmra.mrb[0].mxu0 %v866
      %v958 = vpop.f32.mrb[0].mxu0
      %v959 = vadd.f32 0.0, %v958
      %v960 = vpop.f32.mrb[0].mxu0
      %961 = vmatprep.mubr.f32.mxu0 0.0
      %962 = vmatmul.mubr.f32.gmra.mrb[0].mxu0 %v868
      %v963 = vpop.f32.mrb[0].mxu0
      %v964 = vadd.f32 0.0, %v963
      %v965 = vpop.f32.mrb[0].mxu0
      %966 = vmatprep.mubr.f32.mxu0 0.0
      %967 = vmatmul.mubr.f32.gmra.mrb[0].mxu0 %v870
      %v968 = vpop.f32.mrb[0].mxu0
      %v969 = vadd.f32 0.0, %v968
      %v970 = vpop.f32.mrb[0].mxu0
      %971 = vdwg.mxu0
      %v972 = vmul.f32 %v824, 0.5
      %v973 = vmul.f32 %v829, 0.5
      %v974 = vmul.f32 %v834, 0.5
      %v975 = vmul.f32 %v839, 0.5
      %v976 = vmul.f32 %v844, 0.5
      %v977 = vmul.f32 %v949, 0.5
      %v978 = vmul.f32 %v954, 0.5
      %v979 = vmul.f32 %v959, 0.5
      %v980 = vmul.f32 %v964, 0.5
      %v981 = vmul.f32 %v969, 0.5
      %v982 = vsel %vm711, %v972, -1e+09
      %v983 = vsel %vm712, %v973, -1e+09
      %v984 = vsel %vm713, %v974, -1e+09
      %v985 = vsel %vm714, %v975, -1e+09
      %v986 = vsel %vm715, %v976, -1e+09
      %v987 = vsel %vm716, %v977, -1e+09
      %v988 = vsel %vm717, %v978, -1e+09
      %v989 = vsel %vm718, %v979, -1e+09
      %v990 = vsel %vm719, %v980, -1e+09
      %v991 = vsel %vm720, %v981, -1e+09
      %vm992 = vcmask 326656
      %v993 = vsel %vm992, %v982, -inf
      %994 = vmax.xlane.f32.xlu0 %v993
      %v995 = vpop.xlane.xlu0 %994
      %v996 = vsel %vm992, %v983, -inf
      %997 = vmax.xlane.f32.xlu0 %v996
      %v998 = vpop.xlane.xlu0 %997
      %v999 = vsel %vm992, %v984, -inf
      %1000 = vmax.xlane.f32.xlu0 %v999
      %v1001 = vpop.xlane.xlu0 %1000
      %v1002 = vsel %vm992, %v985, -inf
      %1003 = vmax.xlane.f32.xlu0 %v1002
      %v1004 = vpop.xlane.xlu0 %1003
      %v1005 = vsel %vm992, %v986, -inf
      %1006 = vmax.xlane.f32.xlu0 %v1005
      %v1007 = vpop.xlane.xlu0 %1006
      %v1008 = vsel %vm992, %v987, -inf
      %1009 = vmax.xlane.f32.xlu0 %v1008
      %v1010 = vpop.xlane.xlu0 %1009
      %v1011 = vsel %vm992, %v988, -inf
      %1012 = vmax.xlane.f32.xlu0 %v1011
      %v1013 = vpop.xlane.xlu0 %1012
      %v1014 = vsel %vm992, %v989, -inf
      %1015 = vmax.xlane.f32.xlu0 %v1014
      %v1016 = vpop.xlane.xlu0 %1015
      %v1017 = vsel %vm992, %v990, -inf
      %1018 = vmax.xlane.f32.xlu0 %v1017
      %v1019 = vpop.xlane.xlu0 %1018
      %v1020 = vsel %vm992, %v991, -inf
      %1021 = vmax.xlane.f32.xlu0 %v1020
      %v1022 = vpop.xlane.xlu0 %1021
      %v1023 = vsub.f32 %v982, %v995
      %v1024 = vsub.f32 %v983, %v998
      %v1025 = vsub.f32 %v984, %v1001
      %v1026 = vsub.f32 %v985, %v1004
      %v1027 = vsub.f32 %v986, %v1007
      %v1028 = vsub.f32 %v987, %v1010
      %v1029 = vsub.f32 %v988, %v1013
      %v1030 = vsub.f32 %v989, %v1016
      %v1031 = vsub.f32 %v990, %v1019
      %v1032 = vsub.f32 %v991, %v1022
      %v1033 = vmul.f32 %v1023, 1.442695
      %v1034 = vpow.pop %v1033
      %v1035 = vmul.f32 %v1024, 1.442695
      %v1036 = vpow.pop %v1035
      %v1037 = vmul.f32 %v1025, 1.442695
      %v1038 = vpow.pop %v1037
      %v1039 = vmul.f32 %v1026, 1.442695
      %v1040 = vpow.pop %v1039
      %v1041 = vmul.f32 %v1027, 1.442695
      %v1042 = vpow.pop %v1041
      %v1043 = vmul.f32 %v1028, 1.442695
      %v1044 = vpow.pop %v1043
      %v1045 = vmul.f32 %v1029, 1.442695
      %v1046 = vpow.pop %v1045
      %v1047 = vmul.f32 %v1030, 1.442695
      %v1048 = vpow.pop %v1047
      %v1049 = vmul.f32 %v1031, 1.442695
      %v1050 = vpow.pop %v1049
      %v1051 = vmul.f32 %v1032, 1.442695
      %v1052 = vpow.pop %v1051
      %v1053 = vsel %vm992, %v1034, 0.0
      %1054 = vadd.xlane.f32.xlu0 %v1053
      %v1055 = vpop.xlane.xlu0 %1054
      %v1056 = vsel %vm992, %v1036, 0.0
      %1057 = vadd.xlane.f32.xlu0 %v1056
      %v1058 = vpop.xlane.xlu0 %1057
      %v1059 = vsel %vm992, %v1038, 0.0
      %1060 = vadd.xlane.f32.xlu0 %v1059
      %v1061 = vpop.xlane.xlu0 %1060
      %v1062 = vsel %vm992, %v1040, 0.0
      %1063 = vadd.xlane.f32.xlu0 %v1062
      %v1064 = vpop.xlane.xlu0 %1063
      %v1065 = vsel %vm992, %v1042, 0.0
      %1066 = vadd.xlane.f32.xlu0 %v1065
      %v1067 = vpop.xlane.xlu0 %1066
      %v1068 = vsel %vm992, %v1044, 0.0
      %1069 = vadd.xlane.f32.xlu0 %v1068
      %v1070 = vpop.xlane.xlu0 %1069
      %v1071 = vsel %vm992, %v1046, 0.0
      %1072 = vadd.xlane.f32.xlu0 %v1071
      %v1073 = vpop.xlane.xlu0 %1072
      %v1074 = vsel %vm992, %v1048, 0.0
      %1075 = vadd.xlane.f32.xlu0 %v1074
      %v1076 = vpop.xlane.xlu0 %1075
      %v1077 = vsel %vm992, %v1050, 0.0
      %1078 = vadd.xlane.f32.xlu0 %v1077
      %v1079 = vpop.xlane.xlu0 %1078
      %v1080 = vsel %vm992, %v1052, 0.0
      %1081 = vadd.xlane.f32.xlu0 %v1080
      %v1082 = vpop.xlane.xlu0 %1081
      %v1083 = vrcp.pop %v1055
      %v1084 = vrcp.pop %v1058
      %v1085 = vrcp.pop %v1061
      %v1086 = vrcp.pop %v1064
      %v1087 = vrcp.pop %v1067
      %v1088 = vrcp.pop %v1070
      %v1089 = vrcp.pop %v1073
      %v1090 = vrcp.pop %v1076
      %v1091 = vrcp.pop %v1079
      %v1092 = vrcp.pop %v1082
      %v1093 = vmul.f32 %v1034, %v1083
      %v1094 = vmul.f32 %v1036, %v1084
      %v1095 = vmul.f32 %v1038, %v1085
      %v1096 = vmul.f32 %v1040, %v1086
      %v1097 = vmul.f32 %v1042, %v1087
      %v1098 = vmul.f32 %v1044, %v1088
      %v1099 = vmul.f32 %v1046, %v1089
      %v1100 = vmul.f32 %v1048, %v1090
      %v1101 = vmul.f32 %v1050, %v1091
      %v1102 = vmul.f32 %v1052, %v1092
      %1103 = vrot.lane.b32.xlu0 %v613, 64
      %v1104 = vpop.permute.xlu0 %1103
      %1105 = vrot.lane.b32.xlu0 %v618, 64
      %v1106 = vpop.permute.xlu0 %1105
      %1107 = vrot.lane.b32.xlu0 %v623, 64
      %v1108 = vpop.permute.xlu0 %1107
      %1109 = vrot.lane.b32.xlu0 %v628, 64
      %v1110 = vpop.permute.xlu0 %1109
      %1111 = vrot.lane.b32.xlu0 %v633, 64
      %v1112 = vpop.permute.xlu0 %1111
      %v1119 = vsel %vm992, %v1093, 0
      %v1122 = vsel %vm992, %v1094, 0
      %v1125 = vsel %vm992, %v1095, 0
      %v1128 = vsel %vm992, %v1096, 0
      %v1131 = vsel %vm992, %v1097, 0
      %1133 = vmatprep.subr.mxu0 0.0
      %1134 = vmatpush1.msra.mxu0 %v1104
      %1135 = vmatprep.subr.mxu0 0.0
      %1136 = vmatpush1.msra.mxu0 %v1106
      %1137 = vmatprep.subr.mxu0 0.0
      %1138 = vmatpush1.msra.mxu0 %v1108
      %1139 = vmatprep.subr.mxu0 0.0
      %1140 = vmatpush1.msra.mxu0 %v1110
      %1141 = vmatprep.subr.mxu0 0.0
      %1142 = vmatpush1.msra.mxu0 %v1112
      %1143 = vmatprep.subr.mxu0 0.0
      %1144 = vmatpush1.msra.mxu0 0.0
      %1145 = vmatprep.subr.mxu0 0.0
      %1146 = vmatpush1.msra.mxu0 0.0
      %1147 = vmatprep.subr.mxu0 0.0
      %1148 = vmatpush1.msra.mxu0 0.0
      %1149 = vmatprep.subr.mxu0 0.0
      %1150 = vmatpush1.msra.mxu0 0.0
      %1151 = vmatprep.subr.mxu0 0.0
      %1152 = vmatpush1.msra.mxu0 0.0
      %1153 = vmatprep.subr.mxu0 0.0
      %1154 = vmatpush1.msra.mxu0 0.0
      %1155 = vmatprep.subr.mxu0 0.0
      %1156 = vmatpush1.msra.mxu0 0.0
      %1157 = vmatprep.subr.mxu0 0.0
      %1158 = vmatpush1.msra.mxu0 0.0
      %1159 = vmatprep.subr.mxu0 0.0
      %1160 = vmatpush1.msra.mxu0 0.0
      %1161 = vmatprep.subr.mxu0 0.0
      %1162 = vmatpush1.msra.mxu0 0.0
      %1163 = vmatprep.subr.mxu0 0.0
      %1164 = vmatpush1.msra.mxu0 0.0
      %1165 = vmatprep.subr.mxu0 0.0
      %1166 = vmatpush1.msra.mxu0 0.0
      %1167 = vmatprep.subr.mxu0 0.0
      %1168 = vmatpush1.msra.mxu0 0.0
      %1169 = vmatprep.subr.mxu0 0.0
      %1170 = vmatpush1.msra.mxu0 0.0
      %1171 = vmatprep.subr.mxu0 0.0
      %1172 = vmatpush1.msra.mxu0 0.0
      %1173 = vmatprep.subr.mxu0 0.0
      %1174 = vmatpush1.msra.mxu0 0.0
      %1175 = vmatprep.subr.mxu0 0.0
      %1176 = vmatpush1.msra.mxu0 0.0
      %1177 = vmatprep.subr.mxu0 0.0
      %1178 = vmatpush1.msra.mxu0 0.0
      %1179 = vmatprep.subr.mxu0 0.0
      %1180 = vmatpush1.msra.mxu0 0.0
      %1181 = vmatprep.subr.mxu0 0.0
      %1182 = vmatpush1.msra.mxu0 0.0
      %1183 = vmatprep.subr.mxu0 0.0
      %1184 = vmatpush1.msra.mxu0 0.0
      %1185 = vmatprep.subr.mxu0 0.0
      %1186 = vmatpush1.msra.mxu0 0.0
      %1187 = vmatprep.subr.mxu0 0.0
      %1188 = vmatpush1.msra.mxu0 0.0
      %1189 = vmatprep.subr.mxu0 0.0
      %1190 = vmatpush1.msra.mxu0 0.0
      %1191 = vmatprep.subr.mxu0 0.0
      %1192 = vmatpush1.msra.mxu0 0.0
      %1193 = vmatprep.subr.mxu0 0.0
      %1194 = vmatpush1.msra.mxu0 0.0
      %1195 = vmatprep.subr.mxu0 0.0
      %1196 = vmatpush1.msra.mxu0 0.0
      %1197 = vmatprep.mubr.f32.mxu0 0.0
      %1198 = vmatmul.mubr.f32.gmra.mrb[0].mxu0 %v1119
      %v1199 = vpop.f32.mrb[0].mxu0
      %v1200 = vadd.f32 0.0, %v1199
      %v1201 = vpop.f32.mrb[0].mxu0
      %1202 = vmatprep.mubr.f32.mxu0 0.0
      %1203 = vmatmul.mubr.f32.gmra.mrb[0].mxu0 %v1122
      %v1204 = vpop.f32.mrb[0].mxu0
      %v1205 = vadd.f32 0.0, %v1204
      %v1206 = vpop.f32.mrb[0].mxu0
      %1207 = vmatprep.mubr.f32.mxu0 0.0
      %1208 = vmatmul.mubr.f32.gmra.mrb[0].mxu0 %v1125
      %v1209 = vpop.f32.mrb[0].mxu0
      %v1210 = vadd.f32 0.0, %v1209
      %v1211 = vpop.f32.mrb[0].mxu0
      %1212 = vmatprep.mubr.f32.mxu0 0.0
      %1213 = vmatmul.mubr.f32.gmra.mrb[0].mxu0 %v1128
      %v1214 = vpop.f32.mrb[0].mxu0
      %v1215 = vadd.f32 0.0, %v1214
      %v1216 = vpop.f32.mrb[0].mxu0
      %1217 = vmatprep.mubr.f32.mxu0 0.0
      %1218 = vmatmul.mubr.f32.gmra.mrb[0].mxu0 %v1131
      %v1219 = vpop.f32.mrb[0].mxu0
      %v1220 = vadd.f32 0.0, %v1219
      %v1221 = vpop.f32.mrb[0].mxu0
      %1222 = vdwg.mxu0
      %1223 = vrot.lane.b32.xlu0 %v638, 64
      %v1224 = vpop.permute.xlu0 %1223
      %1225 = vrot.lane.b32.xlu0 %v643, 64
      %v1226 = vpop.permute.xlu0 %1225
      %1227 = vrot.lane.b32.xlu0 %v648, 64
      %v1228 = vpop.permute.xlu0 %1227
      %1229 = vrot.lane.b32.xlu0 %v653, 64
      %v1230 = vpop.permute.xlu0 %1229
      %1231 = vrot.lane.b32.xlu0 %v658, 64
      %v1232 = vpop.permute.xlu0 %1231
      %v1239 = vsel %vm992, %v1098, 0
      %v1242 = vsel %vm992, %v1099, 0
      %v1245 = vsel %vm992, %v1100, 0
      %v1248 = vsel %vm992, %v1101, 0
      %v1251 = vsel %vm992, %v1102, 0
      %1253 = vmatprep.subr.mxu0 0.0
      %1254 = vmatpush1.msra.mxu0 %v1224
      %1255 = vmatprep.subr.mxu0 0.0
      %1256 = vmatpush1.msra.mxu0 %v1226
      %1257 = vmatprep.subr.mxu0 0.0
      %1258 = vmatpush1.msra.mxu0 %v1228
      %1259 = vmatprep.subr.mxu0 0.0
      %1260 = vmatpush1.msra.mxu0 %v1230
      %1261 = vmatprep.subr.mxu0 0.0
      %1262 = vmatpush1.msra.mxu0 %v1232
      %1263 = vmatprep.subr.mxu0 0.0
      %1264 = vmatpush1.msra.mxu0 0.0
      %1265 = vmatprep.subr.mxu0 0.0
      %1266 = vmatpush1.msra.mxu0 0.0
      %1267 = vmatprep.subr.mxu0 0.0
      %1268 = vmatpush1.msra.mxu0 0.0
      %1269 = vmatprep.subr.mxu0 0.0
      %1270 = vmatpush1.msra.mxu0 0.0
      %1271 = vmatprep.subr.mxu0 0.0
      %1272 = vmatpush1.msra.mxu0 0.0
      %1273 = vmatprep.subr.mxu0 0.0
      %1274 = vmatpush1.msra.mxu0 0.0
      %1275 = vmatprep.subr.mxu0 0.0
      %1276 = vmatpush1.msra.mxu0 0.0
      %1277 = vmatprep.subr.mxu0 0.0
      %1278 = vmatpush1.msra.mxu0 0.0
      %1279 = vmatprep.subr.mxu0 0.0
      %1280 = vmatpush1.msra.mxu0 0.0
      %1281 = vmatprep.subr.mxu0 0.0
      %1282 = vmatpush1.msra.mxu0 0.0
      %1283 = vmatprep.subr.mxu0 0.0
      %1284 = vmatpush1.msra.mxu0 0.0
      %1285 = vmatprep.subr.mxu0 0.0
      %1286 = vmatpush1.msra.mxu0 0.0
      %1287 = vmatprep.subr.mxu0 0.0
      %1288 = vmatpush1.msra.mxu0 0.0
      %1289 = vmatprep.subr.mxu0 0.0
      %1290 = vmatpush1.msra.mxu0 0.0
      %1291 = vmatprep.subr.mxu0 0.0
      %1292 = vmatpush1.msra.mxu0 0.0
      %1293 = vmatprep.subr.mxu0 0.0
      %1294 = vmatpush1.msra.mxu0 0.0
      %1295 = vmatprep.subr.mxu0 0.0
      %1296 = vmatpush1.msra.mxu0 0.0
      %1297 = vmatprep.subr.mxu0 0.0
      %1298 = vmatpush1.msra.mxu0 0.0
      %1299 = vmatprep.subr.mxu0 0.0
      %1300 = vmatpush1.msra.mxu0 0.0
      %1301 = vmatprep.subr.mxu0 0.0
      %1302 = vmatpush1.msra.mxu0 0.0
      %1303 = vmatprep.subr.mxu0 0.0
      %1304 = vmatpush1.msra.mxu0 0.0
      %1305 = vmatprep.subr.mxu0 0.0
      %1306 = vmatpush1.msra.mxu0 0.0
      %1307 = vmatprep.subr.mxu0 0.0
      %1308 = vmatpush1.msra.mxu0 0.0
      %1309 = vmatprep.subr.mxu0 0.0
      %1310 = vmatpush1.msra.mxu0 0.0
      %1311 = vmatprep.subr.mxu0 0.0
      %1312 = vmatpush1.msra.mxu0 0.0
      %1313 = vmatprep.subr.mxu0 0.0
      %1314 = vmatpush1.msra.mxu0 0.0
      %1315 = vmatprep.subr.mxu0 0.0
      %1316 = vmatpush1.msra.mxu0 0.0
      %1317 = vmatprep.mubr.f32.mxu0 0.0
      %1318 = vmatmul.mubr.f32.gmra.mrb[0].mxu0 %v1239
      %v1319 = vpop.f32.mrb[0].mxu0
      %v1320 = vadd.f32 0.0, %v1319
      %v1321 = vpop.f32.mrb[0].mxu0
      %1322 = vmatprep.mubr.f32.mxu0 0.0
      %1323 = vmatmul.mubr.f32.gmra.mrb[0].mxu0 %v1242
      %v1324 = vpop.f32.mrb[0].mxu0
      %v1325 = vadd.f32 0.0, %v1324
      %v1326 = vpop.f32.mrb[0].mxu0
      %1327 = vmatprep.mubr.f32.mxu0 0.0
      %1328 = vmatmul.mubr.f32.gmra.mrb[0].mxu0 %v1245
      %v1329 = vpop.f32.mrb[0].mxu0
      %v1330 = vadd.f32 0.0, %v1329
      %v1331 = vpop.f32.mrb[0].mxu0
      %1332 = vmatprep.mubr.f32.mxu0 0.0
      %1333 = vmatmul.mubr.f32.gmra.mrb[0].mxu0 %v1248
      %v1334 = vpop.f32.mrb[0].mxu0
      %v1335 = vadd.f32 0.0, %v1334
      %v1336 = vpop.f32.mrb[0].mxu0
      %1337 = vmatprep.mubr.f32.mxu0 0.0
      %1338 = vmatmul.mubr.f32.gmra.mrb[0].mxu0 %v1251
      %v1339 = vpop.f32.mrb[0].mxu0
      %v1340 = vadd.f32 0.0, %v1339
      %v1341 = vpop.f32.mrb[0].mxu0
      %1342 = vdwg.mxu0
      %1343 = vrot.lane.b32.xlu0 %v613, 124
      %v1344 = vpop.permute.xlu0 %1343
      %1345 = vrot.lane.b32.xlu0 %v618, 124
      %v1346 = vpop.permute.xlu0 %1345
      %1347 = vrot.lane.b32.xlu0 %v623, 124
      %v1348 = vpop.permute.xlu0 %1347
      %1349 = vrot.lane.b32.xlu0 %v628, 124
      %v1350 = vpop.permute.xlu0 %1349
      %1351 = vrot.lane.b32.xlu0 %v633, 124
      %v1352 = vpop.permute.xlu0 %1351
      %1353 = vrot.lane.b32.xlu0 %v613, 92
      %v1354 = vpop.permute.xlu0 %1353
      %1355 = vrot.lane.b32.xlu0 %v618, 92
      %v1356 = vpop.permute.xlu0 %1355
      %1357 = vrot.lane.b32.xlu0 %v623, 92
      %v1358 = vpop.permute.xlu0 %1357
      %1359 = vrot.lane.b32.xlu0 %v628, 92
      %v1360 = vpop.permute.xlu0 %1359
      %1361 = vrot.lane.b32.xlu0 %v633, 92
      %v1362 = vpop.permute.xlu0 %1361
      %v1363 = vsel %vm736, %v1344, 0
      %v1365 = vsel %vm736, %v1346, 0
      %v1367 = vsel %vm736, %v1348, 0
      %v1369 = vsel %vm736, %v1350, 0
      %v1371 = vsel %vm736, %v1352, 0
      %v1373 = vsel %vm736, %v1354, 0
      %v1375 = vsel %vm736, %v1356, 0
      %v1377 = vsel %vm736, %v1358, 0
      %v1379 = vsel %vm736, %v1360, 0
      %v1381 = vsel %vm736, %v1362, 0
      %1383 = vmatprep.subr.mxu0 0.0
      %1384 = vmatpush1.xpose.msra.mxu0 %v1373
      %1385 = vmatprep.subr.mxu0 0.0
      %1386 = vmatpush1.xpose.msra.mxu0 %v1375
      %1387 = vmatprep.subr.mxu0 0.0
      %1388 = vmatpush1.xpose.msra.mxu0 %v1377
      %1389 = vmatprep.subr.mxu0 0.0
      %1390 = vmatpush1.xpose.msra.mxu0 %v1379
      %1391 = vmatprep.subr.mxu0 0.0
      %1392 = vmatpush1.xpose.msra.mxu0 %v1381
      %1393 = vmatprep.subr.mxu0 0.0
      %1394 = vmatpush1.xpose.msra.mxu0 0.0
      %1395 = vmatprep.subr.mxu0 0.0
      %1396 = vmatpush1.xpose.msra.mxu0 0.0
      %1397 = vmatprep.subr.mxu0 0.0
      %1398 = vmatpush1.xpose.msra.mxu0 0.0
      %1399 = vmatprep.subr.mxu0 0.0
      %1400 = vmatpush1.xpose.msra.mxu0 0.0
      %1401 = vmatprep.subr.mxu0 0.0
      %1402 = vmatpush1.xpose.msra.mxu0 0.0
      %1403 = vmatprep.subr.mxu0 0.0
      %1404 = vmatpush1.xpose.msra.mxu0 0.0
      %1405 = vmatprep.subr.mxu0 0.0
      %1406 = vmatpush1.xpose.msra.mxu0 0.0
      %1407 = vmatprep.subr.mxu0 0.0
      %1408 = vmatpush1.xpose.msra.mxu0 0.0
      %1409 = vmatprep.subr.mxu0 0.0
      %1410 = vmatpush1.xpose.msra.mxu0 0.0
      %1411 = vmatprep.subr.mxu0 0.0
      %1412 = vmatpush1.xpose.msra.mxu0 0.0
      %1413 = vmatprep.subr.mxu0 0.0
      %1414 = vmatpush1.xpose.msra.mxu0 0.0
      %1415 = vmatprep.subr.mxu0 0.0
      %1416 = vmatpush1.xpose.msra.mxu0 0.0
      %1417 = vmatprep.subr.mxu0 0.0
      %1418 = vmatpush1.xpose.msra.mxu0 0.0
      %1419 = vmatprep.subr.mxu0 0.0
      %1420 = vmatpush1.xpose.msra.mxu0 0.0
      %1421 = vmatprep.subr.mxu0 0.0
      %1422 = vmatpush1.xpose.msra.mxu0 0.0
      %1423 = vmatprep.subr.mxu0 0.0
      %1424 = vmatpush1.xpose.msra.mxu0 0.0
      %1425 = vmatprep.subr.mxu0 0.0
      %1426 = vmatpush1.xpose.msra.mxu0 0.0
      %1427 = vmatprep.subr.mxu0 0.0
      %1428 = vmatpush1.xpose.msra.mxu0 0.0
      %1429 = vmatprep.subr.mxu0 0.0
      %1430 = vmatpush1.xpose.msra.mxu0 0.0
      %1431 = vmatprep.subr.mxu0 0.0
      %1432 = vmatpush1.xpose.msra.mxu0 0.0
      %1433 = vmatprep.subr.mxu0 0.0
      %1434 = vmatpush1.xpose.msra.mxu0 0.0
      %1435 = vmatprep.subr.mxu0 0.0
      %1436 = vmatpush1.xpose.msra.mxu0 0.0
      %1437 = vmatprep.subr.mxu0 0.0
      %1438 = vmatpush1.xpose.msra.mxu0 0.0
      %1439 = vmatprep.subr.mxu0 0.0
      %1440 = vmatpush1.xpose.msra.mxu0 0.0
      %1441 = vmatprep.subr.mxu0 0.0
      %1442 = vmatpush1.xpose.msra.mxu0 0.0
      %1443 = vmatprep.subr.mxu0 0.0
      %1444 = vmatpush1.xpose.msra.mxu0 0.0
      %1445 = vmatprep.subr.mxu0 0.0
      %1446 = vmatpush1.xpose.msra.mxu0 0.0
      %1447 = vmatprep.mubr.f32.mxu0 0.0
      %1448 = vmatmul.mubr.f32.gmra.mrb[0].mxu0 %v1363
      %v1449 = vpop.f32.mrb[0].mxu0
      %v1450 = vadd.f32 0.0, %v1449
      %v1451 = vpop.f32.mrb[0].mxu0
      %1452 = vmatprep.mubr.f32.mxu0 0.0
      %1453 = vmatmul.mubr.f32.gmra.mrb[0].mxu0 %v1365
      %v1454 = vpop.f32.mrb[0].mxu0
      %v1455 = vadd.f32 0.0, %v1454
      %v1456 = vpop.f32.mrb[0].mxu0
      %1457 = vmatprep.mubr.f32.mxu0 0.0
      %1458 = vmatmul.mubr.f32.gmra.mrb[0].mxu0 %v1367
      %v1459 = vpop.f32.mrb[0].mxu0
      %v1460 = vadd.f32 0.0, %v1459
      %v1461 = vpop.f32.mrb[0].mxu0
      %1462 = vmatprep.mubr.f32.mxu0 0.0
      %1463 = vmatmul.mubr.f32.gmra.mrb[0].mxu0 %v1369
      %v1464 = vpop.f32.mrb[0].mxu0
      %v1465 = vadd.f32 0.0, %v1464
      %v1466 = vpop.f32.mrb[0].mxu0
      %1467 = vmatprep.mubr.f32.mxu0 0.0
      %1468 = vmatmul.mubr.f32.gmra.mrb[0].mxu0 %v1371
      %v1469 = vpop.f32.mrb[0].mxu0
      %v1470 = vadd.f32 0.0, %v1469
      %v1471 = vpop.f32.mrb[0].mxu0
      %1472 = vdwg.mxu0
      %1473 = vrot.lane.b32.xlu0 %v638, 124
      %v1474 = vpop.permute.xlu0 %1473
      %1475 = vrot.lane.b32.xlu0 %v643, 124
      %v1476 = vpop.permute.xlu0 %1475
      %1477 = vrot.lane.b32.xlu0 %v648, 124
      %v1478 = vpop.permute.xlu0 %1477
      %1479 = vrot.lane.b32.xlu0 %v653, 124
      %v1480 = vpop.permute.xlu0 %1479
      %1481 = vrot.lane.b32.xlu0 %v658, 124
      %v1482 = vpop.permute.xlu0 %1481
      %1483 = vrot.lane.b32.xlu0 %v638, 92
      %v1484 = vpop.permute.xlu0 %1483
      %1485 = vrot.lane.b32.xlu0 %v643, 92
      %v1486 = vpop.permute.xlu0 %1485
      %1487 = vrot.lane.b32.xlu0 %v648, 92
      %v1488 = vpop.permute.xlu0 %1487
      %1489 = vrot.lane.b32.xlu0 %v653, 92
      %v1490 = vpop.permute.xlu0 %1489
      %1491 = vrot.lane.b32.xlu0 %v658, 92
      %v1492 = vpop.permute.xlu0 %1491
      %v1493 = vsel %vm736, %v1474, 0
      %v1495 = vsel %vm736, %v1476, 0
      %v1497 = vsel %vm736, %v1478, 0
      %v1499 = vsel %vm736, %v1480, 0
      %v1501 = vsel %vm736, %v1482, 0
      %v1503 = vsel %vm736, %v1484, 0
      %v1505 = vsel %vm736, %v1486, 0
      %v1507 = vsel %vm736, %v1488, 0
      %v1509 = vsel %vm736, %v1490, 0
      %v1511 = vsel %vm736, %v1492, 0
      %1513 = vmatprep.subr.mxu0 0.0
      %1514 = vmatpush1.xpose.msra.mxu0 %v1503
      %1515 = vmatprep.subr.mxu0 0.0
      %1516 = vmatpush1.xpose.msra.mxu0 %v1505
      %1517 = vmatprep.subr.mxu0 0.0
      %1518 = vmatpush1.xpose.msra.mxu0 %v1507
      %1519 = vmatprep.subr.mxu0 0.0
      %1520 = vmatpush1.xpose.msra.mxu0 %v1509
      %1521 = vmatprep.subr.mxu0 0.0
      %1522 = vmatpush1.xpose.msra.mxu0 %v1511
      %1523 = vmatprep.subr.mxu0 0.0
      %1524 = vmatpush1.xpose.msra.mxu0 0.0
      %1525 = vmatprep.subr.mxu0 0.0
      %1526 = vmatpush1.xpose.msra.mxu0 0.0
      %1527 = vmatprep.subr.mxu0 0.0
      %1528 = vmatpush1.xpose.msra.mxu0 0.0
      %1529 = vmatprep.subr.mxu0 0.0
      %1530 = vmatpush1.xpose.msra.mxu0 0.0
      %1531 = vmatprep.subr.mxu0 0.0
      %1532 = vmatpush1.xpose.msra.mxu0 0.0
      %1533 = vmatprep.subr.mxu0 0.0
      %1534 = vmatpush1.xpose.msra.mxu0 0.0
      %1535 = vmatprep.subr.mxu0 0.0
      %1536 = vmatpush1.xpose.msra.mxu0 0.0
      %1537 = vmatprep.subr.mxu0 0.0
      %1538 = vmatpush1.xpose.msra.mxu0 0.0
      %1539 = vmatprep.subr.mxu0 0.0
      %1540 = vmatpush1.xpose.msra.mxu0 0.0
      %1541 = vmatprep.subr.mxu0 0.0
      %1542 = vmatpush1.xpose.msra.mxu0 0.0
      %1543 = vmatprep.subr.mxu0 0.0
      %1544 = vmatpush1.xpose.msra.mxu0 0.0
      %1545 = vmatprep.subr.mxu0 0.0
      %1546 = vmatpush1.xpose.msra.mxu0 0.0
      %1547 = vmatprep.subr.mxu0 0.0
      %1548 = vmatpush1.xpose.msra.mxu0 0.0
      %1549 = vmatprep.subr.mxu0 0.0
      %1550 = vmatpush1.xpose.msra.mxu0 0.0
      %1551 = vmatprep.subr.mxu0 0.0
      %1552 = vmatpush1.xpose.msra.mxu0 0.0
      %1553 = vmatprep.subr.mxu0 0.0
      %1554 = vmatpush1.xpose.msra.mxu0 0.0
      %1555 = vmatprep.subr.mxu0 0.0
      %1556 = vmatpush1.xpose.msra.mxu0 0.0
      %1557 = vmatprep.subr.mxu0 0.0
      %1558 = vmatpush1.xpose.msra.mxu0 0.0
      %1559 = vmatprep.subr.mxu0 0.0
      %1560 = vmatpush1.xpose.msra.mxu0 0.0
      %1561 = vmatprep.subr.mxu0 0.0
      %1562 = vmatpush1.xpose.msra.mxu0 0.0
      %1563 = vmatprep.subr.mxu0 0.0
      %1564 = vmatpush1.xpose.msra.mxu0 0.0
      %1565 = vmatprep.subr.mxu0 0.0
      %1566 = vmatpush1.xpose.msra.mxu0 0.0
      %1567 = vmatprep.subr.mxu0 0.0
      %1568 = vmatpush1.xpose.msra.mxu0 0.0
      %1569 = vmatprep.subr.mxu0 0.0
      %1570 = vmatpush1.xpose.msra.mxu0 0.0
      %1571 = vmatprep.subr.mxu0 0.0
      %1572 = vmatpush1.xpose.msra.mxu0 0.0
      %1573 = vmatprep.subr.mxu0 0.0
      %1574 = vmatpush1.xpose.msra.mxu0 0.0
      %1575 = vmatprep.subr.mxu0 0.0
      %1576 = vmatpush1.xpose.msra.mxu0 0.0
      %1577 = vmatprep.mubr.f32.mxu0 0.0
      %1578 = vmatmul.mubr.f32.gmra.mrb[0].mxu0 %v1493
      %v1579 = vpop.f32.mrb[0].mxu0
      %v1580 = vadd.f32 0.0, %v1579
      %v1581 = vpop.f32.mrb[0].mxu0
      %1582 = vmatprep.mubr.f32.mxu0 0.0
      %1583 = vmatmul.mubr.f32.gmra.mrb[0].mxu0 %v1495
      %v1584 = vpop.f32.mrb[0].mxu0
      %v1585 = vadd.f32 0.0, %v1584
      %v1586 = vpop.f32.mrb[0].mxu0
      %1587 = vmatprep.mubr.f32.mxu0 0.0
      %1588 = vmatmul.mubr.f32.gmra.mrb[0].mxu0 %v1497
      %v1589 = vpop.f32.mrb[0].mxu0
      %v1590 = vadd.f32 0.0, %v1589
      %v1591 = vpop.f32.mrb[0].mxu0
      %1592 = vmatprep.mubr.f32.mxu0 0.0
      %1593 = vmatmul.mubr.f32.gmra.mrb[0].mxu0 %v1499
      %v1594 = vpop.f32.mrb[0].mxu0
      %v1595 = vadd.f32 0.0, %v1594
      %v1596 = vpop.f32.mrb[0].mxu0
      %1597 = vmatprep.mubr.f32.mxu0 0.0
      %1598 = vmatmul.mubr.f32.gmra.mrb[0].mxu0 %v1501
      %v1599 = vpop.f32.mrb[0].mxu0
      %v1600 = vadd.f32 0.0, %v1599
      %v1601 = vpop.f32.mrb[0].mxu0
      %1602 = vdwg.mxu0
      %v1603 = vmul.f32 %v1450, 0.5
      %v1604 = vmul.f32 %v1455, 0.5
      %v1605 = vmul.f32 %v1460, 0.5
      %v1606 = vmul.f32 %v1465, 0.5
      %v1607 = vmul.f32 %v1470, 0.5
      %v1608 = vmul.f32 %v1580, 0.5
      %v1609 = vmul.f32 %v1585, 0.5
      %v1610 = vmul.f32 %v1590, 0.5
      %v1611 = vmul.f32 %v1595, 0.5
      %v1612 = vmul.f32 %v1600, 0.5
      %v1613 = vsel %vm711, %v1603, -1e+09
      %v1614 = vsel %vm712, %v1604, -1e+09
      %v1615 = vsel %vm713, %v1605, -1e+09
      %v1616 = vsel %vm714, %v1606, -1e+09
      %v1617 = vsel %vm715, %v1607, -1e+09
      %v1618 = vsel %vm716, %v1608, -1e+09
      %v1619 = vsel %vm717, %v1609, -1e+09
      %v1620 = vsel %vm718, %v1610, -1e+09
      %v1621 = vsel %vm719, %v1611, -1e+09
      %v1622 = vsel %vm720, %v1612, -1e+09
      %v1623 = vsel %vm992, %v1613, -inf
      %1624 = vmax.xlane.f32.xlu0 %v1623
      %v1625 = vpop.xlane.xlu0 %1624
      %v1626 = vsel %vm992, %v1614, -inf
      %1627 = vmax.xlane.f32.xlu0 %v1626
      %v1628 = vpop.xlane.xlu0 %1627
      %v1629 = vsel %vm992, %v1615, -inf
      %1630 = vmax.xlane.f32.xlu0 %v1629
      %v1631 = vpop.xlane.xlu0 %1630
      %v1632 = vsel %vm992, %v1616, -inf
      %1633 = vmax.xlane.f32.xlu0 %v1632
      %v1634 = vpop.xlane.xlu0 %1633
      %v1635 = vsel %vm992, %v1617, -inf
      %1636 = vmax.xlane.f32.xlu0 %v1635
      %v1637 = vpop.xlane.xlu0 %1636
      %v1638 = vsel %vm992, %v1618, -inf
      %1639 = vmax.xlane.f32.xlu0 %v1638
      %v1640 = vpop.xlane.xlu0 %1639
      %v1641 = vsel %vm992, %v1619, -inf
      %1642 = vmax.xlane.f32.xlu0 %v1641
      %v1643 = vpop.xlane.xlu0 %1642
      %v1644 = vsel %vm992, %v1620, -inf
      %1645 = vmax.xlane.f32.xlu0 %v1644
      %v1646 = vpop.xlane.xlu0 %1645
      %v1647 = vsel %vm992, %v1621, -inf
      %1648 = vmax.xlane.f32.xlu0 %v1647
      %v1649 = vpop.xlane.xlu0 %1648
      %v1650 = vsel %vm992, %v1622, -inf
      %1651 = vmax.xlane.f32.xlu0 %v1650
      %v1652 = vpop.xlane.xlu0 %1651
      %v1653 = vsub.f32 %v1613, %v1625
      %v1654 = vsub.f32 %v1614, %v1628
      %v1655 = vsub.f32 %v1615, %v1631
      %v1656 = vsub.f32 %v1616, %v1634
      %v1657 = vsub.f32 %v1617, %v1637
      %v1658 = vsub.f32 %v1618, %v1640
      %v1659 = vsub.f32 %v1619, %v1643
      %v1660 = vsub.f32 %v1620, %v1646
      %v1661 = vsub.f32 %v1621, %v1649
      %v1662 = vsub.f32 %v1622, %v1652
      %v1663 = vmul.f32 %v1653, 1.442695
      %v1664 = vpow.pop %v1663
      %v1665 = vmul.f32 %v1654, 1.442695
      %v1666 = vpow.pop %v1665
      %v1667 = vmul.f32 %v1655, 1.442695
      %v1668 = vpow.pop %v1667
      %v1669 = vmul.f32 %v1656, 1.442695
      %v1670 = vpow.pop %v1669
      %v1671 = vmul.f32 %v1657, 1.442695
      %v1672 = vpow.pop %v1671
      %v1673 = vmul.f32 %v1658, 1.442695
      %v1674 = vpow.pop %v1673
      %v1675 = vmul.f32 %v1659, 1.442695
      %v1676 = vpow.pop %v1675
      %v1677 = vmul.f32 %v1660, 1.442695
      %v1678 = vpow.pop %v1677
      %v1679 = vmul.f32 %v1661, 1.442695
      %v1680 = vpow.pop %v1679
      %v1681 = vmul.f32 %v1662, 1.442695
      %v1682 = vpow.pop %v1681
      %v1683 = vsel %vm992, %v1664, 0.0
      %1684 = vadd.xlane.f32.xlu0 %v1683
      %v1685 = vpop.xlane.xlu0 %1684
      %v1686 = vsel %vm992, %v1666, 0.0
      %1687 = vadd.xlane.f32.xlu0 %v1686
      %v1688 = vpop.xlane.xlu0 %1687
      %v1689 = vsel %vm992, %v1668, 0.0
      %1690 = vadd.xlane.f32.xlu0 %v1689
      %v1691 = vpop.xlane.xlu0 %1690
      %v1692 = vsel %vm992, %v1670, 0.0
      %1693 = vadd.xlane.f32.xlu0 %v1692
      %v1694 = vpop.xlane.xlu0 %1693
      %v1695 = vsel %vm992, %v1672, 0.0
      %1696 = vadd.xlane.f32.xlu0 %v1695
      %v1697 = vpop.xlane.xlu0 %1696
      %v1698 = vsel %vm992, %v1674, 0.0
      %1699 = vadd.xlane.f32.xlu0 %v1698
      %v1700 = vpop.xlane.xlu0 %1699
      %v1701 = vsel %vm992, %v1676, 0.0
      %1702 = vadd.xlane.f32.xlu0 %v1701
      %v1703 = vpop.xlane.xlu0 %1702
      %v1704 = vsel %vm992, %v1678, 0.0
      %1705 = vadd.xlane.f32.xlu0 %v1704
      %v1706 = vpop.xlane.xlu0 %1705
      %v1707 = vsel %vm992, %v1680, 0.0
      %1708 = vadd.xlane.f32.xlu0 %v1707
      %v1709 = vpop.xlane.xlu0 %1708
      %v1710 = vsel %vm992, %v1682, 0.0
      %1711 = vadd.xlane.f32.xlu0 %v1710
      %v1712 = vpop.xlane.xlu0 %1711
      %v1713 = vrcp.pop %v1685
      %v1714 = vrcp.pop %v1688
      %v1715 = vrcp.pop %v1691
      %v1716 = vrcp.pop %v1694
      %v1717 = vrcp.pop %v1697
      %v1718 = vrcp.pop %v1700
      %v1719 = vrcp.pop %v1703
      %v1720 = vrcp.pop %v1706
      %v1721 = vrcp.pop %v1709
      %v1722 = vrcp.pop %v1712
      %v1723 = vmul.f32 %v1664, %v1713
      %v1724 = vmul.f32 %v1666, %v1714
      %v1725 = vmul.f32 %v1668, %v1715
      %v1726 = vmul.f32 %v1670, %v1716
      %v1727 = vmul.f32 %v1672, %v1717
      %v1728 = vmul.f32 %v1674, %v1718
      %v1729 = vmul.f32 %v1676, %v1719
      %v1730 = vmul.f32 %v1678, %v1720
      %v1731 = vmul.f32 %v1680, %v1721
      %v1732 = vmul.f32 %v1682, %v1722
      %1733 = vrot.lane.b32.xlu0 %v613, 60
      %v1734 = vpop.permute.xlu0 %1733
      %1735 = vrot.lane.b32.xlu0 %v618, 60
      %v1736 = vpop.permute.xlu0 %1735
      %1737 = vrot.lane.b32.xlu0 %v623, 60
      %v1738 = vpop.permute.xlu0 %1737
      %1739 = vrot.lane.b32.xlu0 %v628, 60
      %v1740 = vpop.permute.xlu0 %1739
      %1741 = vrot.lane.b32.xlu0 %v633, 60
      %v1742 = vpop.permute.xlu0 %1741
      %v1749 = vsel %vm992, %v1723, 0
      %v1752 = vsel %vm992, %v1724, 0
      %v1755 = vsel %vm992, %v1725, 0
      %v1758 = vsel %vm992, %v1726, 0
      %v1761 = vsel %vm992, %v1727, 0
      %1763 = vmatprep.subr.mxu0 0.0
      %1764 = vmatpush1.msra.mxu0 %v1734
      %1765 = vmatprep.subr.mxu0 0.0
      %1766 = vmatpush1.msra.mxu0 %v1736
      %1767 = vmatprep.subr.mxu0 0.0
      %1768 = vmatpush1.msra.mxu0 %v1738
      %1769 = vmatprep.subr.mxu0 0.0
      %1770 = vmatpush1.msra.mxu0 %v1740
      %1771 = vmatprep.subr.mxu0 0.0
      %1772 = vmatpush1.msra.mxu0 %v1742
      %1773 = vmatprep.subr.mxu0 0.0
      %1774 = vmatpush1.msra.mxu0 0.0
      %1775 = vmatprep.subr.mxu0 0.0
      %1776 = vmatpush1.msra.mxu0 0.0
      %1777 = vmatprep.subr.mxu0 0.0
      %1778 = vmatpush1.msra.mxu0 0.0
      %1779 = vmatprep.subr.mxu0 0.0
      %1780 = vmatpush1.msra.mxu0 0.0
      %1781 = vmatprep.subr.mxu0 0.0
      %1782 = vmatpush1.msra.mxu0 0.0
      %1783 = vmatprep.subr.mxu0 0.0
      %1784 = vmatpush1.msra.mxu0 0.0
      %1785 = vmatprep.subr.mxu0 0.0
      %1786 = vmatpush1.msra.mxu0 0.0
      %1787 = vmatprep.subr.mxu0 0.0
      %1788 = vmatpush1.msra.mxu0 0.0
      %1789 = vmatprep.subr.mxu0 0.0
      %1790 = vmatpush1.msra.mxu0 0.0
      %1791 = vmatprep.subr.mxu0 0.0
      %1792 = vmatpush1.msra.mxu0 0.0
      %1793 = vmatprep.subr.mxu0 0.0
      %1794 = vmatpush1.msra.mxu0 0.0
      %1795 = vmatprep.subr.mxu0 0.0
      %1796 = vmatpush1.msra.mxu0 0.0
      %1797 = vmatprep.subr.mxu0 0.0
      %1798 = vmatpush1.msra.mxu0 0.0
      %1799 = vmatprep.subr.mxu0 0.0
      %1800 = vmatpush1.msra.mxu0 0.0
      %1801 = vmatprep.subr.mxu0 0.0
      %1802 = vmatpush1.msra.mxu0 0.0
      %1803 = vmatprep.subr.mxu0 0.0
      %1804 = vmatpush1.msra.mxu0 0.0
      %1805 = vmatprep.subr.mxu0 0.0
      %1806 = vmatpush1.msra.mxu0 0.0
      %1807 = vmatprep.subr.mxu0 0.0
      %1808 = vmatpush1.msra.mxu0 0.0
      %1809 = vmatprep.subr.mxu0 0.0
      %1810 = vmatpush1.msra.mxu0 0.0
      %1811 = vmatprep.subr.mxu0 0.0
      %1812 = vmatpush1.msra.mxu0 0.0
      %1813 = vmatprep.subr.mxu0 0.0
      %1814 = vmatpush1.msra.mxu0 0.0
      %1815 = vmatprep.subr.mxu0 0.0
      %1816 = vmatpush1.msra.mxu0 0.0
      %1817 = vmatprep.subr.mxu0 0.0
      %1818 = vmatpush1.msra.mxu0 0.0
      %1819 = vmatprep.subr.mxu0 0.0
      %1820 = vmatpush1.msra.mxu0 0.0
      %1821 = vmatprep.subr.mxu0 0.0
      %1822 = vmatpush1.msra.mxu0 0.0
      %1823 = vmatprep.subr.mxu0 0.0
      %1824 = vmatpush1.msra.mxu0 0.0
      %1825 = vmatprep.subr.mxu0 0.0
      %1826 = vmatpush1.msra.mxu0 0.0
      %1827 = vmatprep.mubr.f32.mxu0 0.0
      %1828 = vmatmul.mubr.f32.gmra.mrb[0].mxu0 %v1749
      %v1829 = vpop.f32.mrb[0].mxu0
      %v1830 = vadd.f32 0.0, %v1829
      %v1831 = vpop.f32.mrb[0].mxu0
      %1832 = vmatprep.mubr.f32.mxu0 0.0
      %1833 = vmatmul.mubr.f32.gmra.mrb[0].mxu0 %v1752
      %v1834 = vpop.f32.mrb[0].mxu0
      %v1835 = vadd.f32 0.0, %v1834
      %v1836 = vpop.f32.mrb[0].mxu0
      %1837 = vmatprep.mubr.f32.mxu0 0.0
      %1838 = vmatmul.mubr.f32.gmra.mrb[0].mxu0 %v1755
      %v1839 = vpop.f32.mrb[0].mxu0
      %v1840 = vadd.f32 0.0, %v1839
      %v1841 = vpop.f32.mrb[0].mxu0
      %1842 = vmatprep.mubr.f32.mxu0 0.0
      %1843 = vmatmul.mubr.f32.gmra.mrb[0].mxu0 %v1758
      %v1844 = vpop.f32.mrb[0].mxu0
      %v1845 = vadd.f32 0.0, %v1844
      %v1846 = vpop.f32.mrb[0].mxu0
      %1847 = vmatprep.mubr.f32.mxu0 0.0
      %1848 = vmatmul.mubr.f32.gmra.mrb[0].mxu0 %v1761
      %v1849 = vpop.f32.mrb[0].mxu0
      %v1850 = vadd.f32 0.0, %v1849
      %v1851 = vpop.f32.mrb[0].mxu0
      %1852 = vdwg.mxu0
      %1853 = vrot.lane.b32.xlu0 %v638, 60
      %v1854 = vpop.permute.xlu0 %1853
      %1855 = vrot.lane.b32.xlu0 %v643, 60
      %v1856 = vpop.permute.xlu0 %1855
      %1857 = vrot.lane.b32.xlu0 %v648, 60
      %v1858 = vpop.permute.xlu0 %1857
      %1859 = vrot.lane.b32.xlu0 %v653, 60
      %v1860 = vpop.permute.xlu0 %1859
      %1861 = vrot.lane.b32.xlu0 %v658, 60
      %v1862 = vpop.permute.xlu0 %1861
      %v1869 = vsel %vm992, %v1728, 0
      %v1872 = vsel %vm992, %v1729, 0
      %v1875 = vsel %vm992, %v1730, 0
      %v1878 = vsel %vm992, %v1731, 0
      %v1881 = vsel %vm992, %v1732, 0
      %1883 = vmatprep.subr.mxu0 0.0
      %1884 = vmatpush1.msra.mxu0 %v1854
      %1885 = vmatprep.subr.mxu0 0.0
      %1886 = vmatpush1.msra.mxu0 %v1856
      %1887 = vmatprep.subr.mxu0 0.0
      %1888 = vmatpush1.msra.mxu0 %v1858
      %1889 = vmatprep.subr.mxu0 0.0
      %1890 = vmatpush1.msra.mxu0 %v1860
      %1891 = vmatprep.subr.mxu0 0.0
      %1892 = vmatpush1.msra.mxu0 %v1862
      %1893 = vmatprep.subr.mxu0 0.0
      %1894 = vmatpush1.msra.mxu0 0.0
      %1895 = vmatprep.subr.mxu0 0.0
      %1896 = vmatpush1.msra.mxu0 0.0
      %1897 = vmatprep.subr.mxu0 0.0
      %1898 = vmatpush1.msra.mxu0 0.0
      %1899 = vmatprep.subr.mxu0 0.0
      %1900 = vmatpush1.msra.mxu0 0.0
      %1901 = vmatprep.subr.mxu0 0.0
      %1902 = vmatpush1.msra.mxu0 0.0
      %1903 = vmatprep.subr.mxu0 0.0
      %1904 = vmatpush1.msra.mxu0 0.0
      %1905 = vmatprep.subr.mxu0 0.0
      %1906 = vmatpush1.msra.mxu0 0.0
      %1907 = vmatprep.subr.mxu0 0.0
      %1908 = vmatpush1.msra.mxu0 0.0
      %1909 = vmatprep.subr.mxu0 0.0
      %1910 = vmatpush1.msra.mxu0 0.0
      %1911 = vmatprep.subr.mxu0 0.0
      %1912 = vmatpush1.msra.mxu0 0.0
      %1913 = vmatprep.subr.mxu0 0.0
      %1914 = vmatpush1.msra.mxu0 0.0
      %1915 = vmatprep.subr.mxu0 0.0
      %1916 = vmatpush1.msra.mxu0 0.0
      %1917 = vmatprep.subr.mxu0 0.0
      %1918 = vmatpush1.msra.mxu0 0.0
      %1919 = vmatprep.subr.mxu0 0.0
      %1920 = vmatpush1.msra.mxu0 0.0
      %1921 = vmatprep.subr.mxu0 0.0
      %1922 = vmatpush1.msra.mxu0 0.0
      %1923 = vmatprep.subr.mxu0 0.0
      %1924 = vmatpush1.msra.mxu0 0.0
      %1925 = vmatprep.subr.mxu0 0.0
      %1926 = vmatpush1.msra.mxu0 0.0
      %1927 = vmatprep.subr.mxu0 0.0
      %1928 = vmatpush1.msra.mxu0 0.0
      %1929 = vmatprep.subr.mxu0 0.0
      %1930 = vmatpush1.msra.mxu0 0.0
      %1931 = vmatprep.subr.mxu0 0.0
      %1932 = vmatpush1.msra.mxu0 0.0
      %1933 = vmatprep.subr.mxu0 0.0
      %1934 = vmatpush1.msra.mxu0 0.0
      %1935 = vmatprep.subr.mxu0 0.0
      %1936 = vmatpush1.msra.mxu0 0.0
      %1937 = vmatprep.subr.mxu0 0.0
      %1938 = vmatpush1.msra.mxu0 0.0
      %1939 = vmatprep.subr.mxu0 0.0
      %1940 = vmatpush1.msra.mxu0 0.0
      %1941 = vmatprep.subr.mxu0 0.0
      %1942 = vmatpush1.msra.mxu0 0.0
      %1943 = vmatprep.subr.mxu0 0.0
      %1944 = vmatpush1.msra.mxu0 0.0
      %1945 = vmatprep.subr.mxu0 0.0
      %1946 = vmatpush1.msra.mxu0 0.0
      %1947 = vmatprep.mubr.f32.mxu0 0.0
      %1948 = vmatmul.mubr.f32.gmra.mrb[0].mxu0 %v1869
      %v1949 = vpop.f32.mrb[0].mxu0
      %v1950 = vadd.f32 0.0, %v1949
      %v1951 = vpop.f32.mrb[0].mxu0
      %1952 = vmatprep.mubr.f32.mxu0 0.0
      %1953 = vmatmul.mubr.f32.gmra.mrb[0].mxu0 %v1872
      %v1954 = vpop.f32.mrb[0].mxu0
      %v1955 = vadd.f32 0.0, %v1954
      %v1956 = vpop.f32.mrb[0].mxu0
      %1957 = vmatprep.mubr.f32.mxu0 0.0
      %1958 = vmatmul.mubr.f32.gmra.mrb[0].mxu0 %v1875
      %v1959 = vpop.f32.mrb[0].mxu0
      %v1960 = vadd.f32 0.0, %v1959
      %v1961 = vpop.f32.mrb[0].mxu0
      %1962 = vmatprep.mubr.f32.mxu0 0.0
      %1963 = vmatmul.mubr.f32.gmra.mrb[0].mxu0 %v1878
      %v1964 = vpop.f32.mrb[0].mxu0
      %v1965 = vadd.f32 0.0, %v1964
      %v1966 = vpop.f32.mrb[0].mxu0
      %1967 = vmatprep.mubr.f32.mxu0 0.0
      %1968 = vmatmul.mubr.f32.gmra.mrb[0].mxu0 %v1881
      %v1969 = vpop.f32.mrb[0].mxu0
      %v1970 = vadd.f32 0.0, %v1969
      %v1971 = vpop.f32.mrb[0].mxu0
      %1972 = vdwg.mxu0
      %1973 = vrot.lane.b32.xlu0 %v613, 120
      %v1974 = vpop.permute.xlu0 %1973
      %1975 = vrot.lane.b32.xlu0 %v618, 120
      %v1976 = vpop.permute.xlu0 %1975
      %1977 = vrot.lane.b32.xlu0 %v623, 120
      %v1978 = vpop.permute.xlu0 %1977
      %1979 = vrot.lane.b32.xlu0 %v628, 120
      %v1980 = vpop.permute.xlu0 %1979
      %1981 = vrot.lane.b32.xlu0 %v633, 120
      %v1982 = vpop.permute.xlu0 %1981
      %1983 = vrot.lane.b32.xlu0 %v613, 88
      %v1984 = vpop.permute.xlu0 %1983
      %1985 = vrot.lane.b32.xlu0 %v618, 88
      %v1986 = vpop.permute.xlu0 %1985
      %1987 = vrot.lane.b32.xlu0 %v623, 88
      %v1988 = vpop.permute.xlu0 %1987
      %1989 = vrot.lane.b32.xlu0 %v628, 88
      %v1990 = vpop.permute.xlu0 %1989
      %1991 = vrot.lane.b32.xlu0 %v633, 88
      %v1992 = vpop.permute.xlu0 %1991
      %v1993 = vsel %vm736, %v1974, 0
      %v1995 = vsel %vm736, %v1976, 0
      %v1997 = vsel %vm736, %v1978, 0
      %v1999 = vsel %vm736, %v1980, 0
      %v2001 = vsel %vm736, %v1982, 0
      %v2003 = vsel %vm736, %v1984, 0
      %v2005 = vsel %vm736, %v1986, 0
      %v2007 = vsel %vm736, %v1988, 0
      %v2009 = vsel %vm736, %v1990, 0
      %v2011 = vsel %vm736, %v1992, 0
      %2013 = vmatprep.subr.mxu0 0.0
      %2014 = vmatpush1.xpose.msra.mxu0 %v2003
      %2015 = vmatprep.subr.mxu0 0.0
      %2016 = vmatpush1.xpose.msra.mxu0 %v2005
      %2017 = vmatprep.subr.mxu0 0.0
      %2018 = vmatpush1.xpose.msra.mxu0 %v2007
      %2019 = vmatprep.subr.mxu0 0.0
      %2020 = vmatpush1.xpose.msra.mxu0 %v2009
      %2021 = vmatprep.subr.mxu0 0.0
      %2022 = vmatpush1.xpose.msra.mxu0 %v2011
      %2023 = vmatprep.subr.mxu0 0.0
      %2024 = vmatpush1.xpose.msra.mxu0 0.0
      %2025 = vmatprep.subr.mxu0 0.0
      %2026 = vmatpush1.xpose.msra.mxu0 0.0
      %2027 = vmatprep.subr.mxu0 0.0
      %2028 = vmatpush1.xpose.msra.mxu0 0.0
      %2029 = vmatprep.subr.mxu0 0.0
      %2030 = vmatpush1.xpose.msra.mxu0 0.0
      %2031 = vmatprep.subr.mxu0 0.0
      %2032 = vmatpush1.xpose.msra.mxu0 0.0
      %2033 = vmatprep.subr.mxu0 0.0
      %2034 = vmatpush1.xpose.msra.mxu0 0.0
      %2035 = vmatprep.subr.mxu0 0.0
      %2036 = vmatpush1.xpose.msra.mxu0 0.0
      %2037 = vmatprep.subr.mxu0 0.0
      %2038 = vmatpush1.xpose.msra.mxu0 0.0
      %2039 = vmatprep.subr.mxu0 0.0
      %2040 = vmatpush1.xpose.msra.mxu0 0.0
      %2041 = vmatprep.subr.mxu0 0.0
      %2042 = vmatpush1.xpose.msra.mxu0 0.0
      %2043 = vmatprep.subr.mxu0 0.0
      %2044 = vmatpush1.xpose.msra.mxu0 0.0
      %2045 = vmatprep.subr.mxu0 0.0
      %2046 = vmatpush1.xpose.msra.mxu0 0.0
      %2047 = vmatprep.subr.mxu0 0.0
      %2048 = vmatpush1.xpose.msra.mxu0 0.0
      %2049 = vmatprep.subr.mxu0 0.0
      %2050 = vmatpush1.xpose.msra.mxu0 0.0
      %2051 = vmatprep.subr.mxu0 0.0
      %2052 = vmatpush1.xpose.msra.mxu0 0.0
      %2053 = vmatprep.subr.mxu0 0.0
      %2054 = vmatpush1.xpose.msra.mxu0 0.0
      %2055 = vmatprep.subr.mxu0 0.0
      %2056 = vmatpush1.xpose.msra.mxu0 0.0
      %2057 = vmatprep.subr.mxu0 0.0
      %2058 = vmatpush1.xpose.msra.mxu0 0.0
      %2059 = vmatprep.subr.mxu0 0.0
      %2060 = vmatpush1.xpose.msra.mxu0 0.0
      %2061 = vmatprep.subr.mxu0 0.0
      %2062 = vmatpush1.xpose.msra.mxu0 0.0
      %2063 = vmatprep.subr.mxu0 0.0
      %2064 = vmatpush1.xpose.msra.mxu0 0.0
      %2065 = vmatprep.subr.mxu0 0.0
      %2066 = vmatpush1.xpose.msra.mxu0 0.0
      %2067 = vmatprep.subr.mxu0 0.0
      %2068 = vmatpush1.xpose.msra.mxu0 0.0
      %2069 = vmatprep.subr.mxu0 0.0
      %2070 = vmatpush1.xpose.msra.mxu0 0.0
      %2071 = vmatprep.subr.mxu0 0.0
      %2072 = vmatpush1.xpose.msra.mxu0 0.0
      %2073 = vmatprep.subr.mxu0 0.0
      %2074 = vmatpush1.xpose.msra.mxu0 0.0
      %2075 = vmatprep.subr.mxu0 0.0
      %2076 = vmatpush1.xpose.msra.mxu0 0.0
      %2077 = vmatprep.mubr.f32.mxu0 0.0
      %2078 = vmatmul.mubr.f32.gmra.mrb[0].mxu0 %v1993
      %v2079 = vpop.f32.mrb[0].mxu0
      %v2080 = vadd.f32 0.0, %v2079
      %v2081 = vpop.f32.mrb[0].mxu0
      %2082 = vmatprep.mubr.f32.mxu0 0.0
      %2083 = vmatmul.mubr.f32.gmra.mrb[0].mxu0 %v1995
      %v2084 = vpop.f32.mrb[0].mxu0
      %v2085 = vadd.f32 0.0, %v2084
      %v2086 = vpop.f32.mrb[0].mxu0
      %2087 = vmatprep.mubr.f32.mxu0 0.0
      %2088 = vmatmul.mubr.f32.gmra.mrb[0].mxu0 %v1997
      %v2089 = vpop.f32.mrb[0].mxu0
      %v2090 = vadd.f32 0.0, %v2089
      %v2091 = vpop.f32.mrb[0].mxu0
      %2092 = vmatprep.mubr.f32.mxu0 0.0
      %2093 = vmatmul.mubr.f32.gmra.mrb[0].mxu0 %v1999
      %v2094 = vpop.f32.mrb[0].mxu0
      %v2095 = vadd.f32 0.0, %v2094
      %v2096 = vpop.f32.mrb[0].mxu0
      %2097 = vmatprep.mubr.f32.mxu0 0.0
      %2098 = vmatmul.mubr.f32.gmra.mrb[0].mxu0 %v2001
      %v2099 = vpop.f32.mrb[0].mxu0
      %v2100 = vadd.f32 0.0, %v2099
      %v2101 = vpop.f32.mrb[0].mxu0
      %2102 = vdwg.mxu0
      %2103 = vrot.lane.b32.xlu0 %v638, 120
      %v2104 = vpop.permute.xlu0 %2103
      %2105 = vrot.lane.b32.xlu0 %v643, 120
      %v2106 = vpop.permute.xlu0 %2105
      %2107 = vrot.lane.b32.xlu0 %v648, 120
      %v2108 = vpop.permute.xlu0 %2107
      %2109 = vrot.lane.b32.xlu0 %v653, 120
      %v2110 = vpop.permute.xlu0 %2109
      %2111 = vrot.lane.b32.xlu0 %v658, 120
      %v2112 = vpop.permute.xlu0 %2111
      %2113 = vrot.lane.b32.xlu0 %v638, 88
      %v2114 = vpop.permute.xlu0 %2113
      %2115 = vrot.lane.b32.xlu0 %v643, 88
      %v2116 = vpop.permute.xlu0 %2115
      %2117 = vrot.lane.b32.xlu0 %v648, 88
      %v2118 = vpop.permute.xlu0 %2117
      %2119 = vrot.lane.b32.xlu0 %v653, 88
      %v2120 = vpop.permute.xlu0 %2119
      %2121 = vrot.lane.b32.xlu0 %v658, 88
      %v2122 = vpop.permute.xlu0 %2121
      %v2123 = vsel %vm736, %v2104, 0
      %v2125 = vsel %vm736, %v2106, 0
      %v2127 = vsel %vm736, %v2108, 0
      %v2129 = vsel %vm736, %v2110, 0
      %v2131 = vsel %vm736, %v2112, 0
      %v2133 = vsel %vm736, %v2114, 0
      %v2135 = vsel %vm736, %v2116, 0
      %v2137 = vsel %vm736, %v2118, 0
      %v2139 = vsel %vm736, %v2120, 0
      %v2141 = vsel %vm736, %v2122, 0
      %2143 = vmatprep.subr.mxu0 0.0
      %2144 = vmatpush1.xpose.msra.mxu0 %v2133
      %2145 = vmatprep.subr.mxu0 0.0
      %2146 = vmatpush1.xpose.msra.mxu0 %v2135
      %2147 = vmatprep.subr.mxu0 0.0
      %2148 = vmatpush1.xpose.msra.mxu0 %v2137
      %2149 = vmatprep.subr.mxu0 0.0
      %2150 = vmatpush1.xpose.msra.mxu0 %v2139
      %2151 = vmatprep.subr.mxu0 0.0
      %2152 = vmatpush1.xpose.msra.mxu0 %v2141
      %2153 = vmatprep.subr.mxu0 0.0
      %2154 = vmatpush1.xpose.msra.mxu0 0.0
      %2155 = vmatprep.subr.mxu0 0.0
      %2156 = vmatpush1.xpose.msra.mxu0 0.0
      %2157 = vmatprep.subr.mxu0 0.0
      %2158 = vmatpush1.xpose.msra.mxu0 0.0
      %2159 = vmatprep.subr.mxu0 0.0
      %2160 = vmatpush1.xpose.msra.mxu0 0.0
      %2161 = vmatprep.subr.mxu0 0.0
      %2162 = vmatpush1.xpose.msra.mxu0 0.0
      %2163 = vmatprep.subr.mxu0 0.0
      %2164 = vmatpush1.xpose.msra.mxu0 0.0
      %2165 = vmatprep.subr.mxu0 0.0
      %2166 = vmatpush1.xpose.msra.mxu0 0.0
      %2167 = vmatprep.subr.mxu0 0.0
      %2168 = vmatpush1.xpose.msra.mxu0 0.0
      %2169 = vmatprep.subr.mxu0 0.0
      %2170 = vmatpush1.xpose.msra.mxu0 0.0
      %2171 = vmatprep.subr.mxu0 0.0
      %2172 = vmatpush1.xpose.msra.mxu0 0.0
      %2173 = vmatprep.subr.mxu0 0.0
      %2174 = vmatpush1.xpose.msra.mxu0 0.0
      %2175 = vmatprep.subr.mxu0 0.0
      %2176 = vmatpush1.xpose.msra.mxu0 0.0
      %2177 = vmatprep.subr.mxu0 0.0
      %2178 = vmatpush1.xpose.msra.mxu0 0.0
      %2179 = vmatprep.subr.mxu0 0.0
      %2180 = vmatpush1.xpose.msra.mxu0 0.0
      %2181 = vmatprep.subr.mxu0 0.0
      %2182 = vmatpush1.xpose.msra.mxu0 0.0
      %2183 = vmatprep.subr.mxu0 0.0
      %2184 = vmatpush1.xpose.msra.mxu0 0.0
      %2185 = vmatprep.subr.mxu0 0.0
      %2186 = vmatpush1.xpose.msra.mxu0 0.0
      %2187 = vmatprep.subr.mxu0 0.0
      %2188 = vmatpush1.xpose.msra.mxu0 0.0
      %2189 = vmatprep.subr.mxu0 0.0
      %2190 = vmatpush1.xpose.msra.mxu0 0.0
      %2191 = vmatprep.subr.mxu0 0.0
      %2192 = vmatpush1.xpose.msra.mxu0 0.0
      %2193 = vmatprep.subr.mxu0 0.0
      %2194 = vmatpush1.xpose.msra.mxu0 0.0
      %2195 = vmatprep.subr.mxu0 0.0
      %2196 = vmatpush1.xpose.msra.mxu0 0.0
      %2197 = vmatprep.subr.mxu0 0.0
      %2198 = vmatpush1.xpose.msra.mxu0 0.0
      %2199 = vmatprep.subr.mxu0 0.0
      %2200 = vmatpush1.xpose.msra.mxu0 0.0
      %2201 = vmatprep.subr.mxu0 0.0
      %2202 = vmatpush1.xpose.msra.mxu0 0.0
      %2203 = vmatprep.subr.mxu0 0.0
      %2204 = vmatpush1.xpose.msra.mxu0 0.0
      %2205 = vmatprep.subr.mxu0 0.0
      %2206 = vmatpush1.xpose.msra.mxu0 0.0
      %2207 = vmatprep.mubr.f32.mxu0 0.0
      %2208 = vmatmul.mubr.f32.gmra.mrb[0].mxu0 %v2123
      %v2209 = vpop.f32.mrb[0].mxu0
      %v2210 = vadd.f32 0.0, %v2209
      %v2211 = vpop.f32.mrb[0].mxu0
      %2212 = vmatprep.mubr.f32.mxu0 0.0
      %2213 = vmatmul.mubr.f32.gmra.mrb[0].mxu0 %v2125
      %v2214 = vpop.f32.mrb[0].mxu0
      %v2215 = vadd.f32 0.0, %v2214
      %v2216 = vpop.f32.mrb[0].mxu0
      %2217 = vmatprep.mubr.f32.mxu0 0.0
      %2218 = vmatmul.mubr.f32.gmra.mrb[0].mxu0 %v2127
      %v2219 = vpop.f32.mrb[0].mxu0
      %v2220 = vadd.f32 0.0, %v2219
      %v2221 = vpop.f32.mrb[0].mxu0
      %2222 = vmatprep.mubr.f32.mxu0 0.0
      %2223 = vmatmul.mubr.f32.gmra.mrb[0].mxu0 %v2129
      %v2224 = vpop.f32.mrb[0].mxu0
      %v2225 = vadd.f32 0.0, %v2224
      %v2226 = vpop.f32.mrb[0].mxu0
      %2227 = vmatprep.mubr.f32.mxu0 0.0
      %2228 = vmatmul.mubr.f32.gmra.mrb[0].mxu0 %v2131
      %v2229 = vpop.f32.mrb[0].mxu0
      %v2230 = vadd.f32 0.0, %v2229
      %v2231 = vpop.f32.mrb[0].mxu0
      %2232 = vdwg.mxu0
      %v2233 = vmul.f32 %v2080, 0.5
      %v2234 = vmul.f32 %v2085, 0.5
      %v2235 = vmul.f32 %v2090, 0.5
      %v2236 = vmul.f32 %v2095, 0.5
      %v2237 = vmul.f32 %v2100, 0.5
      %v2238 = vmul.f32 %v2210, 0.5
      %v2239 = vmul.f32 %v2215, 0.5
      %v2240 = vmul.f32 %v2220, 0.5
      %v2241 = vmul.f32 %v2225, 0.5
      %v2242 = vmul.f32 %v2230, 0.5
      %v2243 = vsel %vm711, %v2233, -1e+09
      %v2244 = vsel %vm712, %v2234, -1e+09
      %v2245 = vsel %vm713, %v2235, -1e+09
      %v2246 = vsel %vm714, %v2236, -1e+09
      %v2247 = vsel %vm715, %v2237, -1e+09
      %v2248 = vsel %vm716, %v2238, -1e+09
      %v2249 = vsel %vm717, %v2239, -1e+09
      %v2250 = vsel %vm718, %v2240, -1e+09
      %v2251 = vsel %vm719, %v2241, -1e+09
      %v2252 = vsel %vm720, %v2242, -1e+09
      %v2253 = vsel %vm992, %v2243, -inf
      %2254 = vmax.xlane.f32.xlu0 %v2253
      %v2255 = vpop.xlane.xlu0 %2254
      %v2256 = vsel %vm992, %v2244, -inf
      %2257 = vmax.xlane.f32.xlu0 %v2256
      %v2258 = vpop.xlane.xlu0 %2257
      %v2259 = vsel %vm992, %v2245, -inf
      %2260 = vmax.xlane.f32.xlu0 %v2259
      %v2261 = vpop.xlane.xlu0 %2260
      %v2262 = vsel %vm992, %v2246, -inf
      %2263 = vmax.xlane.f32.xlu0 %v2262
      %v2264 = vpop.xlane.xlu0 %2263
      %v2265 = vsel %vm992, %v2247, -inf
      %2266 = vmax.xlane.f32.xlu0 %v2265
      %v2267 = vpop.xlane.xlu0 %2266
      %v2268 = vsel %vm992, %v2248, -inf
      %2269 = vmax.xlane.f32.xlu0 %v2268
      %v2270 = vpop.xlane.xlu0 %2269
      %v2271 = vsel %vm992, %v2249, -inf
      %2272 = vmax.xlane.f32.xlu0 %v2271
      %v2273 = vpop.xlane.xlu0 %2272
      %v2274 = vsel %vm992, %v2250, -inf
      %2275 = vmax.xlane.f32.xlu0 %v2274
      %v2276 = vpop.xlane.xlu0 %2275
      %v2277 = vsel %vm992, %v2251, -inf
      %2278 = vmax.xlane.f32.xlu0 %v2277
      %v2279 = vpop.xlane.xlu0 %2278
      %v2280 = vsel %vm992, %v2252, -inf
      %2281 = vmax.xlane.f32.xlu0 %v2280
      %v2282 = vpop.xlane.xlu0 %2281
      %v2283 = vsub.f32 %v2243, %v2255
      %v2284 = vsub.f32 %v2244, %v2258
      %v2285 = vsub.f32 %v2245, %v2261
      %v2286 = vsub.f32 %v2246, %v2264
      %v2287 = vsub.f32 %v2247, %v2267
      %v2288 = vsub.f32 %v2248, %v2270
      %v2289 = vsub.f32 %v2249, %v2273
      %v2290 = vsub.f32 %v2250, %v2276
      %v2291 = vsub.f32 %v2251, %v2279
      %v2292 = vsub.f32 %v2252, %v2282
      %v2293 = vmul.f32 %v2283, 1.442695
      %v2294 = vpow.pop %v2293
      %v2295 = vmul.f32 %v2284, 1.442695
      %v2296 = vpow.pop %v2295
      %v2297 = vmul.f32 %v2285, 1.442695
      %v2298 = vpow.pop %v2297
      %v2299 = vmul.f32 %v2286, 1.442695
      %v2300 = vpow.pop %v2299
      %v2301 = vmul.f32 %v2287, 1.442695
      %v2302 = vpow.pop %v2301
      %v2303 = vmul.f32 %v2288, 1.442695
      %v2304 = vpow.pop %v2303
      %v2305 = vmul.f32 %v2289, 1.442695
      %v2306 = vpow.pop %v2305
      %v2307 = vmul.f32 %v2290, 1.442695
      %v2308 = vpow.pop %v2307
      %v2309 = vmul.f32 %v2291, 1.442695
      %v2310 = vpow.pop %v2309
      %v2311 = vmul.f32 %v2292, 1.442695
      %v2312 = vpow.pop %v2311
      %v2313 = vsel %vm992, %v2294, 0.0
      %2314 = vadd.xlane.f32.xlu0 %v2313
      %v2315 = vpop.xlane.xlu0 %2314
      %v2316 = vsel %vm992, %v2296, 0.0
      %2317 = vadd.xlane.f32.xlu0 %v2316
      %v2318 = vpop.xlane.xlu0 %2317
      %v2319 = vsel %vm992, %v2298, 0.0
      %2320 = vadd.xlane.f32.xlu0 %v2319
      %v2321 = vpop.xlane.xlu0 %2320
      %v2322 = vsel %vm992, %v2300, 0.0
      %2323 = vadd.xlane.f32.xlu0 %v2322
      %v2324 = vpop.xlane.xlu0 %2323
      %v2325 = vsel %vm992, %v2302, 0.0
      %2326 = vadd.xlane.f32.xlu0 %v2325
      %v2327 = vpop.xlane.xlu0 %2326
      %v2328 = vsel %vm992, %v2304, 0.0
      %2329 = vadd.xlane.f32.xlu0 %v2328
      %v2330 = vpop.xlane.xlu0 %2329
      %v2331 = vsel %vm992, %v2306, 0.0
      %2332 = vadd.xlane.f32.xlu0 %v2331
      %v2333 = vpop.xlane.xlu0 %2332
      %v2334 = vsel %vm992, %v2308, 0.0
      %2335 = vadd.xlane.f32.xlu0 %v2334
      %v2336 = vpop.xlane.xlu0 %2335
      %v2337 = vsel %vm992, %v2310, 0.0
      %2338 = vadd.xlane.f32.xlu0 %v2337
      %v2339 = vpop.xlane.xlu0 %2338
      %v2340 = vsel %vm992, %v2312, 0.0
      %2341 = vadd.xlane.f32.xlu0 %v2340
      %v2342 = vpop.xlane.xlu0 %2341
      %v2343 = vrcp.pop %v2315
      %v2344 = vrcp.pop %v2318
      %v2345 = vrcp.pop %v2321
      %v2346 = vrcp.pop %v2324
      %v2347 = vrcp.pop %v2327
      %v2348 = vrcp.pop %v2330
      %v2349 = vrcp.pop %v2333
      %v2350 = vrcp.pop %v2336
      %v2351 = vrcp.pop %v2339
      %v2352 = vrcp.pop %v2342
      %v2353 = vmul.f32 %v2294, %v2343
      %v2354 = vmul.f32 %v2296, %v2344
      %v2355 = vmul.f32 %v2298, %v2345
      %v2356 = vmul.f32 %v2300, %v2346
      %v2357 = vmul.f32 %v2302, %v2347
      %v2358 = vmul.f32 %v2304, %v2348
      %v2359 = vmul.f32 %v2306, %v2349
      %v2360 = vmul.f32 %v2308, %v2350
      %v2361 = vmul.f32 %v2310, %v2351
      %v2362 = vmul.f32 %v2312, %v2352
      %2363 = vrot.lane.b32.xlu0 %v613, 56
      %v2364 = vpop.permute.xlu0 %2363
      %2365 = vrot.lane.b32.xlu0 %v618, 56
      %v2366 = vpop.permute.xlu0 %2365
      %2367 = vrot.lane.b32.xlu0 %v623, 56
      %v2368 = vpop.permute.xlu0 %2367
      %2369 = vrot.lane.b32.xlu0 %v628, 56
      %v2370 = vpop.permute.xlu0 %2369
      %2371 = vrot.lane.b32.xlu0 %v633, 56
      %v2372 = vpop.permute.xlu0 %2371
      %v2379 = vsel %vm992, %v2353, 0
      %v2382 = vsel %vm992, %v2354, 0
      %v2385 = vsel %vm992, %v2355, 0
      %v2388 = vsel %vm992, %v2356, 0
      %v2391 = vsel %vm992, %v2357, 0
      %2393 = vmatprep.subr.mxu0 0.0
      %2394 = vmatpush1.msra.mxu0 %v2364
      %2395 = vmatprep.subr.mxu0 0.0
      %2396 = vmatpush1.msra.mxu0 %v2366
      %2397 = vmatprep.subr.mxu0 0.0
      %2398 = vmatpush1.msra.mxu0 %v2368
      %2399 = vmatprep.subr.mxu0 0.0
      %2400 = vmatpush1.msra.mxu0 %v2370
      %2401 = vmatprep.subr.mxu0 0.0
      %2402 = vmatpush1.msra.mxu0 %v2372
      %2403 = vmatprep.subr.mxu0 0.0
      %2404 = vmatpush1.msra.mxu0 0.0
      %2405 = vmatprep.subr.mxu0 0.0
      %2406 = vmatpush1.msra.mxu0 0.0
      %2407 = vmatprep.subr.mxu0 0.0
      %2408 = vmatpush1.msra.mxu0 0.0
      %2409 = vmatprep.subr.mxu0 0.0
      %2410 = vmatpush1.msra.mxu0 0.0
      %2411 = vmatprep.subr.mxu0 0.0
      %2412 = vmatpush1.msra.mxu0 0.0
      %2413 = vmatprep.subr.mxu0 0.0
      %2414 = vmatpush1.msra.mxu0 0.0
      %2415 = vmatprep.subr.mxu0 0.0
      %2416 = vmatpush1.msra.mxu0 0.0
      %2417 = vmatprep.subr.mxu0 0.0
      %2418 = vmatpush1.msra.mxu0 0.0
      %2419 = vmatprep.subr.mxu0 0.0
      %2420 = vmatpush1.msra.mxu0 0.0
      %2421 = vmatprep.subr.mxu0 0.0
      %2422 = vmatpush1.msra.mxu0 0.0
      %2423 = vmatprep.subr.mxu0 0.0
      %2424 = vmatpush1.msra.mxu0 0.0
      %2425 = vmatprep.subr.mxu0 0.0
      %2426 = vmatpush1.msra.mxu0 0.0
      %2427 = vmatprep.subr.mxu0 0.0
      %2428 = vmatpush1.msra.mxu0 0.0
      %2429 = vmatprep.subr.mxu0 0.0
      %2430 = vmatpush1.msra.mxu0 0.0
      %2431 = vmatprep.subr.mxu0 0.0
      %2432 = vmatpush1.msra.mxu0 0.0
      %2433 = vmatprep.subr.mxu0 0.0
      %2434 = vmatpush1.msra.mxu0 0.0
      %2435 = vmatprep.subr.mxu0 0.0
      %2436 = vmatpush1.msra.mxu0 0.0
      %2437 = vmatprep.subr.mxu0 0.0
      %2438 = vmatpush1.msra.mxu0 0.0
      %2439 = vmatprep.subr.mxu0 0.0
      %2440 = vmatpush1.msra.mxu0 0.0
      %2441 = vmatprep.subr.mxu0 0.0
      %2442 = vmatpush1.msra.mxu0 0.0
      %2443 = vmatprep.subr.mxu0 0.0
      %2444 = vmatpush1.msra.mxu0 0.0
      %2445 = vmatprep.subr.mxu0 0.0
      %2446 = vmatpush1.msra.mxu0 0.0
      %2447 = vmatprep.subr.mxu0 0.0
      %2448 = vmatpush1.msra.mxu0 0.0
      %2449 = vmatprep.subr.mxu0 0.0
      %2450 = vmatpush1.msra.mxu0 0.0
      %2451 = vmatprep.subr.mxu0 0.0
      %2452 = vmatpush1.msra.mxu0 0.0
      %2453 = vmatprep.subr.mxu0 0.0
      %2454 = vmatpush1.msra.mxu0 0.0
      %2455 = vmatprep.subr.mxu0 0.0
      %2456 = vmatpush1.msra.mxu0 0.0
      %2457 = vmatprep.mubr.f32.mxu0 0.0
      %2458 = vmatmul.mubr.f32.gmra.mrb[0].mxu0 %v2379
      %v2459 = vpop.f32.mrb[0].mxu0
      %v2460 = vadd.f32 0.0, %v2459
      %v2461 = vpop.f32.mrb[0].mxu0
      %2462 = vmatprep.mubr.f32.mxu0 0.0
      %2463 = vmatmul.mubr.f32.gmra.mrb[0].mxu0 %v2382
      %v2464 = vpop.f32.mrb[0].mxu0
      %v2465 = vadd.f32 0.0, %v2464
      %v2466 = vpop.f32.mrb[0].mxu0
      %2467 = vmatprep.mubr.f32.mxu0 0.0
      %2468 = vmatmul.mubr.f32.gmra.mrb[0].mxu0 %v2385
      %v2469 = vpop.f32.mrb[0].mxu0
      %v2470 = vadd.f32 0.0, %v2469
      %v2471 = vpop.f32.mrb[0].mxu0
      %2472 = vmatprep.mubr.f32.mxu0 0.0
      %2473 = vmatmul.mubr.f32.gmra.mrb[0].mxu0 %v2388
      %v2474 = vpop.f32.mrb[0].mxu0
      %v2475 = vadd.f32 0.0, %v2474
      %v2476 = vpop.f32.mrb[0].mxu0
      %2477 = vmatprep.mubr.f32.mxu0 0.0
      %2478 = vmatmul.mubr.f32.gmra.mrb[0].mxu0 %v2391
      %v2479 = vpop.f32.mrb[0].mxu0
      %v2480 = vadd.f32 0.0, %v2479
      %v2481 = vpop.f32.mrb[0].mxu0
      %2482 = vdwg.mxu0
      %2483 = vrot.lane.b32.xlu0 %v638, 56
      %v2484 = vpop.permute.xlu0 %2483
      %2485 = vrot.lane.b32.xlu0 %v643, 56
      %v2486 = vpop.permute.xlu0 %2485
      %2487 = vrot.lane.b32.xlu0 %v648, 56
      %v2488 = vpop.permute.xlu0 %2487
      %2489 = vrot.lane.b32.xlu0 %v653, 56
      %v2490 = vpop.permute.xlu0 %2489
      %2491 = vrot.lane.b32.xlu0 %v658, 56
      %v2492 = vpop.permute.xlu0 %2491
      %v2499 = vsel %vm992, %v2358, 0
      %v2502 = vsel %vm992, %v2359, 0
      %v2505 = vsel %vm992, %v2360, 0
      %v2508 = vsel %vm992, %v2361, 0
      %v2511 = vsel %vm992, %v2362, 0
      %2513 = vmatprep.subr.mxu0 0.0
      %2514 = vmatpush1.msra.mxu0 %v2484
      %2515 = vmatprep.subr.mxu0 0.0
      %2516 = vmatpush1.msra.mxu0 %v2486
      %2517 = vmatprep.subr.mxu0 0.0
      %2518 = vmatpush1.msra.mxu0 %v2488
      %2519 = vmatprep.subr.mxu0 0.0
      %2520 = vmatpush1.msra.mxu0 %v2490
      %2521 = vmatprep.subr.mxu0 0.0
      %2522 = vmatpush1.msra.mxu0 %v2492
      %2523 = vmatprep.subr.mxu0 0.0
      %2524 = vmatpush1.msra.mxu0 0.0
      %2525 = vmatprep.subr.mxu0 0.0
      %2526 = vmatpush1.msra.mxu0 0.0
      %2527 = vmatprep.subr.mxu0 0.0
      %2528 = vmatpush1.msra.mxu0 0.0
      %2529 = vmatprep.subr.mxu0 0.0
      %2530 = vmatpush1.msra.mxu0 0.0
      %2531 = vmatprep.subr.mxu0 0.0
      %2532 = vmatpush1.msra.mxu0 0.0
      %2533 = vmatprep.subr.mxu0 0.0
      %2534 = vmatpush1.msra.mxu0 0.0
      %2535 = vmatprep.subr.mxu0 0.0
      %2536 = vmatpush1.msra.mxu0 0.0
      %2537 = vmatprep.subr.mxu0 0.0
      %2538 = vmatpush1.msra.mxu0 0.0
      %2539 = vmatprep.subr.mxu0 0.0
      %2540 = vmatpush1.msra.mxu0 0.0
      %2541 = vmatprep.subr.mxu0 0.0
      %2542 = vmatpush1.msra.mxu0 0.0
      %2543 = vmatprep.subr.mxu0 0.0
      %2544 = vmatpush1.msra.mxu0 0.0
      %2545 = vmatprep.subr.mxu0 0.0
      %2546 = vmatpush1.msra.mxu0 0.0
      %2547 = vmatprep.subr.mxu0 0.0
      %2548 = vmatpush1.msra.mxu0 0.0
      %2549 = vmatprep.subr.mxu0 0.0
      %2550 = vmatpush1.msra.mxu0 0.0
      %2551 = vmatprep.subr.mxu0 0.0
      %2552 = vmatpush1.msra.mxu0 0.0
      %2553 = vmatprep.subr.mxu0 0.0
      %2554 = vmatpush1.msra.mxu0 0.0
      %2555 = vmatprep.subr.mxu0 0.0
      %2556 = vmatpush1.msra.mxu0 0.0
      %2557 = vmatprep.subr.mxu0 0.0
      %2558 = vmatpush1.msra.mxu0 0.0
      %2559 = vmatprep.subr.mxu0 0.0
      %2560 = vmatpush1.msra.mxu0 0.0
      %2561 = vmatprep.subr.mxu0 0.0
      %2562 = vmatpush1.msra.mxu0 0.0
      %2563 = vmatprep.subr.mxu0 0.0
      %2564 = vmatpush1.msra.mxu0 0.0
      %2565 = vmatprep.subr.mxu0 0.0
      %2566 = vmatpush1.msra.mxu0 0.0
      %2567 = vmatprep.subr.mxu0 0.0
      %2568 = vmatpush1.msra.mxu0 0.0
      %2569 = vmatprep.subr.mxu0 0.0
      %2570 = vmatpush1.msra.mxu0 0.0
      %2571 = vmatprep.subr.mxu0 0.0
      %2572 = vmatpush1.msra.mxu0 0.0
      %2573 = vmatprep.subr.mxu0 0.0
      %2574 = vmatpush1.msra.mxu0 0.0
      %2575 = vmatprep.subr.mxu0 0.0
      %2576 = vmatpush1.msra.mxu0 0.0
      %2577 = vmatprep.mubr.f32.mxu0 0.0
      %2578 = vmatmul.mubr.f32.gmra.mrb[0].mxu0 %v2499
      %v2579 = vpop.f32.mrb[0].mxu0
      %v2580 = vadd.f32 0.0, %v2579
      %v2581 = vpop.f32.mrb[0].mxu0
      %2582 = vmatprep.mubr.f32.mxu0 0.0
      %2583 = vmatmul.mubr.f32.gmra.mrb[0].mxu0 %v2502
      %v2584 = vpop.f32.mrb[0].mxu0
      %v2585 = vadd.f32 0.0, %v2584
      %v2586 = vpop.f32.mrb[0].mxu0
      %2587 = vmatprep.mubr.f32.mxu0 0.0
      %2588 = vmatmul.mubr.f32.gmra.mrb[0].mxu0 %v2505
      %v2589 = vpop.f32.mrb[0].mxu0
      %v2590 = vadd.f32 0.0, %v2589
      %v2591 = vpop.f32.mrb[0].mxu0
      %2592 = vmatprep.mubr.f32.mxu0 0.0
      %2593 = vmatmul.mubr.f32.gmra.mrb[0].mxu0 %v2508
      %v2594 = vpop.f32.mrb[0].mxu0
      %v2595 = vadd.f32 0.0, %v2594
      %v2596 = vpop.f32.mrb[0].mxu0
      %2597 = vmatprep.mubr.f32.mxu0 0.0
      %2598 = vmatmul.mubr.f32.gmra.mrb[0].mxu0 %v2511
      %v2599 = vpop.f32.mrb[0].mxu0
      %v2600 = vadd.f32 0.0, %v2599
      %v2601 = vpop.f32.mrb[0].mxu0
      %2602 = vdwg.mxu0
      %2603 = vrot.lane.b32.xlu0 %v613, 116
      %v2604 = vpop.permute.xlu0 %2603
      %2605 = vrot.lane.b32.xlu0 %v618, 116
      %v2606 = vpop.permute.xlu0 %2605
      %2607 = vrot.lane.b32.xlu0 %v623, 116
      %v2608 = vpop.permute.xlu0 %2607
      %2609 = vrot.lane.b32.xlu0 %v628, 116
      %v2610 = vpop.permute.xlu0 %2609
      %2611 = vrot.lane.b32.xlu0 %v633, 116
      %v2612 = vpop.permute.xlu0 %2611
      %2613 = vrot.lane.b32.xlu0 %v613, 84
      %v2614 = vpop.permute.xlu0 %2613
      %2615 = vrot.lane.b32.xlu0 %v618, 84
      %v2616 = vpop.permute.xlu0 %2615
      %2617 = vrot.lane.b32.xlu0 %v623, 84
      %v2618 = vpop.permute.xlu0 %2617
      %2619 = vrot.lane.b32.xlu0 %v628, 84
      %v2620 = vpop.permute.xlu0 %2619
      %2621 = vrot.lane.b32.xlu0 %v633, 84
      %v2622 = vpop.permute.xlu0 %2621
      %v2623 = vsel %vm736, %v2604, 0
      %v2625 = vsel %vm736, %v2606, 0
      %v2627 = vsel %vm736, %v2608, 0
      %v2629 = vsel %vm736, %v2610, 0
      %v2631 = vsel %vm736, %v2612, 0
      %v2633 = vsel %vm736, %v2614, 0
      %v2635 = vsel %vm736, %v2616, 0
      %v2637 = vsel %vm736, %v2618, 0
      %v2639 = vsel %vm736, %v2620, 0
      %v2641 = vsel %vm736, %v2622, 0
      %2643 = vmatprep.subr.mxu0 0.0
      %2644 = vmatpush1.xpose.msra.mxu0 %v2633
      %2645 = vmatprep.subr.mxu0 0.0
      %2646 = vmatpush1.xpose.msra.mxu0 %v2635
      %2647 = vmatprep.subr.mxu0 0.0
      %2648 = vmatpush1.xpose.msra.mxu0 %v2637
      %2649 = vmatprep.subr.mxu0 0.0
      %2650 = vmatpush1.xpose.msra.mxu0 %v2639
      %2651 = vmatprep.subr.mxu0 0.0
      %2652 = vmatpush1.xpose.msra.mxu0 %v2641
      %2653 = vmatprep.subr.mxu0 0.0
      %2654 = vmatpush1.xpose.msra.mxu0 0.0
      %2655 = vmatprep.subr.mxu0 0.0
      %2656 = vmatpush1.xpose.msra.mxu0 0.0
      %2657 = vmatprep.subr.mxu0 0.0
      %2658 = vmatpush1.xpose.msra.mxu0 0.0
      %2659 = vmatprep.subr.mxu0 0.0
      %2660 = vmatpush1.xpose.msra.mxu0 0.0
      %2661 = vmatprep.subr.mxu0 0.0
      %2662 = vmatpush1.xpose.msra.mxu0 0.0
      %2663 = vmatprep.subr.mxu0 0.0
      %2664 = vmatpush1.xpose.msra.mxu0 0.0
      %2665 = vmatprep.subr.mxu0 0.0
      %2666 = vmatpush1.xpose.msra.mxu0 0.0
      %2667 = vmatprep.subr.mxu0 0.0
      %2668 = vmatpush1.xpose.msra.mxu0 0.0
      %2669 = vmatprep.subr.mxu0 0.0
      %2670 = vmatpush1.xpose.msra.mxu0 0.0
      %2671 = vmatprep.subr.mxu0 0.0
      %2672 = vmatpush1.xpose.msra.mxu0 0.0
      %2673 = vmatprep.subr.mxu0 0.0
      %2674 = vmatpush1.xpose.msra.mxu0 0.0
      %2675 = vmatprep.subr.mxu0 0.0
      %2676 = vmatpush1.xpose.msra.mxu0 0.0
      %2677 = vmatprep.subr.mxu0 0.0
      %2678 = vmatpush1.xpose.msra.mxu0 0.0
      %2679 = vmatprep.subr.mxu0 0.0
      %2680 = vmatpush1.xpose.msra.mxu0 0.0
      %2681 = vmatprep.subr.mxu0 0.0
      %2682 = vmatpush1.xpose.msra.mxu0 0.0
      %2683 = vmatprep.subr.mxu0 0.0
      %2684 = vmatpush1.xpose.msra.mxu0 0.0
      %2685 = vmatprep.subr.mxu0 0.0
      %2686 = vmatpush1.xpose.msra.mxu0 0.0
      %2687 = vmatprep.subr.mxu0 0.0
      %2688 = vmatpush1.xpose.msra.mxu0 0.0
      %2689 = vmatprep.subr.mxu0 0.0
      %2690 = vmatpush1.xpose.msra.mxu0 0.0
      %2691 = vmatprep.subr.mxu0 0.0
      %2692 = vmatpush1.xpose.msra.mxu0 0.0
      %2693 = vmatprep.subr.mxu0 0.0
      %2694 = vmatpush1.xpose.msra.mxu0 0.0
      %2695 = vmatprep.subr.mxu0 0.0
      %2696 = vmatpush1.xpose.msra.mxu0 0.0
      %2697 = vmatprep.subr.mxu0 0.0
      %2698 = vmatpush1.xpose.msra.mxu0 0.0
      %2699 = vmatprep.subr.mxu0 0.0
      %2700 = vmatpush1.xpose.msra.mxu0 0.0
      %2701 = vmatprep.subr.mxu0 0.0
      %2702 = vmatpush1.xpose.msra.mxu0 0.0
      %2703 = vmatprep.subr.mxu0 0.0
      %2704 = vmatpush1.xpose.msra.mxu0 0.0
      %2705 = vmatprep.subr.mxu0 0.0
      %2706 = vmatpush1.xpose.msra.mxu0 0.0
      %2707 = vmatprep.mubr.f32.mxu0 0.0
      %2708 = vmatmul.mubr.f32.gmra.mrb[0].mxu0 %v2623
      %v2709 = vpop.f32.mrb[0].mxu0
      %v2710 = vadd.f32 0.0, %v2709
      %v2711 = vpop.f32.mrb[0].mxu0
      %2712 = vmatprep.mubr.f32.mxu0 0.0
      %2713 = vmatmul.mubr.f32.gmra.mrb[0].mxu0 %v2625
      %v2714 = vpop.f32.mrb[0].mxu0
      %v2715 = vadd.f32 0.0, %v2714
      %v2716 = vpop.f32.mrb[0].mxu0
      %2717 = vmatprep.mubr.f32.mxu0 0.0
      %2718 = vmatmul.mubr.f32.gmra.mrb[0].mxu0 %v2627
      %v2719 = vpop.f32.mrb[0].mxu0
      %v2720 = vadd.f32 0.0, %v2719
      %v2721 = vpop.f32.mrb[0].mxu0
      %2722 = vmatprep.mubr.f32.mxu0 0.0
      %2723 = vmatmul.mubr.f32.gmra.mrb[0].mxu0 %v2629
      %v2724 = vpop.f32.mrb[0].mxu0
      %v2725 = vadd.f32 0.0, %v2724
      %v2726 = vpop.f32.mrb[0].mxu0
      %2727 = vmatprep.mubr.f32.mxu0 0.0
      %2728 = vmatmul.mubr.f32.gmra.mrb[0].mxu0 %v2631
      %v2729 = vpop.f32.mrb[0].mxu0
      %v2730 = vadd.f32 0.0, %v2729
      %v2731 = vpop.f32.mrb[0].mxu0
      %2732 = vdwg.mxu0
      %2733 = vrot.lane.b32.xlu0 %v638, 116
      %v2734 = vpop.permute.xlu0 %2733
      %2735 = vrot.lane.b32.xlu0 %v643, 116
      %v2736 = vpop.permute.xlu0 %2735
      %2737 = vrot.lane.b32.xlu0 %v648, 116
      %v2738 = vpop.permute.xlu0 %2737
      %2739 = vrot.lane.b32.xlu0 %v653, 116
      %v2740 = vpop.permute.xlu0 %2739
      %2741 = vrot.lane.b32.xlu0 %v658, 116
      %v2742 = vpop.permute.xlu0 %2741
      %2743 = vrot.lane.b32.xlu0 %v638, 84
      %v2744 = vpop.permute.xlu0 %2743
      %2745 = vrot.lane.b32.xlu0 %v643, 84
      %v2746 = vpop.permute.xlu0 %2745
      %2747 = vrot.lane.b32.xlu0 %v648, 84
      %v2748 = vpop.permute.xlu0 %2747
      %2749 = vrot.lane.b32.xlu0 %v653, 84
      %v2750 = vpop.permute.xlu0 %2749
      %2751 = vrot.lane.b32.xlu0 %v658, 84
      %v2752 = vpop.permute.xlu0 %2751
      %v2753 = vsel %vm736, %v2734, 0
      %v2755 = vsel %vm736, %v2736, 0
      %v2757 = vsel %vm736, %v2738, 0
      %v2759 = vsel %vm736, %v2740, 0
      %v2761 = vsel %vm736, %v2742, 0
      %v2763 = vsel %vm736, %v2744, 0
      %v2765 = vsel %vm736, %v2746, 0
      %v2767 = vsel %vm736, %v2748, 0
      %v2769 = vsel %vm736, %v2750, 0
      %v2771 = vsel %vm736, %v2752, 0
      %2773 = vmatprep.subr.mxu0 0.0
      %2774 = vmatpush1.xpose.msra.mxu0 %v2763
      %2775 = vmatprep.subr.mxu0 0.0
      %2776 = vmatpush1.xpose.msra.mxu0 %v2765
      %2777 = vmatprep.subr.mxu0 0.0
      %2778 = vmatpush1.xpose.msra.mxu0 %v2767
      %2779 = vmatprep.subr.mxu0 0.0
      %2780 = vmatpush1.xpose.msra.mxu0 %v2769
      %2781 = vmatprep.subr.mxu0 0.0
      %2782 = vmatpush1.xpose.msra.mxu0 %v2771
      %2783 = vmatprep.subr.mxu0 0.0
      %2784 = vmatpush1.xpose.msra.mxu0 0.0
      %2785 = vmatprep.subr.mxu0 0.0
      %2786 = vmatpush1.xpose.msra.mxu0 0.0
      %2787 = vmatprep.subr.mxu0 0.0
      %2788 = vmatpush1.xpose.msra.mxu0 0.0
      %2789 = vmatprep.subr.mxu0 0.0
      %2790 = vmatpush1.xpose.msra.mxu0 0.0
      %2791 = vmatprep.subr.mxu0 0.0
      %2792 = vmatpush1.xpose.msra.mxu0 0.0
      %2793 = vmatprep.subr.mxu0 0.0
      %2794 = vmatpush1.xpose.msra.mxu0 0.0
      %2795 = vmatprep.subr.mxu0 0.0
      %2796 = vmatpush1.xpose.msra.mxu0 0.0
      %2797 = vmatprep.subr.mxu0 0.0
      %2798 = vmatpush1.xpose.msra.mxu0 0.0
      %2799 = vmatprep.subr.mxu0 0.0
      %2800 = vmatpush1.xpose.msra.mxu0 0.0
      %2801 = vmatprep.subr.mxu0 0.0
      %2802 = vmatpush1.xpose.msra.mxu0 0.0
      %2803 = vmatprep.subr.mxu0 0.0
      %2804 = vmatpush1.xpose.msra.mxu0 0.0
      %2805 = vmatprep.subr.mxu0 0.0
      %2806 = vmatpush1.xpose.msra.mxu0 0.0
      %2807 = vmatprep.subr.mxu0 0.0
      %2808 = vmatpush1.xpose.msra.mxu0 0.0
      %2809 = vmatprep.subr.mxu0 0.0
      %2810 = vmatpush1.xpose.msra.mxu0 0.0
      %2811 = vmatprep.subr.mxu0 0.0
      %2812 = vmatpush1.xpose.msra.mxu0 0.0
      %2813 = vmatprep.subr.mxu0 0.0
      %2814 = vmatpush1.xpose.msra.mxu0 0.0
      %2815 = vmatprep.subr.mxu0 0.0
      %2816 = vmatpush1.xpose.msra.mxu0 0.0
      %2817 = vmatprep.subr.mxu0 0.0
      %2818 = vmatpush1.xpose.msra.mxu0 0.0
      %2819 = vmatprep.subr.mxu0 0.0
      %2820 = vmatpush1.xpose.msra.mxu0 0.0
      %2821 = vmatprep.subr.mxu0 0.0
      %2822 = vmatpush1.xpose.msra.mxu0 0.0
      %2823 = vmatprep.subr.mxu0 0.0
      %2824 = vmatpush1.xpose.msra.mxu0 0.0
      %2825 = vmatprep.subr.mxu0 0.0
      %2826 = vmatpush1.xpose.msra.mxu0 0.0
      %2827 = vmatprep.subr.mxu0 0.0
      %2828 = vmatpush1.xpose.msra.mxu0 0.0
      %2829 = vmatprep.subr.mxu0 0.0
      %2830 = vmatpush1.xpose.msra.mxu0 0.0
      %2831 = vmatprep.subr.mxu0 0.0
      %2832 = vmatpush1.xpose.msra.mxu0 0.0
      %2833 = vmatprep.subr.mxu0 0.0
      %2834 = vmatpush1.xpose.msra.mxu0 0.0
      %2835 = vmatprep.subr.mxu0 0.0
      %2836 = vmatpush1.xpose.msra.mxu0 0.0
      %2837 = vmatprep.mubr.f32.mxu0 0.0
      %2838 = vmatmul.mubr.f32.gmra.mrb[0].mxu0 %v2753
      %v2839 = vpop.f32.mrb[0].mxu0
      %v2840 = vadd.f32 0.0, %v2839
      %v2841 = vpop.f32.mrb[0].mxu0
      %2842 = vmatprep.mubr.f32.mxu0 0.0
      %2843 = vmatmul.mubr.f32.gmra.mrb[0].mxu0 %v2755
      %v2844 = vpop.f32.mrb[0].mxu0
      %v2845 = vadd.f32 0.0, %v2844
      %v2846 = vpop.f32.mrb[0].mxu0
      %2847 = vmatprep.mubr.f32.mxu0 0.0
      %2848 = vmatmul.mubr.f32.gmra.mrb[0].mxu0 %v2757
      %v2849 = vpop.f32.mrb[0].mxu0
      %v2850 = vadd.f32 0.0, %v2849
      %v2851 = vpop.f32.mrb[0].mxu0
      %2852 = vmatprep.mubr.f32.mxu0 0.0
      %2853 = vmatmul.mubr.f32.gmra.mrb[0].mxu0 %v2759
      %v2854 = vpop.f32.mrb[0].mxu0
      %v2855 = vadd.f32 0.0, %v2854
      %v2856 = vpop.f32.mrb[0].mxu0
      %2857 = vmatprep.mubr.f32.mxu0 0.0
      %2858 = vmatmul.mubr.f32.gmra.mrb[0].mxu0 %v2761
      %v2859 = vpop.f32.mrb[0].mxu0
      %v2860 = vadd.f32 0.0, %v2859
      %v2861 = vpop.f32.mrb[0].mxu0
      %2862 = vdwg.mxu0
      %v2863 = vmul.f32 %v2710, 0.5
      %v2864 = vmul.f32 %v2715, 0.5
      %v2865 = vmul.f32 %v2720, 0.5
      %v2866 = vmul.f32 %v2725, 0.5
      %v2867 = vmul.f32 %v2730, 0.5
      %v2868 = vmul.f32 %v2840, 0.5
      %v2869 = vmul.f32 %v2845, 0.5
      %v2870 = vmul.f32 %v2850, 0.5
      %v2871 = vmul.f32 %v2855, 0.5
      %v2872 = vmul.f32 %v2860, 0.5
      %v2873 = vsel %vm711, %v2863, -1e+09
      %v2874 = vsel %vm712, %v2864, -1e+09
      %v2875 = vsel %vm713, %v2865, -1e+09
      %v2876 = vsel %vm714, %v2866, -1e+09
      %v2877 = vsel %vm715, %v2867, -1e+09
      %v2878 = vsel %vm716, %v2868, -1e+09
      %v2879 = vsel %vm717, %v2869, -1e+09
      %v2880 = vsel %vm718, %v2870, -1e+09
      %v2881 = vsel %vm719, %v2871, -1e+09
      %v2882 = vsel %vm720, %v2872, -1e+09
      %v2883 = vsel %vm992, %v2873, -inf
      %2884 = vmax.xlane.f32.xlu0 %v2883
      %v2885 = vpop.xlane.xlu0 %2884
      %v2886 = vsel %vm992, %v2874, -inf
      %2887 = vmax.xlane.f32.xlu0 %v2886
      %v2888 = vpop.xlane.xlu0 %2887
      %v2889 = vsel %vm992, %v2875, -inf
      %2890 = vmax.xlane.f32.xlu0 %v2889
      %v2891 = vpop.xlane.xlu0 %2890
      %v2892 = vsel %vm992, %v2876, -inf
      %2893 = vmax.xlane.f32.xlu0 %v2892
      %v2894 = vpop.xlane.xlu0 %2893
      %v2895 = vsel %vm992, %v2877, -inf
      %2896 = vmax.xlane.f32.xlu0 %v2895
      %v2897 = vpop.xlane.xlu0 %2896
      %v2898 = vsel %vm992, %v2878, -inf
      %2899 = vmax.xlane.f32.xlu0 %v2898
      %v2900 = vpop.xlane.xlu0 %2899
      %v2901 = vsel %vm992, %v2879, -inf
      %2902 = vmax.xlane.f32.xlu0 %v2901
      %v2903 = vpop.xlane.xlu0 %2902
      %v2904 = vsel %vm992, %v2880, -inf
      %2905 = vmax.xlane.f32.xlu0 %v2904
      %v2906 = vpop.xlane.xlu0 %2905
      %v2907 = vsel %vm992, %v2881, -inf
      %2908 = vmax.xlane.f32.xlu0 %v2907
      %v2909 = vpop.xlane.xlu0 %2908
      %v2910 = vsel %vm992, %v2882, -inf
      %2911 = vmax.xlane.f32.xlu0 %v2910
      %v2912 = vpop.xlane.xlu0 %2911
      %v2913 = vsub.f32 %v2873, %v2885
      %v2914 = vsub.f32 %v2874, %v2888
      %v2915 = vsub.f32 %v2875, %v2891
      %v2916 = vsub.f32 %v2876, %v2894
      %v2917 = vsub.f32 %v2877, %v2897
      %v2918 = vsub.f32 %v2878, %v2900
      %v2919 = vsub.f32 %v2879, %v2903
      %v2920 = vsub.f32 %v2880, %v2906
      %v2921 = vsub.f32 %v2881, %v2909
      %v2922 = vsub.f32 %v2882, %v2912
      %v2923 = vmul.f32 %v2913, 1.442695
      %v2924 = vpow.pop %v2923
      %v2925 = vmul.f32 %v2914, 1.442695
      %v2926 = vpow.pop %v2925
      %v2927 = vmul.f32 %v2915, 1.442695
      %v2928 = vpow.pop %v2927
      %v2929 = vmul.f32 %v2916, 1.442695
      %v2930 = vpow.pop %v2929
      %v2931 = vmul.f32 %v2917, 1.442695
      %v2932 = vpow.pop %v2931
      %v2933 = vmul.f32 %v2918, 1.442695
      %v2934 = vpow.pop %v2933
      %v2935 = vmul.f32 %v2919, 1.442695
      %v2936 = vpow.pop %v2935
      %v2937 = vmul.f32 %v2920, 1.442695
      %v2938 = vpow.pop %v2937
      %v2939 = vmul.f32 %v2921, 1.442695
      %v2940 = vpow.pop %v2939
      %v2941 = vmul.f32 %v2922, 1.442695
      %v2942 = vpow.pop %v2941
      %v2943 = vsel %vm992, %v2924, 0.0
      %2944 = vadd.xlane.f32.xlu0 %v2943
      %v2945 = vpop.xlane.xlu0 %2944
      %v2946 = vsel %vm992, %v2926, 0.0
      %2947 = vadd.xlane.f32.xlu0 %v2946
      %v2948 = vpop.xlane.xlu0 %2947
      %v2949 = vsel %vm992, %v2928, 0.0
      %2950 = vadd.xlane.f32.xlu0 %v2949
      %v2951 = vpop.xlane.xlu0 %2950
      %v2952 = vsel %vm992, %v2930, 0.0
      %2953 = vadd.xlane.f32.xlu0 %v2952
      %v2954 = vpop.xlane.xlu0 %2953
      %v2955 = vsel %vm992, %v2932, 0.0
      %2956 = vadd.xlane.f32.xlu0 %v2955
      %v2957 = vpop.xlane.xlu0 %2956
      %v2958 = vsel %vm992, %v2934, 0.0
      %2959 = vadd.xlane.f32.xlu0 %v2958
      %v2960 = vpop.xlane.xlu0 %2959
      %v2961 = vsel %vm992, %v2936, 0.0
      %2962 = vadd.xlane.f32.xlu0 %v2961
      %v2963 = vpop.xlane.xlu0 %2962
      %v2964 = vsel %vm992, %v2938, 0.0
      %2965 = vadd.xlane.f32.xlu0 %v2964
      %v2966 = vpop.xlane.xlu0 %2965
      %v2967 = vsel %vm992, %v2940, 0.0
      %2968 = vadd.xlane.f32.xlu0 %v2967
      %v2969 = vpop.xlane.xlu0 %2968
      %v2970 = vsel %vm992, %v2942, 0.0
      %2971 = vadd.xlane.f32.xlu0 %v2970
      %v2972 = vpop.xlane.xlu0 %2971
      %v2973 = vrcp.pop %v2945
      %v2974 = vrcp.pop %v2948
      %v2975 = vrcp.pop %v2951
      %v2976 = vrcp.pop %v2954
      %v2977 = vrcp.pop %v2957
      %v2978 = vrcp.pop %v2960
      %v2979 = vrcp.pop %v2963
      %v2980 = vrcp.pop %v2966
      %v2981 = vrcp.pop %v2969
      %v2982 = vrcp.pop %v2972
      %v2983 = vmul.f32 %v2924, %v2973
      %v2984 = vmul.f32 %v2926, %v2974
      %v2985 = vmul.f32 %v2928, %v2975
      %v2986 = vmul.f32 %v2930, %v2976
      %v2987 = vmul.f32 %v2932, %v2977
      %v2988 = vmul.f32 %v2934, %v2978
      %v2989 = vmul.f32 %v2936, %v2979
      %v2990 = vmul.f32 %v2938, %v2980
      %v2991 = vmul.f32 %v2940, %v2981
      %v2992 = vmul.f32 %v2942, %v2982
      %2993 = vrot.lane.b32.xlu0 %v613, 52
      %v2994 = vpop.permute.xlu0 %2993
      %2995 = vrot.lane.b32.xlu0 %v618, 52
      %v2996 = vpop.permute.xlu0 %2995
      %2997 = vrot.lane.b32.xlu0 %v623, 52
      %v2998 = vpop.permute.xlu0 %2997
      %2999 = vrot.lane.b32.xlu0 %v628, 52
      %v3000 = vpop.permute.xlu0 %2999
      %3001 = vrot.lane.b32.xlu0 %v633, 52
      %v3002 = vpop.permute.xlu0 %3001
      %v3009 = vsel %vm992, %v2983, 0
      %v3012 = vsel %vm992, %v2984, 0
      %v3015 = vsel %vm992, %v2985, 0
      %v3018 = vsel %vm992, %v2986, 0
      %v3021 = vsel %vm992, %v2987, 0
      %3023 = vmatprep.subr.mxu0 0.0
      %3024 = vmatpush1.msra.mxu0 %v2994
      %3025 = vmatprep.subr.mxu0 0.0
      %3026 = vmatpush1.msra.mxu0 %v2996
      %3027 = vmatprep.subr.mxu0 0.0
      %3028 = vmatpush1.msra.mxu0 %v2998
      %3029 = vmatprep.subr.mxu0 0.0
      %3030 = vmatpush1.msra.mxu0 %v3000
      %3031 = vmatprep.subr.mxu0 0.0
      %3032 = vmatpush1.msra.mxu0 %v3002
      %3033 = vmatprep.subr.mxu0 0.0
      %3034 = vmatpush1.msra.mxu0 0.0
      %3035 = vmatprep.subr.mxu0 0.0
      %3036 = vmatpush1.msra.mxu0 0.0
      %3037 = vmatprep.subr.mxu0 0.0
      %3038 = vmatpush1.msra.mxu0 0.0
      %3039 = vmatprep.subr.mxu0 0.0
      %3040 = vmatpush1.msra.mxu0 0.0
      %3041 = vmatprep.subr.mxu0 0.0
      %3042 = vmatpush1.msra.mxu0 0.0
      %3043 = vmatprep.subr.mxu0 0.0
      %3044 = vmatpush1.msra.mxu0 0.0
      %3045 = vmatprep.subr.mxu0 0.0
      %3046 = vmatpush1.msra.mxu0 0.0
      %3047 = vmatprep.subr.mxu0 0.0
      %3048 = vmatpush1.msra.mxu0 0.0
      %3049 = vmatprep.subr.mxu0 0.0
      %3050 = vmatpush1.msra.mxu0 0.0
      %3051 = vmatprep.subr.mxu0 0.0
      %3052 = vmatpush1.msra.mxu0 0.0
      %3053 = vmatprep.subr.mxu0 0.0
      %3054 = vmatpush1.msra.mxu0 0.0
      %3055 = vmatprep.subr.mxu0 0.0
      %3056 = vmatpush1.msra.mxu0 0.0
      %3057 = vmatprep.subr.mxu0 0.0
      %3058 = vmatpush1.msra.mxu0 0.0
      %3059 = vmatprep.subr.mxu0 0.0
      %3060 = vmatpush1.msra.mxu0 0.0
      %3061 = vmatprep.subr.mxu0 0.0
      %3062 = vmatpush1.msra.mxu0 0.0
      %3063 = vmatprep.subr.mxu0 0.0
      %3064 = vmatpush1.msra.mxu0 0.0
      %3065 = vmatprep.subr.mxu0 0.0
      %3066 = vmatpush1.msra.mxu0 0.0
      %3067 = vmatprep.subr.mxu0 0.0
      %3068 = vmatpush1.msra.mxu0 0.0
      %3069 = vmatprep.subr.mxu0 0.0
      %3070 = vmatpush1.msra.mxu0 0.0
      %3071 = vmatprep.subr.mxu0 0.0
      %3072 = vmatpush1.msra.mxu0 0.0
      %3073 = vmatprep.subr.mxu0 0.0
      %3074 = vmatpush1.msra.mxu0 0.0
      %3075 = vmatprep.subr.mxu0 0.0
      %3076 = vmatpush1.msra.mxu0 0.0
      %3077 = vmatprep.subr.mxu0 0.0
      %3078 = vmatpush1.msra.mxu0 0.0
      %3079 = vmatprep.subr.mxu0 0.0
      %3080 = vmatpush1.msra.mxu0 0.0
      %3081 = vmatprep.subr.mxu0 0.0
      %3082 = vmatpush1.msra.mxu0 0.0
      %3083 = vmatprep.subr.mxu0 0.0
      %3084 = vmatpush1.msra.mxu0 0.0
      %3085 = vmatprep.subr.mxu0 0.0
      %3086 = vmatpush1.msra.mxu0 0.0
      %3087 = vmatprep.mubr.f32.mxu0 0.0
      %3088 = vmatmul.mubr.f32.gmra.mrb[0].mxu0 %v3009
      %v3089 = vpop.f32.mrb[0].mxu0
      %v3090 = vadd.f32 0.0, %v3089
      %v3091 = vpop.f32.mrb[0].mxu0
      %3092 = vmatprep.mubr.f32.mxu0 0.0
      %3093 = vmatmul.mubr.f32.gmra.mrb[0].mxu0 %v3012
      %v3094 = vpop.f32.mrb[0].mxu0
      %v3095 = vadd.f32 0.0, %v3094
      %v3096 = vpop.f32.mrb[0].mxu0
      %3097 = vmatprep.mubr.f32.mxu0 0.0
      %3098 = vmatmul.mubr.f32.gmra.mrb[0].mxu0 %v3015
      %v3099 = vpop.f32.mrb[0].mxu0
      %v3100 = vadd.f32 0.0, %v3099
      %v3101 = vpop.f32.mrb[0].mxu0
      %3102 = vmatprep.mubr.f32.mxu0 0.0
      %3103 = vmatmul.mubr.f32.gmra.mrb[0].mxu0 %v3018
      %v3104 = vpop.f32.mrb[0].mxu0
      %v3105 = vadd.f32 0.0, %v3104
      %v3106 = vpop.f32.mrb[0].mxu0
      %3107 = vmatprep.mubr.f32.mxu0 0.0
      %3108 = vmatmul.mubr.f32.gmra.mrb[0].mxu0 %v3021
      %v3109 = vpop.f32.mrb[0].mxu0
      %v3110 = vadd.f32 0.0, %v3109
      %v3111 = vpop.f32.mrb[0].mxu0
      %3112 = vdwg.mxu0
      %3113 = vrot.lane.b32.xlu0 %v638, 52
      %v3114 = vpop.permute.xlu0 %3113
      %3115 = vrot.lane.b32.xlu0 %v643, 52
      %v3116 = vpop.permute.xlu0 %3115
      %3117 = vrot.lane.b32.xlu0 %v648, 52
      %v3118 = vpop.permute.xlu0 %3117
      %3119 = vrot.lane.b32.xlu0 %v653, 52
      %v3120 = vpop.permute.xlu0 %3119
      %3121 = vrot.lane.b32.xlu0 %v658, 52
      %v3122 = vpop.permute.xlu0 %3121
      %v3129 = vsel %vm992, %v2988, 0
      %v3132 = vsel %vm992, %v2989, 0
      %v3135 = vsel %vm992, %v2990, 0
      %v3138 = vsel %vm992, %v2991, 0
      %v3141 = vsel %vm992, %v2992, 0
      %3143 = vmatprep.subr.mxu0 0.0
      %3144 = vmatpush1.msra.mxu0 %v3114
      %3145 = vmatprep.subr.mxu0 0.0
      %3146 = vmatpush1.msra.mxu0 %v3116
      %3147 = vmatprep.subr.mxu0 0.0
      %3148 = vmatpush1.msra.mxu0 %v3118
      %3149 = vmatprep.subr.mxu0 0.0
      %3150 = vmatpush1.msra.mxu0 %v3120
      %3151 = vmatprep.subr.mxu0 0.0
      %3152 = vmatpush1.msra.mxu0 %v3122
      %3153 = vmatprep.subr.mxu0 0.0
      %3154 = vmatpush1.msra.mxu0 0.0
      %3155 = vmatprep.subr.mxu0 0.0
      %3156 = vmatpush1.msra.mxu0 0.0
      %3157 = vmatprep.subr.mxu0 0.0
      %3158 = vmatpush1.msra.mxu0 0.0
      %3159 = vmatprep.subr.mxu0 0.0
      %3160 = vmatpush1.msra.mxu0 0.0
      %3161 = vmatprep.subr.mxu0 0.0
      %3162 = vmatpush1.msra.mxu0 0.0
      %3163 = vmatprep.subr.mxu0 0.0
      %3164 = vmatpush1.msra.mxu0 0.0
      %3165 = vmatprep.subr.mxu0 0.0
      %3166 = vmatpush1.msra.mxu0 0.0
      %3167 = vmatprep.subr.mxu0 0.0
      %3168 = vmatpush1.msra.mxu0 0.0
      %3169 = vmatprep.subr.mxu0 0.0
      %3170 = vmatpush1.msra.mxu0 0.0
      %3171 = vmatprep.subr.mxu0 0.0
      %3172 = vmatpush1.msra.mxu0 0.0
      %3173 = vmatprep.subr.mxu0 0.0
      %3174 = vmatpush1.msra.mxu0 0.0
      %3175 = vmatprep.subr.mxu0 0.0
      %3176 = vmatpush1.msra.mxu0 0.0
      %3177 = vmatprep.subr.mxu0 0.0
      %3178 = vmatpush1.msra.mxu0 0.0
      %3179 = vmatprep.subr.mxu0 0.0
      %3180 = vmatpush1.msra.mxu0 0.0
      %3181 = vmatprep.subr.mxu0 0.0
      %3182 = vmatpush1.msra.mxu0 0.0
      %3183 = vmatprep.subr.mxu0 0.0
      %3184 = vmatpush1.msra.mxu0 0.0
      %3185 = vmatprep.subr.mxu0 0.0
      %3186 = vmatpush1.msra.mxu0 0.0
      %3187 = vmatprep.subr.mxu0 0.0
      %3188 = vmatpush1.msra.mxu0 0.0
      %3189 = vmatprep.subr.mxu0 0.0
      %3190 = vmatpush1.msra.mxu0 0.0
      %3191 = vmatprep.subr.mxu0 0.0
      %3192 = vmatpush1.msra.mxu0 0.0
      %3193 = vmatprep.subr.mxu0 0.0
      %3194 = vmatpush1.msra.mxu0 0.0
      %3195 = vmatprep.subr.mxu0 0.0
      %3196 = vmatpush1.msra.mxu0 0.0
      %3197 = vmatprep.subr.mxu0 0.0
      %3198 = vmatpush1.msra.mxu0 0.0
      %3199 = vmatprep.subr.mxu0 0.0
      %3200 = vmatpush1.msra.mxu0 0.0
      %3201 = vmatprep.subr.mxu0 0.0
      %3202 = vmatpush1.msra.mxu0 0.0
      %3203 = vmatprep.subr.mxu0 0.0
      %3204 = vmatpush1.msra.mxu0 0.0
      %3205 = vmatprep.subr.mxu0 0.0
      %3206 = vmatpush1.msra.mxu0 0.0
      %3207 = vmatprep.mubr.f32.mxu0 0.0
      %3208 = vmatmul.mubr.f32.gmra.mrb[0].mxu0 %v3129
      %v3209 = vpop.f32.mrb[0].mxu0
      %v3210 = vadd.f32 0.0, %v3209
      %v3211 = vpop.f32.mrb[0].mxu0
      %3212 = vmatprep.mubr.f32.mxu0 0.0
      %3213 = vmatmul.mubr.f32.gmra.mrb[0].mxu0 %v3132
      %v3214 = vpop.f32.mrb[0].mxu0
      %v3215 = vadd.f32 0.0, %v3214
      %v3216 = vpop.f32.mrb[0].mxu0
      %3217 = vmatprep.mubr.f32.mxu0 0.0
      %3218 = vmatmul.mubr.f32.gmra.mrb[0].mxu0 %v3135
      %v3219 = vpop.f32.mrb[0].mxu0
      %v3220 = vadd.f32 0.0, %v3219
      %v3221 = vpop.f32.mrb[0].mxu0
      %3222 = vmatprep.mubr.f32.mxu0 0.0
      %3223 = vmatmul.mubr.f32.gmra.mrb[0].mxu0 %v3138
      %v3224 = vpop.f32.mrb[0].mxu0
      %v3225 = vadd.f32 0.0, %v3224
      %v3226 = vpop.f32.mrb[0].mxu0
      %3227 = vmatprep.mubr.f32.mxu0 0.0
      %3228 = vmatmul.mubr.f32.gmra.mrb[0].mxu0 %v3141
      %v3229 = vpop.f32.mrb[0].mxu0
      %v3230 = vadd.f32 0.0, %v3229
      %v3231 = vpop.f32.mrb[0].mxu0
      %3232 = vdwg.mxu0
      %3233 = vrot.lane.b32.xlu0 %v613, 112
      %v3234 = vpop.permute.xlu0 %3233
      %3235 = vrot.lane.b32.xlu0 %v618, 112
      %v3236 = vpop.permute.xlu0 %3235
      %3237 = vrot.lane.b32.xlu0 %v623, 112
      %v3238 = vpop.permute.xlu0 %3237
      %3239 = vrot.lane.b32.xlu0 %v628, 112
      %v3240 = vpop.permute.xlu0 %3239
      %3241 = vrot.lane.b32.xlu0 %v633, 112
      %v3242 = vpop.permute.xlu0 %3241
      %3243 = vrot.lane.b32.xlu0 %v613, 80
      %v3244 = vpop.permute.xlu0 %3243
      %3245 = vrot.lane.b32.xlu0 %v618, 80
      %v3246 = vpop.permute.xlu0 %3245
      %3247 = vrot.lane.b32.xlu0 %v623, 80
      %v3248 = vpop.permute.xlu0 %3247
      %3249 = vrot.lane.b32.xlu0 %v628, 80
      %v3250 = vpop.permute.xlu0 %3249
      %3251 = vrot.lane.b32.xlu0 %v633, 80
      %v3252 = vpop.permute.xlu0 %3251
      %v3253 = vsel %vm736, %v3234, 0
      %v3255 = vsel %vm736, %v3236, 0
      %v3257 = vsel %vm736, %v3238, 0
      %v3259 = vsel %vm736, %v3240, 0
      %v3261 = vsel %vm736, %v3242, 0
      %v3263 = vsel %vm736, %v3244, 0
      %v3265 = vsel %vm736, %v3246, 0
      %v3267 = vsel %vm736, %v3248, 0
      %v3269 = vsel %vm736, %v3250, 0
      %v3271 = vsel %vm736, %v3252, 0
      %3273 = vmatprep.subr.mxu0 0.0
      %3274 = vmatpush1.xpose.msra.mxu0 %v3263
      %3275 = vmatprep.subr.mxu0 0.0
      %3276 = vmatpush1.xpose.msra.mxu0 %v3265
      %3277 = vmatprep.subr.mxu0 0.0
      %3278 = vmatpush1.xpose.msra.mxu0 %v3267
      %3279 = vmatprep.subr.mxu0 0.0
      %3280 = vmatpush1.xpose.msra.mxu0 %v3269
      %3281 = vmatprep.subr.mxu0 0.0
      %3282 = vmatpush1.xpose.msra.mxu0 %v3271
      %3283 = vmatprep.subr.mxu0 0.0
      %3284 = vmatpush1.xpose.msra.mxu0 0.0
      %3285 = vmatprep.subr.mxu0 0.0
      %3286 = vmatpush1.xpose.msra.mxu0 0.0
      %3287 = vmatprep.subr.mxu0 0.0
      %3288 = vmatpush1.xpose.msra.mxu0 0.0
      %3289 = vmatprep.subr.mxu0 0.0
      %3290 = vmatpush1.xpose.msra.mxu0 0.0
      %3291 = vmatprep.subr.mxu0 0.0
      %3292 = vmatpush1.xpose.msra.mxu0 0.0
      %3293 = vmatprep.subr.mxu0 0.0
      %3294 = vmatpush1.xpose.msra.mxu0 0.0
      %3295 = vmatprep.subr.mxu0 0.0
      %3296 = vmatpush1.xpose.msra.mxu0 0.0
      %3297 = vmatprep.subr.mxu0 0.0
      %3298 = vmatpush1.xpose.msra.mxu0 0.0
      %3299 = vmatprep.subr.mxu0 0.0
      %3300 = vmatpush1.xpose.msra.mxu0 0.0
      %3301 = vmatprep.subr.mxu0 0.0
      %3302 = vmatpush1.xpose.msra.mxu0 0.0
      %3303 = vmatprep.subr.mxu0 0.0
      %3304 = vmatpush1.xpose.msra.mxu0 0.0
      %3305 = vmatprep.subr.mxu0 0.0
      %3306 = vmatpush1.xpose.msra.mxu0 0.0
      %3307 = vmatprep.subr.mxu0 0.0
      %3308 = vmatpush1.xpose.msra.mxu0 0.0
      %3309 = vmatprep.subr.mxu0 0.0
      %3310 = vmatpush1.xpose.msra.mxu0 0.0
      %3311 = vmatprep.subr.mxu0 0.0
      %3312 = vmatpush1.xpose.msra.mxu0 0.0
      %3313 = vmatprep.subr.mxu0 0.0
      %3314 = vmatpush1.xpose.msra.mxu0 0.0
      %3315 = vmatprep.subr.mxu0 0.0
      %3316 = vmatpush1.xpose.msra.mxu0 0.0
      %3317 = vmatprep.subr.mxu0 0.0
      %3318 = vmatpush1.xpose.msra.mxu0 0.0
      %3319 = vmatprep.subr.mxu0 0.0
      %3320 = vmatpush1.xpose.msra.mxu0 0.0
      %3321 = vmatprep.subr.mxu0 0.0
      %3322 = vmatpush1.xpose.msra.mxu0 0.0
      %3323 = vmatprep.subr.mxu0 0.0
      %3324 = vmatpush1.xpose.msra.mxu0 0.0
      %3325 = vmatprep.subr.mxu0 0.0
      %3326 = vmatpush1.xpose.msra.mxu0 0.0
      %3327 = vmatprep.subr.mxu0 0.0
      %3328 = vmatpush1.xpose.msra.mxu0 0.0
      %3329 = vmatprep.subr.mxu0 0.0
      %3330 = vmatpush1.xpose.msra.mxu0 0.0
      %3331 = vmatprep.subr.mxu0 0.0
      %3332 = vmatpush1.xpose.msra.mxu0 0.0
      %3333 = vmatprep.subr.mxu0 0.0
      %3334 = vmatpush1.xpose.msra.mxu0 0.0
      %3335 = vmatprep.subr.mxu0 0.0
      %3336 = vmatpush1.xpose.msra.mxu0 0.0
      %3337 = vmatprep.mubr.f32.mxu0 0.0
      %3338 = vmatmul.mubr.f32.gmra.mrb[0].mxu0 %v3253
      %v3339 = vpop.f32.mrb[0].mxu0
      %v3340 = vadd.f32 0.0, %v3339
      %v3341 = vpop.f32.mrb[0].mxu0
      %3342 = vmatprep.mubr.f32.mxu0 0.0
      %3343 = vmatmul.mubr.f32.gmra.mrb[0].mxu0 %v3255
      %v3344 = vpop.f32.mrb[0].mxu0
      %v3345 = vadd.f32 0.0, %v3344
      %v3346 = vpop.f32.mrb[0].mxu0
      %3347 = vmatprep.mubr.f32.mxu0 0.0
      %3348 = vmatmul.mubr.f32.gmra.mrb[0].mxu0 %v3257
      %v3349 = vpop.f32.mrb[0].mxu0
      %v3350 = vadd.f32 0.0, %v3349
      %v3351 = vpop.f32.mrb[0].mxu0
      %3352 = vmatprep.mubr.f32.mxu0 0.0
      %3353 = vmatmul.mubr.f32.gmra.mrb[0].mxu0 %v3259
      %v3354 = vpop.f32.mrb[0].mxu0
      %v3355 = vadd.f32 0.0, %v3354
      %v3356 = vpop.f32.mrb[0].mxu0
      %3357 = vmatprep.mubr.f32.mxu0 0.0
      %3358 = vmatmul.mubr.f32.gmra.mrb[0].mxu0 %v3261
      %v3359 = vpop.f32.mrb[0].mxu0
      %v3360 = vadd.f32 0.0, %v3359
      %v3361 = vpop.f32.mrb[0].mxu0
      %3362 = vdwg.mxu0
      %3363 = vrot.lane.b32.xlu0 %v638, 112
      %v3364 = vpop.permute.xlu0 %3363
      %3365 = vrot.lane.b32.xlu0 %v643, 112
      %v3366 = vpop.permute.xlu0 %3365
      %3367 = vrot.lane.b32.xlu0 %v648, 112
      %v3368 = vpop.permute.xlu0 %3367
      %3369 = vrot.lane.b32.xlu0 %v653, 112
      %v3370 = vpop.permute.xlu0 %3369
      %3371 = vrot.lane.b32.xlu0 %v658, 112
      %v3372 = vpop.permute.xlu0 %3371
      %3373 = vrot.lane.b32.xlu0 %v638, 80
      %v3374 = vpop.permute.xlu0 %3373
      %3375 = vrot.lane.b32.xlu0 %v643, 80
      %v3376 = vpop.permute.xlu0 %3375
      %3377 = vrot.lane.b32.xlu0 %v648, 80
      %v3378 = vpop.permute.xlu0 %3377
      %3379 = vrot.lane.b32.xlu0 %v653, 80
      %v3380 = vpop.permute.xlu0 %3379
      %3381 = vrot.lane.b32.xlu0 %v658, 80
      %v3382 = vpop.permute.xlu0 %3381
      %v3383 = vsel %vm736, %v3364, 0
      %v3385 = vsel %vm736, %v3366, 0
      %v3387 = vsel %vm736, %v3368, 0
      %v3389 = vsel %vm736, %v3370, 0
      %v3391 = vsel %vm736, %v3372, 0
      %v3393 = vsel %vm736, %v3374, 0
      %v3395 = vsel %vm736, %v3376, 0
      %v3397 = vsel %vm736, %v3378, 0
      %v3399 = vsel %vm736, %v3380, 0
      %v3401 = vsel %vm736, %v3382, 0
      %3403 = vmatprep.subr.mxu0 0.0
      %3404 = vmatpush1.xpose.msra.mxu0 %v3393
      %3405 = vmatprep.subr.mxu0 0.0
      %3406 = vmatpush1.xpose.msra.mxu0 %v3395
      %3407 = vmatprep.subr.mxu0 0.0
      %3408 = vmatpush1.xpose.msra.mxu0 %v3397
      %3409 = vmatprep.subr.mxu0 0.0
      %3410 = vmatpush1.xpose.msra.mxu0 %v3399
      %3411 = vmatprep.subr.mxu0 0.0
      %3412 = vmatpush1.xpose.msra.mxu0 %v3401
      %3413 = vmatprep.subr.mxu0 0.0
      %3414 = vmatpush1.xpose.msra.mxu0 0.0
      %3415 = vmatprep.subr.mxu0 0.0
      %3416 = vmatpush1.xpose.msra.mxu0 0.0
      %3417 = vmatprep.subr.mxu0 0.0
      %3418 = vmatpush1.xpose.msra.mxu0 0.0
      %3419 = vmatprep.subr.mxu0 0.0
      %3420 = vmatpush1.xpose.msra.mxu0 0.0
      %3421 = vmatprep.subr.mxu0 0.0
      %3422 = vmatpush1.xpose.msra.mxu0 0.0
      %3423 = vmatprep.subr.mxu0 0.0
      %3424 = vmatpush1.xpose.msra.mxu0 0.0
      %3425 = vmatprep.subr.mxu0 0.0
      %3426 = vmatpush1.xpose.msra.mxu0 0.0
      %3427 = vmatprep.subr.mxu0 0.0
      %3428 = vmatpush1.xpose.msra.mxu0 0.0
      %3429 = vmatprep.subr.mxu0 0.0
      %3430 = vmatpush1.xpose.msra.mxu0 0.0
      %3431 = vmatprep.subr.mxu0 0.0
      %3432 = vmatpush1.xpose.msra.mxu0 0.0
      %3433 = vmatprep.subr.mxu0 0.0
      %3434 = vmatpush1.xpose.msra.mxu0 0.0
      %3435 = vmatprep.subr.mxu0 0.0
      %3436 = vmatpush1.xpose.msra.mxu0 0.0
      %3437 = vmatprep.subr.mxu0 0.0
      %3438 = vmatpush1.xpose.msra.mxu0 0.0
      %3439 = vmatprep.subr.mxu0 0.0
      %3440 = vmatpush1.xpose.msra.mxu0 0.0
      %3441 = vmatprep.subr.mxu0 0.0
      %3442 = vmatpush1.xpose.msra.mxu0 0.0
      %3443 = vmatprep.subr.mxu0 0.0
      %3444 = vmatpush1.xpose.msra.mxu0 0.0
      %3445 = vmatprep.subr.mxu0 0.0
      %3446 = vmatpush1.xpose.msra.mxu0 0.0
      %3447 = vmatprep.subr.mxu0 0.0
      %3448 = vmatpush1.xpose.msra.mxu0 0.0
      %3449 = vmatprep.subr.mxu0 0.0
      %3450 = vmatpush1.xpose.msra.mxu0 0.0
      %3451 = vmatprep.subr.mxu0 0.0
      %3452 = vmatpush1.xpose.msra.mxu0 0.0
      %3453 = vmatprep.subr.mxu0 0.0
      %3454 = vmatpush1.xpose.msra.mxu0 0.0
      %3455 = vmatprep.subr.mxu0 0.0
      %3456 = vmatpush1.xpose.msra.mxu0 0.0
      %3457 = vmatprep.subr.mxu0 0.0
      %3458 = vmatpush1.xpose.msra.mxu0 0.0
      %3459 = vmatprep.subr.mxu0 0.0
      %3460 = vmatpush1.xpose.msra.mxu0 0.0
      %3461 = vmatprep.subr.mxu0 0.0
      %3462 = vmatpush1.xpose.msra.mxu0 0.0
      %3463 = vmatprep.subr.mxu0 0.0
      %3464 = vmatpush1.xpose.msra.mxu0 0.0
      %3465 = vmatprep.subr.mxu0 0.0
      %3466 = vmatpush1.xpose.msra.mxu0 0.0
      %3467 = vmatprep.mubr.f32.mxu0 0.0
      %3468 = vmatmul.mubr.f32.gmra.mrb[0].mxu0 %v3383
      %v3469 = vpop.f32.mrb[0].mxu0
      %v3470 = vadd.f32 0.0, %v3469
      %v3471 = vpop.f32.mrb[0].mxu0
      %3472 = vmatprep.mubr.f32.mxu0 0.0
      %3473 = vmatmul.mubr.f32.gmra.mrb[0].mxu0 %v3385
      %v3474 = vpop.f32.mrb[0].mxu0
      %v3475 = vadd.f32 0.0, %v3474
      %v3476 = vpop.f32.mrb[0].mxu0
      %3477 = vmatprep.mubr.f32.mxu0 0.0
      %3478 = vmatmul.mubr.f32.gmra.mrb[0].mxu0 %v3387
      %v3479 = vpop.f32.mrb[0].mxu0
      %v3480 = vadd.f32 0.0, %v3479
      %v3481 = vpop.f32.mrb[0].mxu0
      %3482 = vmatprep.mubr.f32.mxu0 0.0
      %3483 = vmatmul.mubr.f32.gmra.mrb[0].mxu0 %v3389
      %v3484 = vpop.f32.mrb[0].mxu0
      %v3485 = vadd.f32 0.0, %v3484
      %v3486 = vpop.f32.mrb[0].mxu0
      %3487 = vmatprep.mubr.f32.mxu0 0.0
      %3488 = vmatmul.mubr.f32.gmra.mrb[0].mxu0 %v3391
      %v3489 = vpop.f32.mrb[0].mxu0
      %v3490 = vadd.f32 0.0, %v3489
      %v3491 = vpop.f32.mrb[0].mxu0
      %3492 = vdwg.mxu0
      %v3493 = vmul.f32 %v3340, 0.5
      %v3494 = vmul.f32 %v3345, 0.5
      %v3495 = vmul.f32 %v3350, 0.5
      %v3496 = vmul.f32 %v3355, 0.5
      %v3497 = vmul.f32 %v3360, 0.5
      %v3498 = vmul.f32 %v3470, 0.5
      %v3499 = vmul.f32 %v3475, 0.5
      %v3500 = vmul.f32 %v3480, 0.5
      %v3501 = vmul.f32 %v3485, 0.5
      %v3502 = vmul.f32 %v3490, 0.5
      %v3503 = vsel %vm711, %v3493, -1e+09
      %v3504 = vsel %vm712, %v3494, -1e+09
      %v3505 = vsel %vm713, %v3495, -1e+09
      %v3506 = vsel %vm714, %v3496, -1e+09
      %v3507 = vsel %vm715, %v3497, -1e+09
      %v3508 = vsel %vm716, %v3498, -1e+09
      %v3509 = vsel %vm717, %v3499, -1e+09
      %v3510 = vsel %vm718, %v3500, -1e+09
      %v3511 = vsel %vm719, %v3501, -1e+09
      %v3512 = vsel %vm720, %v3502, -1e+09
      %v3513 = vsel %vm992, %v3503, -inf
      %3514 = vmax.xlane.f32.xlu0 %v3513
      %v3515 = vpop.xlane.xlu0 %3514
      %v3516 = vsel %vm992, %v3504, -inf
      %3517 = vmax.xlane.f32.xlu0 %v3516
      %v3518 = vpop.xlane.xlu0 %3517
      %v3519 = vsel %vm992, %v3505, -inf
      %3520 = vmax.xlane.f32.xlu0 %v3519
      %v3521 = vpop.xlane.xlu0 %3520
      %v3522 = vsel %vm992, %v3506, -inf
      %3523 = vmax.xlane.f32.xlu0 %v3522
      %v3524 = vpop.xlane.xlu0 %3523
      %v3525 = vsel %vm992, %v3507, -inf
      %3526 = vmax.xlane.f32.xlu0 %v3525
      %v3527 = vpop.xlane.xlu0 %3526
      %v3528 = vsel %vm992, %v3508, -inf
      %3529 = vmax.xlane.f32.xlu0 %v3528
      %v3530 = vpop.xlane.xlu0 %3529
      %v3531 = vsel %vm992, %v3509, -inf
      %3532 = vmax.xlane.f32.xlu0 %v3531
      %v3533 = vpop.xlane.xlu0 %3532
      %v3534 = vsel %vm992, %v3510, -inf
      %3535 = vmax.xlane.f32.xlu0 %v3534
      %v3536 = vpop.xlane.xlu0 %3535
      %v3537 = vsel %vm992, %v3511, -inf
      %3538 = vmax.xlane.f32.xlu0 %v3537
      %v3539 = vpop.xlane.xlu0 %3538
      %v3540 = vsel %vm992, %v3512, -inf
      %3541 = vmax.xlane.f32.xlu0 %v3540
      %v3542 = vpop.xlane.xlu0 %3541
      %v3543 = vsub.f32 %v3503, %v3515
      %v3544 = vsub.f32 %v3504, %v3518
      %v3545 = vsub.f32 %v3505, %v3521
      %v3546 = vsub.f32 %v3506, %v3524
      %v3547 = vsub.f32 %v3507, %v3527
      %v3548 = vsub.f32 %v3508, %v3530
      %v3549 = vsub.f32 %v3509, %v3533
      %v3550 = vsub.f32 %v3510, %v3536
      %v3551 = vsub.f32 %v3511, %v3539
      %v3552 = vsub.f32 %v3512, %v3542
      %v3553 = vmul.f32 %v3543, 1.442695
      %v3554 = vpow.pop %v3553
      %v3555 = vmul.f32 %v3544, 1.442695
      %v3556 = vpow.pop %v3555
      %v3557 = vmul.f32 %v3545, 1.442695
      %v3558 = vpow.pop %v3557
      %v3559 = vmul.f32 %v3546, 1.442695
      %v3560 = vpow.pop %v3559
      %v3561 = vmul.f32 %v3547, 1.442695
      %v3562 = vpow.pop %v3561
      %v3563 = vmul.f32 %v3548, 1.442695
      %v3564 = vpow.pop %v3563
      %v3565 = vmul.f32 %v3549, 1.442695
      %v3566 = vpow.pop %v3565
      %v3567 = vmul.f32 %v3550, 1.442695
      %v3568 = vpow.pop %v3567
      %v3569 = vmul.f32 %v3551, 1.442695
      %v3570 = vpow.pop %v3569
      %v3571 = vmul.f32 %v3552, 1.442695
      %v3572 = vpow.pop %v3571
      %v3573 = vsel %vm992, %v3554, 0.0
      %3574 = vadd.xlane.f32.xlu0 %v3573
      %v3575 = vpop.xlane.xlu0 %3574
      %v3576 = vsel %vm992, %v3556, 0.0
      %3577 = vadd.xlane.f32.xlu0 %v3576
      %v3578 = vpop.xlane.xlu0 %3577
      %v3579 = vsel %vm992, %v3558, 0.0
      %3580 = vadd.xlane.f32.xlu0 %v3579
      %v3581 = vpop.xlane.xlu0 %3580
      %v3582 = vsel %vm992, %v3560, 0.0
      %3583 = vadd.xlane.f32.xlu0 %v3582
      %v3584 = vpop.xlane.xlu0 %3583
      %v3585 = vsel %vm992, %v3562, 0.0
      %3586 = vadd.xlane.f32.xlu0 %v3585
      %v3587 = vpop.xlane.xlu0 %3586
      %v3588 = vsel %vm992, %v3564, 0.0
      %3589 = vadd.xlane.f32.xlu0 %v3588
      %v3590 = vpop.xlane.xlu0 %3589
      %v3591 = vsel %vm992, %v3566, 0.0
      %3592 = vadd.xlane.f32.xlu0 %v3591
      %v3593 = vpop.xlane.xlu0 %3592
      %v3594 = vsel %vm992, %v3568, 0.0
      %3595 = vadd.xlane.f32.xlu0 %v3594
      %v3596 = vpop.xlane.xlu0 %3595
      %v3597 = vsel %vm992, %v3570, 0.0
      %3598 = vadd.xlane.f32.xlu0 %v3597
      %v3599 = vpop.xlane.xlu0 %3598
      %v3600 = vsel %vm992, %v3572, 0.0
      %3601 = vadd.xlane.f32.xlu0 %v3600
      %v3602 = vpop.xlane.xlu0 %3601
      %v3603 = vrcp.pop %v3575
      %v3604 = vrcp.pop %v3578
      %v3605 = vrcp.pop %v3581
      %v3606 = vrcp.pop %v3584
      %v3607 = vrcp.pop %v3587
      %v3608 = vrcp.pop %v3590
      %v3609 = vrcp.pop %v3593
      %v3610 = vrcp.pop %v3596
      %v3611 = vrcp.pop %v3599
      %v3612 = vrcp.pop %v3602
      %v3613 = vmul.f32 %v3554, %v3603
      %v3614 = vmul.f32 %v3556, %v3604
      %v3615 = vmul.f32 %v3558, %v3605
      %v3616 = vmul.f32 %v3560, %v3606
      %v3617 = vmul.f32 %v3562, %v3607
      %v3618 = vmul.f32 %v3564, %v3608
      %v3619 = vmul.f32 %v3566, %v3609
      %v3620 = vmul.f32 %v3568, %v3610
      %v3621 = vmul.f32 %v3570, %v3611
      %v3622 = vmul.f32 %v3572, %v3612
      %3623 = vrot.lane.b32.xlu0 %v613, 48
      %v3624 = vpop.permute.xlu0 %3623
      %3625 = vrot.lane.b32.xlu0 %v618, 48
      %v3626 = vpop.permute.xlu0 %3625
      %3627 = vrot.lane.b32.xlu0 %v623, 48
      %v3628 = vpop.permute.xlu0 %3627
      %3629 = vrot.lane.b32.xlu0 %v628, 48
      %v3630 = vpop.permute.xlu0 %3629
      %3631 = vrot.lane.b32.xlu0 %v633, 48
      %v3632 = vpop.permute.xlu0 %3631
      %v3639 = vsel %vm992, %v3613, 0
      %v3642 = vsel %vm992, %v3614, 0
      %v3645 = vsel %vm992, %v3615, 0
      %v3648 = vsel %vm992, %v3616, 0
      %v3651 = vsel %vm992, %v3617, 0
      %3653 = vmatprep.subr.mxu0 0.0
      %3654 = vmatpush1.msra.mxu0 %v3624
      %3655 = vmatprep.subr.mxu0 0.0
      %3656 = vmatpush1.msra.mxu0 %v3626
      %3657 = vmatprep.subr.mxu0 0.0
      %3658 = vmatpush1.msra.mxu0 %v3628
      %3659 = vmatprep.subr.mxu0 0.0
      %3660 = vmatpush1.msra.mxu0 %v3630
      %3661 = vmatprep.subr.mxu0 0.0
      %3662 = vmatpush1.msra.mxu0 %v3632
      %3663 = vmatprep.subr.mxu0 0.0
      %3664 = vmatpush1.msra.mxu0 0.0
      %3665 = vmatprep.subr.mxu0 0.0
      %3666 = vmatpush1.msra.mxu0 0.0
      %3667 = vmatprep.subr.mxu0 0.0
      %3668 = vmatpush1.msra.mxu0 0.0
      %3669 = vmatprep.subr.mxu0 0.0
      %3670 = vmatpush1.msra.mxu0 0.0
      %3671 = vmatprep.subr.mxu0 0.0
      %3672 = vmatpush1.msra.mxu0 0.0
      %3673 = vmatprep.subr.mxu0 0.0
      %3674 = vmatpush1.msra.mxu0 0.0
      %3675 = vmatprep.subr.mxu0 0.0
      %3676 = vmatpush1.msra.mxu0 0.0
      %3677 = vmatprep.subr.mxu0 0.0
      %3678 = vmatpush1.msra.mxu0 0.0
      %3679 = vmatprep.subr.mxu0 0.0
      %3680 = vmatpush1.msra.mxu0 0.0
      %3681 = vmatprep.subr.mxu0 0.0
      %3682 = vmatpush1.msra.mxu0 0.0
      %3683 = vmatprep.subr.mxu0 0.0
      %3684 = vmatpush1.msra.mxu0 0.0
      %3685 = vmatprep.subr.mxu0 0.0
      %3686 = vmatpush1.msra.mxu0 0.0
      %3687 = vmatprep.subr.mxu0 0.0
      %3688 = vmatpush1.msra.mxu0 0.0
      %3689 = vmatprep.subr.mxu0 0.0
      %3690 = vmatpush1.msra.mxu0 0.0
      %3691 = vmatprep.subr.mxu0 0.0
      %3692 = vmatpush1.msra.mxu0 0.0
      %3693 = vmatprep.subr.mxu0 0.0
      %3694 = vmatpush1.msra.mxu0 0.0
      %3695 = vmatprep.subr.mxu0 0.0
      %3696 = vmatpush1.msra.mxu0 0.0
      %3697 = vmatprep.subr.mxu0 0.0
      %3698 = vmatpush1.msra.mxu0 0.0
      %3699 = vmatprep.subr.mxu0 0.0
      %3700 = vmatpush1.msra.mxu0 0.0
      %3701 = vmatprep.subr.mxu0 0.0
      %3702 = vmatpush1.msra.mxu0 0.0
      %3703 = vmatprep.subr.mxu0 0.0
      %3704 = vmatpush1.msra.mxu0 0.0
      %3705 = vmatprep.subr.mxu0 0.0
      %3706 = vmatpush1.msra.mxu0 0.0
      %3707 = vmatprep.subr.mxu0 0.0
      %3708 = vmatpush1.msra.mxu0 0.0
      %3709 = vmatprep.subr.mxu0 0.0
      %3710 = vmatpush1.msra.mxu0 0.0
      %3711 = vmatprep.subr.mxu0 0.0
      %3712 = vmatpush1.msra.mxu0 0.0
      %3713 = vmatprep.subr.mxu0 0.0
      %3714 = vmatpush1.msra.mxu0 0.0
      %3715 = vmatprep.subr.mxu0 0.0
      %3716 = vmatpush1.msra.mxu0 0.0
      %3717 = vmatprep.mubr.f32.mxu0 0.0
      %3718 = vmatmul.mubr.f32.gmra.mrb[0].mxu0 %v3639
      %v3719 = vpop.f32.mrb[0].mxu0
      %v3720 = vadd.f32 0.0, %v3719
      %v3721 = vpop.f32.mrb[0].mxu0
      %3722 = vmatprep.mubr.f32.mxu0 0.0
      %3723 = vmatmul.mubr.f32.gmra.mrb[0].mxu0 %v3642
      %v3724 = vpop.f32.mrb[0].mxu0
      %v3725 = vadd.f32 0.0, %v3724
      %v3726 = vpop.f32.mrb[0].mxu0
      %3727 = vmatprep.mubr.f32.mxu0 0.0
      %3728 = vmatmul.mubr.f32.gmra.mrb[0].mxu0 %v3645
      %v3729 = vpop.f32.mrb[0].mxu0
      %v3730 = vadd.f32 0.0, %v3729
      %v3731 = vpop.f32.mrb[0].mxu0
      %3732 = vmatprep.mubr.f32.mxu0 0.0
      %3733 = vmatmul.mubr.f32.gmra.mrb[0].mxu0 %v3648
      %v3734 = vpop.f32.mrb[0].mxu0
      %v3735 = vadd.f32 0.0, %v3734
      %v3736 = vpop.f32.mrb[0].mxu0
      %3737 = vmatprep.mubr.f32.mxu0 0.0
      %3738 = vmatmul.mubr.f32.gmra.mrb[0].mxu0 %v3651
      %v3739 = vpop.f32.mrb[0].mxu0
      %v3740 = vadd.f32 0.0, %v3739
      %v3741 = vpop.f32.mrb[0].mxu0
      %3742 = vdwg.mxu0
      %3743 = vrot.lane.b32.xlu0 %v638, 48
      %v3744 = vpop.permute.xlu0 %3743
      %3745 = vrot.lane.b32.xlu0 %v643, 48
      %v3746 = vpop.permute.xlu0 %3745
      %3747 = vrot.lane.b32.xlu0 %v648, 48
      %v3748 = vpop.permute.xlu0 %3747
      %3749 = vrot.lane.b32.xlu0 %v653, 48
      %v3750 = vpop.permute.xlu0 %3749
      %3751 = vrot.lane.b32.xlu0 %v658, 48
      %v3752 = vpop.permute.xlu0 %3751
      %v3759 = vsel %vm992, %v3618, 0
      %v3762 = vsel %vm992, %v3619, 0
      %v3765 = vsel %vm992, %v3620, 0
      %v3768 = vsel %vm992, %v3621, 0
      %v3771 = vsel %vm992, %v3622, 0
      %3773 = vmatprep.subr.mxu0 0.0
      %3774 = vmatpush1.msra.mxu0 %v3744
      %3775 = vmatprep.subr.mxu0 0.0
      %3776 = vmatpush1.msra.mxu0 %v3746
      %3777 = vmatprep.subr.mxu0 0.0
      %3778 = vmatpush1.msra.mxu0 %v3748
      %3779 = vmatprep.subr.mxu0 0.0
      %3780 = vmatpush1.msra.mxu0 %v3750
      %3781 = vmatprep.subr.mxu0 0.0
      %3782 = vmatpush1.msra.mxu0 %v3752
      %3783 = vmatprep.subr.mxu0 0.0
      %3784 = vmatpush1.msra.mxu0 0.0
      %3785 = vmatprep.subr.mxu0 0.0
      %3786 = vmatpush1.msra.mxu0 0.0
      %3787 = vmatprep.subr.mxu0 0.0
      %3788 = vmatpush1.msra.mxu0 0.0
      %3789 = vmatprep.subr.mxu0 0.0
      %3790 = vmatpush1.msra.mxu0 0.0
      %3791 = vmatprep.subr.mxu0 0.0
      %3792 = vmatpush1.msra.mxu0 0.0
      %3793 = vmatprep.subr.mxu0 0.0
      %3794 = vmatpush1.msra.mxu0 0.0
      %3795 = vmatprep.subr.mxu0 0.0
      %3796 = vmatpush1.msra.mxu0 0.0
      %3797 = vmatprep.subr.mxu0 0.0
      %3798 = vmatpush1.msra.mxu0 0.0
      %3799 = vmatprep.subr.mxu0 0.0
      %3800 = vmatpush1.msra.mxu0 0.0
      %3801 = vmatprep.subr.mxu0 0.0
      %3802 = vmatpush1.msra.mxu0 0.0
      %3803 = vmatprep.subr.mxu0 0.0
      %3804 = vmatpush1.msra.mxu0 0.0
      %3805 = vmatprep.subr.mxu0 0.0
      %3806 = vmatpush1.msra.mxu0 0.0
      %3807 = vmatprep.subr.mxu0 0.0
      %3808 = vmatpush1.msra.mxu0 0.0
      %3809 = vmatprep.subr.mxu0 0.0
      %3810 = vmatpush1.msra.mxu0 0.0
      %3811 = vmatprep.subr.mxu0 0.0
      %3812 = vmatpush1.msra.mxu0 0.0
      %3813 = vmatprep.subr.mxu0 0.0
      %3814 = vmatpush1.msra.mxu0 0.0
      %3815 = vmatprep.subr.mxu0 0.0
      %3816 = vmatpush1.msra.mxu0 0.0
      %3817 = vmatprep.subr.mxu0 0.0
      %3818 = vmatpush1.msra.mxu0 0.0
      %3819 = vmatprep.subr.mxu0 0.0
      %3820 = vmatpush1.msra.mxu0 0.0
      %3821 = vmatprep.subr.mxu0 0.0
      %3822 = vmatpush1.msra.mxu0 0.0
      %3823 = vmatprep.subr.mxu0 0.0
      %3824 = vmatpush1.msra.mxu0 0.0
      %3825 = vmatprep.subr.mxu0 0.0
      %3826 = vmatpush1.msra.mxu0 0.0
      %3827 = vmatprep.subr.mxu0 0.0
      %3828 = vmatpush1.msra.mxu0 0.0
      %3829 = vmatprep.subr.mxu0 0.0
      %3830 = vmatpush1.msra.mxu0 0.0
      %3831 = vmatprep.subr.mxu0 0.0
      %3832 = vmatpush1.msra.mxu0 0.0
      %3833 = vmatprep.subr.mxu0 0.0
      %3834 = vmatpush1.msra.mxu0 0.0
      %3835 = vmatprep.subr.mxu0 0.0
      %3836 = vmatpush1.msra.mxu0 0.0
      %3837 = vmatprep.mubr.f32.mxu0 0.0
      %3838 = vmatmul.mubr.f32.gmra.mrb[0].mxu0 %v3759
      %v3839 = vpop.f32.mrb[0].mxu0
      %v3840 = vadd.f32 0.0, %v3839
      %v3841 = vpop.f32.mrb[0].mxu0
      %3842 = vmatprep.mubr.f32.mxu0 0.0
      %3843 = vmatmul.mubr.f32.gmra.mrb[0].mxu0 %v3762
      %v3844 = vpop.f32.mrb[0].mxu0
      %v3845 = vadd.f32 0.0, %v3844
      %v3846 = vpop.f32.mrb[0].mxu0
      %3847 = vmatprep.mubr.f32.mxu0 0.0
      %3848 = vmatmul.mubr.f32.gmra.mrb[0].mxu0 %v3765
      %v3849 = vpop.f32.mrb[0].mxu0
      %v3850 = vadd.f32 0.0, %v3849
      %v3851 = vpop.f32.mrb[0].mxu0
      %3852 = vmatprep.mubr.f32.mxu0 0.0
      %3853 = vmatmul.mubr.f32.gmra.mrb[0].mxu0 %v3768
      %v3854 = vpop.f32.mrb[0].mxu0
      %v3855 = vadd.f32 0.0, %v3854
      %v3856 = vpop.f32.mrb[0].mxu0
      %3857 = vmatprep.mubr.f32.mxu0 0.0
      %3858 = vmatmul.mubr.f32.gmra.mrb[0].mxu0 %v3771
      %v3859 = vpop.f32.mrb[0].mxu0
      %v3860 = vadd.f32 0.0, %v3859
      %v3861 = vpop.f32.mrb[0].mxu0
      %3862 = vdwg.mxu0
      %3863 = vrot.lane.b32.xlu0 %v613, 108
      %v3864 = vpop.permute.xlu0 %3863
      %3865 = vrot.lane.b32.xlu0 %v618, 108
      %v3866 = vpop.permute.xlu0 %3865
      %3867 = vrot.lane.b32.xlu0 %v623, 108
      %v3868 = vpop.permute.xlu0 %3867
      %3869 = vrot.lane.b32.xlu0 %v628, 108
      %v3870 = vpop.permute.xlu0 %3869
      %3871 = vrot.lane.b32.xlu0 %v633, 108
      %v3872 = vpop.permute.xlu0 %3871
      %3873 = vrot.lane.b32.xlu0 %v613, 76
      %v3874 = vpop.permute.xlu0 %3873
      %3875 = vrot.lane.b32.xlu0 %v618, 76
      %v3876 = vpop.permute.xlu0 %3875
      %3877 = vrot.lane.b32.xlu0 %v623, 76
      %v3878 = vpop.permute.xlu0 %3877
      %3879 = vrot.lane.b32.xlu0 %v628, 76
      %v3880 = vpop.permute.xlu0 %3879
      %3881 = vrot.lane.b32.xlu0 %v633, 76
      %v3882 = vpop.permute.xlu0 %3881
      %v3883 = vsel %vm736, %v3864, 0
      %v3885 = vsel %vm736, %v3866, 0
      %v3887 = vsel %vm736, %v3868, 0
      %v3889 = vsel %vm736, %v3870, 0
      %v3891 = vsel %vm736, %v3872, 0
      %v3893 = vsel %vm736, %v3874, 0
      %v3895 = vsel %vm736, %v3876, 0
      %v3897 = vsel %vm736, %v3878, 0
      %v3899 = vsel %vm736, %v3880, 0
      %v3901 = vsel %vm736, %v3882, 0
      %3903 = vmatprep.subr.mxu0 0.0
      %3904 = vmatpush1.xpose.msra.mxu0 %v3893
      %3905 = vmatprep.subr.mxu0 0.0
      %3906 = vmatpush1.xpose.msra.mxu0 %v3895
      %3907 = vmatprep.subr.mxu0 0.0
      %3908 = vmatpush1.xpose.msra.mxu0 %v3897
      %3909 = vmatprep.subr.mxu0 0.0
      %3910 = vmatpush1.xpose.msra.mxu0 %v3899
      %3911 = vmatprep.subr.mxu0 0.0
      %3912 = vmatpush1.xpose.msra.mxu0 %v3901
      %3913 = vmatprep.subr.mxu0 0.0
      %3914 = vmatpush1.xpose.msra.mxu0 0.0
      %3915 = vmatprep.subr.mxu0 0.0
      %3916 = vmatpush1.xpose.msra.mxu0 0.0
      %3917 = vmatprep.subr.mxu0 0.0
      %3918 = vmatpush1.xpose.msra.mxu0 0.0
      %3919 = vmatprep.subr.mxu0 0.0
      %3920 = vmatpush1.xpose.msra.mxu0 0.0
      %3921 = vmatprep.subr.mxu0 0.0
      %3922 = vmatpush1.xpose.msra.mxu0 0.0
      %3923 = vmatprep.subr.mxu0 0.0
      %3924 = vmatpush1.xpose.msra.mxu0 0.0
      %3925 = vmatprep.subr.mxu0 0.0
      %3926 = vmatpush1.xpose.msra.mxu0 0.0
      %3927 = vmatprep.subr.mxu0 0.0
      %3928 = vmatpush1.xpose.msra.mxu0 0.0
      %3929 = vmatprep.subr.mxu0 0.0
      %3930 = vmatpush1.xpose.msra.mxu0 0.0
      %3931 = vmatprep.subr.mxu0 0.0
      %3932 = vmatpush1.xpose.msra.mxu0 0.0
      %3933 = vmatprep.subr.mxu0 0.0
      %3934 = vmatpush1.xpose.msra.mxu0 0.0
      %3935 = vmatprep.subr.mxu0 0.0
      %3936 = vmatpush1.xpose.msra.mxu0 0.0
      %3937 = vmatprep.subr.mxu0 0.0
      %3938 = vmatpush1.xpose.msra.mxu0 0.0
      %3939 = vmatprep.subr.mxu0 0.0
      %3940 = vmatpush1.xpose.msra.mxu0 0.0
      %3941 = vmatprep.subr.mxu0 0.0
      %3942 = vmatpush1.xpose.msra.mxu0 0.0
      %3943 = vmatprep.subr.mxu0 0.0
      %3944 = vmatpush1.xpose.msra.mxu0 0.0
      %3945 = vmatprep.subr.mxu0 0.0
      %3946 = vmatpush1.xpose.msra.mxu0 0.0
      %3947 = vmatprep.subr.mxu0 0.0
      %3948 = vmatpush1.xpose.msra.mxu0 0.0
      %3949 = vmatprep.subr.mxu0 0.0
      %3950 = vmatpush1.xpose.msra.mxu0 0.0
      %3951 = vmatprep.subr.mxu0 0.0
      %3952 = vmatpush1.xpose.msra.mxu0 0.0
      %3953 = vmatprep.subr.mxu0 0.0
      %3954 = vmatpush1.xpose.msra.mxu0 0.0
      %3955 = vmatprep.subr.mxu0 0.0
      %3956 = vmatpush1.xpose.msra.mxu0 0.0
      %3957 = vmatprep.subr.mxu0 0.0
      %3958 = vmatpush1.xpose.msra.mxu0 0.0
      %3959 = vmatprep.subr.mxu0 0.0
      %3960 = vmatpush1.xpose.msra.mxu0 0.0
      %3961 = vmatprep.subr.mxu0 0.0
      %3962 = vmatpush1.xpose.msra.mxu0 0.0
      %3963 = vmatprep.subr.mxu0 0.0
      %3964 = vmatpush1.xpose.msra.mxu0 0.0
      %3965 = vmatprep.subr.mxu0 0.0
      %3966 = vmatpush1.xpose.msra.mxu0 0.0
      %3967 = vmatprep.mubr.f32.mxu0 0.0
      %3968 = vmatmul.mubr.f32.gmra.mrb[0].mxu0 %v3883
      %v3969 = vpop.f32.mrb[0].mxu0
      %v3970 = vadd.f32 0.0, %v3969
      %v3971 = vpop.f32.mrb[0].mxu0
      %3972 = vmatprep.mubr.f32.mxu0 0.0
      %3973 = vmatmul.mubr.f32.gmra.mrb[0].mxu0 %v3885
      %v3974 = vpop.f32.mrb[0].mxu0
      %v3975 = vadd.f32 0.0, %v3974
      %v3976 = vpop.f32.mrb[0].mxu0
      %3977 = vmatprep.mubr.f32.mxu0 0.0
      %3978 = vmatmul.mubr.f32.gmra.mrb[0].mxu0 %v3887
      %v3979 = vpop.f32.mrb[0].mxu0
      %v3980 = vadd.f32 0.0, %v3979
      %v3981 = vpop.f32.mrb[0].mxu0
      %3982 = vmatprep.mubr.f32.mxu0 0.0
      %3983 = vmatmul.mubr.f32.gmra.mrb[0].mxu0 %v3889
      %v3984 = vpop.f32.mrb[0].mxu0
      %v3985 = vadd.f32 0.0, %v3984
      %v3986 = vpop.f32.mrb[0].mxu0
      %3987 = vmatprep.mubr.f32.mxu0 0.0
      %3988 = vmatmul.mubr.f32.gmra.mrb[0].mxu0 %v3891
      %v3989 = vpop.f32.mrb[0].mxu0
      %v3990 = vadd.f32 0.0, %v3989
      %v3991 = vpop.f32.mrb[0].mxu0
      %3992 = vdwg.mxu0
      %3993 = vrot.lane.b32.xlu0 %v638, 108
      %v3994 = vpop.permute.xlu0 %3993
      %3995 = vrot.lane.b32.xlu0 %v643, 108
      %v3996 = vpop.permute.xlu0 %3995
      %3997 = vrot.lane.b32.xlu0 %v648, 108
      %v3998 = vpop.permute.xlu0 %3997
      %3999 = vrot.lane.b32.xlu0 %v653, 108
      %v4000 = vpop.permute.xlu0 %3999
      %4001 = vrot.lane.b32.xlu0 %v658, 108
      %v4002 = vpop.permute.xlu0 %4001
      %4003 = vrot.lane.b32.xlu0 %v638, 76
      %v4004 = vpop.permute.xlu0 %4003
      %4005 = vrot.lane.b32.xlu0 %v643, 76
      %v4006 = vpop.permute.xlu0 %4005
      %4007 = vrot.lane.b32.xlu0 %v648, 76
      %v4008 = vpop.permute.xlu0 %4007
      %4009 = vrot.lane.b32.xlu0 %v653, 76
      %v4010 = vpop.permute.xlu0 %4009
      %4011 = vrot.lane.b32.xlu0 %v658, 76
      %v4012 = vpop.permute.xlu0 %4011
      %v4013 = vsel %vm736, %v3994, 0
      %v4015 = vsel %vm736, %v3996, 0
      %v4017 = vsel %vm736, %v3998, 0
      %v4019 = vsel %vm736, %v4000, 0
      %v4021 = vsel %vm736, %v4002, 0
      %v4023 = vsel %vm736, %v4004, 0
      %v4025 = vsel %vm736, %v4006, 0
      %v4027 = vsel %vm736, %v4008, 0
      %v4029 = vsel %vm736, %v4010, 0
      %v4031 = vsel %vm736, %v4012, 0
      %4033 = vmatprep.subr.mxu0 0.0
      %4034 = vmatpush1.xpose.msra.mxu0 %v4023
      %4035 = vmatprep.subr.mxu0 0.0
      %4036 = vmatpush1.xpose.msra.mxu0 %v4025
      %4037 = vmatprep.subr.mxu0 0.0
      %4038 = vmatpush1.xpose.msra.mxu0 %v4027
      %4039 = vmatprep.subr.mxu0 0.0
      %4040 = vmatpush1.xpose.msra.mxu0 %v4029
      %4041 = vmatprep.subr.mxu0 0.0
      %4042 = vmatpush1.xpose.msra.mxu0 %v4031
      %4043 = vmatprep.subr.mxu0 0.0
      %4044 = vmatpush1.xpose.msra.mxu0 0.0
      %4045 = vmatprep.subr.mxu0 0.0
      %4046 = vmatpush1.xpose.msra.mxu0 0.0
      %4047 = vmatprep.subr.mxu0 0.0
      %4048 = vmatpush1.xpose.msra.mxu0 0.0
      %4049 = vmatprep.subr.mxu0 0.0
      %4050 = vmatpush1.xpose.msra.mxu0 0.0
      %4051 = vmatprep.subr.mxu0 0.0
      %4052 = vmatpush1.xpose.msra.mxu0 0.0
      %4053 = vmatprep.subr.mxu0 0.0
      %4054 = vmatpush1.xpose.msra.mxu0 0.0
      %4055 = vmatprep.subr.mxu0 0.0
      %4056 = vmatpush1.xpose.msra.mxu0 0.0
      %4057 = vmatprep.subr.mxu0 0.0
      %4058 = vmatpush1.xpose.msra.mxu0 0.0
      %4059 = vmatprep.subr.mxu0 0.0
      %4060 = vmatpush1.xpose.msra.mxu0 0.0
      %4061 = vmatprep.subr.mxu0 0.0
      %4062 = vmatpush1.xpose.msra.mxu0 0.0
      %4063 = vmatprep.subr.mxu0 0.0
      %4064 = vmatpush1.xpose.msra.mxu0 0.0
      %4065 = vmatprep.subr.mxu0 0.0
      %4066 = vmatpush1.xpose.msra.mxu0 0.0
      %4067 = vmatprep.subr.mxu0 0.0
      %4068 = vmatpush1.xpose.msra.mxu0 0.0
      %4069 = vmatprep.subr.mxu0 0.0
      %4070 = vmatpush1.xpose.msra.mxu0 0.0
      %4071 = vmatprep.subr.mxu0 0.0
      %4072 = vmatpush1.xpose.msra.mxu0 0.0
      %4073 = vmatprep.subr.mxu0 0.0
      %4074 = vmatpush1.xpose.msra.mxu0 0.0
      %4075 = vmatprep.subr.mxu0 0.0
      %4076 = vmatpush1.xpose.msra.mxu0 0.0
      %4077 = vmatprep.subr.mxu0 0.0
      %4078 = vmatpush1.xpose.msra.mxu0 0.0
      %4079 = vmatprep.subr.mxu0 0.0
      %4080 = vmatpush1.xpose.msra.mxu0 0.0
      %4081 = vmatprep.subr.mxu0 0.0
      %4082 = vmatpush1.xpose.msra.mxu0 0.0
      %4083 = vmatprep.subr.mxu0 0.0
      %4084 = vmatpush1.xpose.msra.mxu0 0.0
      %4085 = vmatprep.subr.mxu0 0.0
      %4086 = vmatpush1.xpose.msra.mxu0 0.0
      %4087 = vmatprep.subr.mxu0 0.0
      %4088 = vmatpush1.xpose.msra.mxu0 0.0
      %4089 = vmatprep.subr.mxu0 0.0
      %4090 = vmatpush1.xpose.msra.mxu0 0.0
      %4091 = vmatprep.subr.mxu0 0.0
      %4092 = vmatpush1.xpose.msra.mxu0 0.0
      %4093 = vmatprep.subr.mxu0 0.0
      %4094 = vmatpush1.xpose.msra.mxu0 0.0
      %4095 = vmatprep.subr.mxu0 0.0
      %4096 = vmatpush1.xpose.msra.mxu0 0.0
      %4097 = vmatprep.mubr.f32.mxu0 0.0
      %4098 = vmatmul.mubr.f32.gmra.mrb[0].mxu0 %v4013
      %v4099 = vpop.f32.mrb[0].mxu0
      %v4100 = vadd.f32 0.0, %v4099
      %v4101 = vpop.f32.mrb[0].mxu0
      %4102 = vmatprep.mubr.f32.mxu0 0.0
      %4103 = vmatmul.mubr.f32.gmra.mrb[0].mxu0 %v4015
      %v4104 = vpop.f32.mrb[0].mxu0
      %v4105 = vadd.f32 0.0, %v4104
      %v4106 = vpop.f32.mrb[0].mxu0
      %4107 = vmatprep.mubr.f32.mxu0 0.0
      %4108 = vmatmul.mubr.f32.gmra.mrb[0].mxu0 %v4017
      %v4109 = vpop.f32.mrb[0].mxu0
      %v4110 = vadd.f32 0.0, %v4109
      %v4111 = vpop.f32.mrb[0].mxu0
      %4112 = vmatprep.mubr.f32.mxu0 0.0
      %4113 = vmatmul.mubr.f32.gmra.mrb[0].mxu0 %v4019
      %v4114 = vpop.f32.mrb[0].mxu0
      %v4115 = vadd.f32 0.0, %v4114
      %v4116 = vpop.f32.mrb[0].mxu0
      %4117 = vmatprep.mubr.f32.mxu0 0.0
      %4118 = vmatmul.mubr.f32.gmra.mrb[0].mxu0 %v4021
      %v4119 = vpop.f32.mrb[0].mxu0
      %v4120 = vadd.f32 0.0, %v4119
      %v4121 = vpop.f32.mrb[0].mxu0
      %4122 = vdwg.mxu0
      %v4123 = vmul.f32 %v3970, 0.5
      %v4124 = vmul.f32 %v3975, 0.5
      %v4125 = vmul.f32 %v3980, 0.5
      %v4126 = vmul.f32 %v3985, 0.5
      %v4127 = vmul.f32 %v3990, 0.5
      %v4128 = vmul.f32 %v4100, 0.5
      %v4129 = vmul.f32 %v4105, 0.5
      %v4130 = vmul.f32 %v4110, 0.5
      %v4131 = vmul.f32 %v4115, 0.5
      %v4132 = vmul.f32 %v4120, 0.5
      %v4133 = vsel %vm711, %v4123, -1e+09
      %v4134 = vsel %vm712, %v4124, -1e+09
      %v4135 = vsel %vm713, %v4125, -1e+09
      %v4136 = vsel %vm714, %v4126, -1e+09
      %v4137 = vsel %vm715, %v4127, -1e+09
      %v4138 = vsel %vm716, %v4128, -1e+09
      %v4139 = vsel %vm717, %v4129, -1e+09
      %v4140 = vsel %vm718, %v4130, -1e+09
      %v4141 = vsel %vm719, %v4131, -1e+09
      %v4142 = vsel %vm720, %v4132, -1e+09
      %v4143 = vsel %vm992, %v4133, -inf
      %4144 = vmax.xlane.f32.xlu0 %v4143
      %v4145 = vpop.xlane.xlu0 %4144
      %v4146 = vsel %vm992, %v4134, -inf
      %4147 = vmax.xlane.f32.xlu0 %v4146
      %v4148 = vpop.xlane.xlu0 %4147
      %v4149 = vsel %vm992, %v4135, -inf
      %4150 = vmax.xlane.f32.xlu0 %v4149
      %v4151 = vpop.xlane.xlu0 %4150
      %v4152 = vsel %vm992, %v4136, -inf
      %4153 = vmax.xlane.f32.xlu0 %v4152
      %v4154 = vpop.xlane.xlu0 %4153
      %v4155 = vsel %vm992, %v4137, -inf
      %4156 = vmax.xlane.f32.xlu0 %v4155
      %v4157 = vpop.xlane.xlu0 %4156
      %v4158 = vsel %vm992, %v4138, -inf
      %4159 = vmax.xlane.f32.xlu0 %v4158
      %v4160 = vpop.xlane.xlu0 %4159
      %v4161 = vsel %vm992, %v4139, -inf
      %4162 = vmax.xlane.f32.xlu0 %v4161
      %v4163 = vpop.xlane.xlu0 %4162
      %v4164 = vsel %vm992, %v4140, -inf
      %4165 = vmax.xlane.f32.xlu0 %v4164
      %v4166 = vpop.xlane.xlu0 %4165
      %v4167 = vsel %vm992, %v4141, -inf
      %4168 = vmax.xlane.f32.xlu0 %v4167
      %v4169 = vpop.xlane.xlu0 %4168
      %v4170 = vsel %vm992, %v4142, -inf
      %4171 = vmax.xlane.f32.xlu0 %v4170
      %v4172 = vpop.xlane.xlu0 %4171
      %v4173 = vsub.f32 %v4133, %v4145
      %v4174 = vsub.f32 %v4134, %v4148
      %v4175 = vsub.f32 %v4135, %v4151
      %v4176 = vsub.f32 %v4136, %v4154
      %v4177 = vsub.f32 %v4137, %v4157
      %v4178 = vsub.f32 %v4138, %v4160
      %v4179 = vsub.f32 %v4139, %v4163
      %v4180 = vsub.f32 %v4140, %v4166
      %v4181 = vsub.f32 %v4141, %v4169
      %v4182 = vsub.f32 %v4142, %v4172
      %v4183 = vmul.f32 %v4173, 1.442695
      %v4184 = vpow.pop %v4183
      %v4185 = vmul.f32 %v4174, 1.442695
      %v4186 = vpow.pop %v4185
      %v4187 = vmul.f32 %v4175, 1.442695
      %v4188 = vpow.pop %v4187
      %v4189 = vmul.f32 %v4176, 1.442695
      %v4190 = vpow.pop %v4189
      %v4191 = vmul.f32 %v4177, 1.442695
      %v4192 = vpow.pop %v4191
      %v4193 = vmul.f32 %v4178, 1.442695
      %v4194 = vpow.pop %v4193
      %v4195 = vmul.f32 %v4179, 1.442695
      %v4196 = vpow.pop %v4195
      %v4197 = vmul.f32 %v4180, 1.442695
      %v4198 = vpow.pop %v4197
      %v4199 = vmul.f32 %v4181, 1.442695
      %v4200 = vpow.pop %v4199
      %v4201 = vmul.f32 %v4182, 1.442695
      %v4202 = vpow.pop %v4201
      %v4203 = vsel %vm992, %v4184, 0.0
      %4204 = vadd.xlane.f32.xlu0 %v4203
      %v4205 = vpop.xlane.xlu0 %4204
      %v4206 = vsel %vm992, %v4186, 0.0
      %4207 = vadd.xlane.f32.xlu0 %v4206
      %v4208 = vpop.xlane.xlu0 %4207
      %v4209 = vsel %vm992, %v4188, 0.0
      %4210 = vadd.xlane.f32.xlu0 %v4209
      %v4211 = vpop.xlane.xlu0 %4210
      %v4212 = vsel %vm992, %v4190, 0.0
      %4213 = vadd.xlane.f32.xlu0 %v4212
      %v4214 = vpop.xlane.xlu0 %4213
      %v4215 = vsel %vm992, %v4192, 0.0
      %4216 = vadd.xlane.f32.xlu0 %v4215
      %v4217 = vpop.xlane.xlu0 %4216
      %v4218 = vsel %vm992, %v4194, 0.0
      %4219 = vadd.xlane.f32.xlu0 %v4218
      %v4220 = vpop.xlane.xlu0 %4219
      %v4221 = vsel %vm992, %v4196, 0.0
      %4222 = vadd.xlane.f32.xlu0 %v4221
      %v4223 = vpop.xlane.xlu0 %4222
      %v4224 = vsel %vm992, %v4198, 0.0
      %4225 = vadd.xlane.f32.xlu0 %v4224
      %v4226 = vpop.xlane.xlu0 %4225
      %v4227 = vsel %vm992, %v4200, 0.0
      %4228 = vadd.xlane.f32.xlu0 %v4227
      %v4229 = vpop.xlane.xlu0 %4228
      %v4230 = vsel %vm992, %v4202, 0.0
      %4231 = vadd.xlane.f32.xlu0 %v4230
      %v4232 = vpop.xlane.xlu0 %4231
      %v4233 = vrcp.pop %v4205
      %v4234 = vrcp.pop %v4208
      %v4235 = vrcp.pop %v4211
      %v4236 = vrcp.pop %v4214
      %v4237 = vrcp.pop %v4217
      %v4238 = vrcp.pop %v4220
      %v4239 = vrcp.pop %v4223
      %v4240 = vrcp.pop %v4226
      %v4241 = vrcp.pop %v4229
      %v4242 = vrcp.pop %v4232
      %v4243 = vmul.f32 %v4184, %v4233
      %v4244 = vmul.f32 %v4186, %v4234
      %v4245 = vmul.f32 %v4188, %v4235
      %v4246 = vmul.f32 %v4190, %v4236
      %v4247 = vmul.f32 %v4192, %v4237
      %v4248 = vmul.f32 %v4194, %v4238
      %v4249 = vmul.f32 %v4196, %v4239
      %v4250 = vmul.f32 %v4198, %v4240
      %v4251 = vmul.f32 %v4200, %v4241
      %v4252 = vmul.f32 %v4202, %v4242
      %4253 = vrot.lane.b32.xlu0 %v613, 44
      %v4254 = vpop.permute.xlu0 %4253
      %4255 = vrot.lane.b32.xlu0 %v618, 44
      %v4256 = vpop.permute.xlu0 %4255
      %4257 = vrot.lane.b32.xlu0 %v623, 44
      %v4258 = vpop.permute.xlu0 %4257
      %4259 = vrot.lane.b32.xlu0 %v628, 44
      %v4260 = vpop.permute.xlu0 %4259
      %4261 = vrot.lane.b32.xlu0 %v633, 44
      %v4262 = vpop.permute.xlu0 %4261
      %v4269 = vsel %vm992, %v4243, 0
      %v4272 = vsel %vm992, %v4244, 0
      %v4275 = vsel %vm992, %v4245, 0
      %v4278 = vsel %vm992, %v4246, 0
      %v4281 = vsel %vm992, %v4247, 0
      %4283 = vmatprep.subr.mxu0 0.0
      %4284 = vmatpush1.msra.mxu0 %v4254
      %4285 = vmatprep.subr.mxu0 0.0
      %4286 = vmatpush1.msra.mxu0 %v4256
      %4287 = vmatprep.subr.mxu0 0.0
      %4288 = vmatpush1.msra.mxu0 %v4258
      %4289 = vmatprep.subr.mxu0 0.0
      %4290 = vmatpush1.msra.mxu0 %v4260
      %4291 = vmatprep.subr.mxu0 0.0
      %4292 = vmatpush1.msra.mxu0 %v4262
      %4293 = vmatprep.subr.mxu0 0.0
      %4294 = vmatpush1.msra.mxu0 0.0
      %4295 = vmatprep.subr.mxu0 0.0
      %4296 = vmatpush1.msra.mxu0 0.0
      %4297 = vmatprep.subr.mxu0 0.0
      %4298 = vmatpush1.msra.mxu0 0.0
      %4299 = vmatprep.subr.mxu0 0.0
      %4300 = vmatpush1.msra.mxu0 0.0
      %4301 = vmatprep.subr.mxu0 0.0
      %4302 = vmatpush1.msra.mxu0 0.0
      %4303 = vmatprep.subr.mxu0 0.0
      %4304 = vmatpush1.msra.mxu0 0.0
      %4305 = vmatprep.subr.mxu0 0.0
      %4306 = vmatpush1.msra.mxu0 0.0
      %4307 = vmatprep.subr.mxu0 0.0
      %4308 = vmatpush1.msra.mxu0 0.0
      %4309 = vmatprep.subr.mxu0 0.0
      %4310 = vmatpush1.msra.mxu0 0.0
      %4311 = vmatprep.subr.mxu0 0.0
      %4312 = vmatpush1.msra.mxu0 0.0
      %4313 = vmatprep.subr.mxu0 0.0
      %4314 = vmatpush1.msra.mxu0 0.0
      %4315 = vmatprep.subr.mxu0 0.0
      %4316 = vmatpush1.msra.mxu0 0.0
      %4317 = vmatprep.subr.mxu0 0.0
      %4318 = vmatpush1.msra.mxu0 0.0
      %4319 = vmatprep.subr.mxu0 0.0
      %4320 = vmatpush1.msra.mxu0 0.0
      %4321 = vmatprep.subr.mxu0 0.0
      %4322 = vmatpush1.msra.mxu0 0.0
      %4323 = vmatprep.subr.mxu0 0.0
      %4324 = vmatpush1.msra.mxu0 0.0
      %4325 = vmatprep.subr.mxu0 0.0
      %4326 = vmatpush1.msra.mxu0 0.0
      %4327 = vmatprep.subr.mxu0 0.0
      %4328 = vmatpush1.msra.mxu0 0.0
      %4329 = vmatprep.subr.mxu0 0.0
      %4330 = vmatpush1.msra.mxu0 0.0
      %4331 = vmatprep.subr.mxu0 0.0
      %4332 = vmatpush1.msra.mxu0 0.0
      %4333 = vmatprep.subr.mxu0 0.0
      %4334 = vmatpush1.msra.mxu0 0.0
      %4335 = vmatprep.subr.mxu0 0.0
      %4336 = vmatpush1.msra.mxu0 0.0
      %4337 = vmatprep.subr.mxu0 0.0
      %4338 = vmatpush1.msra.mxu0 0.0
      %4339 = vmatprep.subr.mxu0 0.0
      %4340 = vmatpush1.msra.mxu0 0.0
      %4341 = vmatprep.subr.mxu0 0.0
      %4342 = vmatpush1.msra.mxu0 0.0
      %4343 = vmatprep.subr.mxu0 0.0
      %4344 = vmatpush1.msra.mxu0 0.0
      %4345 = vmatprep.subr.mxu0 0.0
      %4346 = vmatpush1.msra.mxu0 0.0
      %4347 = vmatprep.mubr.f32.mxu0 0.0
      %4348 = vmatmul.mubr.f32.gmra.mrb[0].mxu0 %v4269
      %v4349 = vpop.f32.mrb[0].mxu0
      %v4350 = vadd.f32 0.0, %v4349
      %v4351 = vpop.f32.mrb[0].mxu0
      %4352 = vmatprep.mubr.f32.mxu0 0.0
      %4353 = vmatmul.mubr.f32.gmra.mrb[0].mxu0 %v4272
      %v4354 = vpop.f32.mrb[0].mxu0
      %v4355 = vadd.f32 0.0, %v4354
      %v4356 = vpop.f32.mrb[0].mxu0
      %4357 = vmatprep.mubr.f32.mxu0 0.0
      %4358 = vmatmul.mubr.f32.gmra.mrb[0].mxu0 %v4275
      %v4359 = vpop.f32.mrb[0].mxu0
      %v4360 = vadd.f32 0.0, %v4359
      %v4361 = vpop.f32.mrb[0].mxu0
      %4362 = vmatprep.mubr.f32.mxu0 0.0
      %4363 = vmatmul.mubr.f32.gmra.mrb[0].mxu0 %v4278
      %v4364 = vpop.f32.mrb[0].mxu0
      %v4365 = vadd.f32 0.0, %v4364
      %v4366 = vpop.f32.mrb[0].mxu0
      %4367 = vmatprep.mubr.f32.mxu0 0.0
      %4368 = vmatmul.mubr.f32.gmra.mrb[0].mxu0 %v4281
      %v4369 = vpop.f32.mrb[0].mxu0
      %v4370 = vadd.f32 0.0, %v4369
      %v4371 = vpop.f32.mrb[0].mxu0
      %4372 = vdwg.mxu0
      %4373 = vrot.lane.b32.xlu0 %v638, 44
      %v4374 = vpop.permute.xlu0 %4373
      %4375 = vrot.lane.b32.xlu0 %v643, 44
      %v4376 = vpop.permute.xlu0 %4375
      %4377 = vrot.lane.b32.xlu0 %v648, 44
      %v4378 = vpop.permute.xlu0 %4377
      %4379 = vrot.lane.b32.xlu0 %v653, 44
      %v4380 = vpop.permute.xlu0 %4379
      %4381 = vrot.lane.b32.xlu0 %v658, 44
      %v4382 = vpop.permute.xlu0 %4381
      %v4389 = vsel %vm992, %v4248, 0
      %v4392 = vsel %vm992, %v4249, 0
      %v4395 = vsel %vm992, %v4250, 0
      %v4398 = vsel %vm992, %v4251, 0
      %v4401 = vsel %vm992, %v4252, 0
      %4403 = vmatprep.subr.mxu0 0.0
      %4404 = vmatpush1.msra.mxu0 %v4374
      %4405 = vmatprep.subr.mxu0 0.0
      %4406 = vmatpush1.msra.mxu0 %v4376
      %4407 = vmatprep.subr.mxu0 0.0
      %4408 = vmatpush1.msra.mxu0 %v4378
      %4409 = vmatprep.subr.mxu0 0.0
      %4410 = vmatpush1.msra.mxu0 %v4380
      %4411 = vmatprep.subr.mxu0 0.0
      %4412 = vmatpush1.msra.mxu0 %v4382
      %4413 = vmatprep.subr.mxu0 0.0
      %4414 = vmatpush1.msra.mxu0 0.0
      %4415 = vmatprep.subr.mxu0 0.0
      %4416 = vmatpush1.msra.mxu0 0.0
      %4417 = vmatprep.subr.mxu0 0.0
      %4418 = vmatpush1.msra.mxu0 0.0
      %4419 = vmatprep.subr.mxu0 0.0
      %4420 = vmatpush1.msra.mxu0 0.0
      %4421 = vmatprep.subr.mxu0 0.0
      %4422 = vmatpush1.msra.mxu0 0.0
      %4423 = vmatprep.subr.mxu0 0.0
      %4424 = vmatpush1.msra.mxu0 0.0
      %4425 = vmatprep.subr.mxu0 0.0
      %4426 = vmatpush1.msra.mxu0 0.0
      %4427 = vmatprep.subr.mxu0 0.0
      %4428 = vmatpush1.msra.mxu0 0.0
      %4429 = vmatprep.subr.mxu0 0.0
      %4430 = vmatpush1.msra.mxu0 0.0
      %4431 = vmatprep.subr.mxu0 0.0
      %4432 = vmatpush1.msra.mxu0 0.0
      %4433 = vmatprep.subr.mxu0 0.0
      %4434 = vmatpush1.msra.mxu0 0.0
      %4435 = vmatprep.subr.mxu0 0.0
      %4436 = vmatpush1.msra.mxu0 0.0
      %4437 = vmatprep.subr.mxu0 0.0
      %4438 = vmatpush1.msra.mxu0 0.0
      %4439 = vmatprep.subr.mxu0 0.0
      %4440 = vmatpush1.msra.mxu0 0.0
      %4441 = vmatprep.subr.mxu0 0.0
      %4442 = vmatpush1.msra.mxu0 0.0
      %4443 = vmatprep.subr.mxu0 0.0
      %4444 = vmatpush1.msra.mxu0 0.0
      %4445 = vmatprep.subr.mxu0 0.0
      %4446 = vmatpush1.msra.mxu0 0.0
      %4447 = vmatprep.subr.mxu0 0.0
      %4448 = vmatpush1.msra.mxu0 0.0
      %4449 = vmatprep.subr.mxu0 0.0
      %4450 = vmatpush1.msra.mxu0 0.0
      %4451 = vmatprep.subr.mxu0 0.0
      %4452 = vmatpush1.msra.mxu0 0.0
      %4453 = vmatprep.subr.mxu0 0.0
      %4454 = vmatpush1.msra.mxu0 0.0
      %4455 = vmatprep.subr.mxu0 0.0
      %4456 = vmatpush1.msra.mxu0 0.0
      %4457 = vmatprep.subr.mxu0 0.0
      %4458 = vmatpush1.msra.mxu0 0.0
      %4459 = vmatprep.subr.mxu0 0.0
      %4460 = vmatpush1.msra.mxu0 0.0
      %4461 = vmatprep.subr.mxu0 0.0
      %4462 = vmatpush1.msra.mxu0 0.0
      %4463 = vmatprep.subr.mxu0 0.0
      %4464 = vmatpush1.msra.mxu0 0.0
      %4465 = vmatprep.subr.mxu0 0.0
      %4466 = vmatpush1.msra.mxu0 0.0
      %4467 = vmatprep.mubr.f32.mxu0 0.0
      %4468 = vmatmul.mubr.f32.gmra.mrb[0].mxu0 %v4389
      %v4469 = vpop.f32.mrb[0].mxu0
      %v4470 = vadd.f32 0.0, %v4469
      %v4471 = vpop.f32.mrb[0].mxu0
      %4472 = vmatprep.mubr.f32.mxu0 0.0
      %4473 = vmatmul.mubr.f32.gmra.mrb[0].mxu0 %v4392
      %v4474 = vpop.f32.mrb[0].mxu0
      %v4475 = vadd.f32 0.0, %v4474
      %v4476 = vpop.f32.mrb[0].mxu0
      %4477 = vmatprep.mubr.f32.mxu0 0.0
      %4478 = vmatmul.mubr.f32.gmra.mrb[0].mxu0 %v4395
      %v4479 = vpop.f32.mrb[0].mxu0
      %v4480 = vadd.f32 0.0, %v4479
      %v4481 = vpop.f32.mrb[0].mxu0
      %4482 = vmatprep.mubr.f32.mxu0 0.0
      %4483 = vmatmul.mubr.f32.gmra.mrb[0].mxu0 %v4398
      %v4484 = vpop.f32.mrb[0].mxu0
      %v4485 = vadd.f32 0.0, %v4484
      %v4486 = vpop.f32.mrb[0].mxu0
      %4487 = vmatprep.mubr.f32.mxu0 0.0
      %4488 = vmatmul.mubr.f32.gmra.mrb[0].mxu0 %v4401
      %v4489 = vpop.f32.mrb[0].mxu0
      %v4490 = vadd.f32 0.0, %v4489
      %v4491 = vpop.f32.mrb[0].mxu0
      %4492 = vdwg.mxu0
      %4493 = vrot.lane.b32.xlu0 %v613, 104
      %v4494 = vpop.permute.xlu0 %4493
      %4495 = vrot.lane.b32.xlu0 %v618, 104
      %v4496 = vpop.permute.xlu0 %4495
      %4497 = vrot.lane.b32.xlu0 %v623, 104
      %v4498 = vpop.permute.xlu0 %4497
      %4499 = vrot.lane.b32.xlu0 %v628, 104
      %v4500 = vpop.permute.xlu0 %4499
      %4501 = vrot.lane.b32.xlu0 %v633, 104
      %v4502 = vpop.permute.xlu0 %4501
      %4503 = vrot.lane.b32.xlu0 %v613, 72
      %v4504 = vpop.permute.xlu0 %4503
      %4505 = vrot.lane.b32.xlu0 %v618, 72
      %v4506 = vpop.permute.xlu0 %4505
      %4507 = vrot.lane.b32.xlu0 %v623, 72
      %v4508 = vpop.permute.xlu0 %4507
      %4509 = vrot.lane.b32.xlu0 %v628, 72
      %v4510 = vpop.permute.xlu0 %4509
      %4511 = vrot.lane.b32.xlu0 %v633, 72
      %v4512 = vpop.permute.xlu0 %4511
      %v4513 = vsel %vm736, %v4494, 0
      %v4515 = vsel %vm736, %v4496, 0
      %v4517 = vsel %vm736, %v4498, 0
      %v4519 = vsel %vm736, %v4500, 0
      %v4521 = vsel %vm736, %v4502, 0
      %v4523 = vsel %vm736, %v4504, 0
      %v4525 = vsel %vm736, %v4506, 0
      %v4527 = vsel %vm736, %v4508, 0
      %v4529 = vsel %vm736, %v4510, 0
      %v4531 = vsel %vm736, %v4512, 0
      %4533 = vmatprep.subr.mxu0 0.0
      %4534 = vmatpush1.xpose.msra.mxu0 %v4523
      %4535 = vmatprep.subr.mxu0 0.0
      %4536 = vmatpush1.xpose.msra.mxu0 %v4525
      %4537 = vmatprep.subr.mxu0 0.0
      %4538 = vmatpush1.xpose.msra.mxu0 %v4527
      %4539 = vmatprep.subr.mxu0 0.0
      %4540 = vmatpush1.xpose.msra.mxu0 %v4529
      %4541 = vmatprep.subr.mxu0 0.0
      %4542 = vmatpush1.xpose.msra.mxu0 %v4531
      %4543 = vmatprep.subr.mxu0 0.0
      %4544 = vmatpush1.xpose.msra.mxu0 0.0
      %4545 = vmatprep.subr.mxu0 0.0
      %4546 = vmatpush1.xpose.msra.mxu0 0.0
      %4547 = vmatprep.subr.mxu0 0.0
      %4548 = vmatpush1.xpose.msra.mxu0 0.0
      %4549 = vmatprep.subr.mxu0 0.0
      %4550 = vmatpush1.xpose.msra.mxu0 0.0
      %4551 = vmatprep.subr.mxu0 0.0
      %4552 = vmatpush1.xpose.msra.mxu0 0.0
      %4553 = vmatprep.subr.mxu0 0.0
      %4554 = vmatpush1.xpose.msra.mxu0 0.0
      %4555 = vmatprep.subr.mxu0 0.0
      %4556 = vmatpush1.xpose.msra.mxu0 0.0
      %4557 = vmatprep.subr.mxu0 0.0
      %4558 = vmatpush1.xpose.msra.mxu0 0.0
      %4559 = vmatprep.subr.mxu0 0.0
      %4560 = vmatpush1.xpose.msra.mxu0 0.0
      %4561 = vmatprep.subr.mxu0 0.0
      %4562 = vmatpush1.xpose.msra.mxu0 0.0
      %4563 = vmatprep.subr.mxu0 0.0
      %4564 = vmatpush1.xpose.msra.mxu0 0.0
      %4565 = vmatprep.subr.mxu0 0.0
      %4566 = vmatpush1.xpose.msra.mxu0 0.0
      %4567 = vmatprep.subr.mxu0 0.0
      %4568 = vmatpush1.xpose.msra.mxu0 0.0
      %4569 = vmatprep.subr.mxu0 0.0
      %4570 = vmatpush1.xpose.msra.mxu0 0.0
      %4571 = vmatprep.subr.mxu0 0.0
      %4572 = vmatpush1.xpose.msra.mxu0 0.0
      %4573 = vmatprep.subr.mxu0 0.0
      %4574 = vmatpush1.xpose.msra.mxu0 0.0
      %4575 = vmatprep.subr.mxu0 0.0
      %4576 = vmatpush1.xpose.msra.mxu0 0.0
      %4577 = vmatprep.subr.mxu0 0.0
      %4578 = vmatpush1.xpose.msra.mxu0 0.0
      %4579 = vmatprep.subr.mxu0 0.0
      %4580 = vmatpush1.xpose.msra.mxu0 0.0
      %4581 = vmatprep.subr.mxu0 0.0
      %4582 = vmatpush1.xpose.msra.mxu0 0.0
      %4583 = vmatprep.subr.mxu0 0.0
      %4584 = vmatpush1.xpose.msra.mxu0 0.0
      %4585 = vmatprep.subr.mxu0 0.0
      %4586 = vmatpush1.xpose.msra.mxu0 0.0
      %4587 = vmatprep.subr.mxu0 0.0
      %4588 = vmatpush1.xpose.msra.mxu0 0.0
      %4589 = vmatprep.subr.mxu0 0.0
      %4590 = vmatpush1.xpose.msra.mxu0 0.0
      %4591 = vmatprep.subr.mxu0 0.0
      %4592 = vmatpush1.xpose.msra.mxu0 0.0
      %4593 = vmatprep.subr.mxu0 0.0
      %4594 = vmatpush1.xpose.msra.mxu0 0.0
      %4595 = vmatprep.subr.mxu0 0.0
      %4596 = vmatpush1.xpose.msra.mxu0 0.0
      %4597 = vmatprep.mubr.f32.mxu0 0.0
      %4598 = vmatmul.mubr.f32.gmra.mrb[0].mxu0 %v4513
      %v4599 = vpop.f32.mrb[0].mxu0
      %v4600 = vadd.f32 0.0, %v4599
      %v4601 = vpop.f32.mrb[0].mxu0
      %4602 = vmatprep.mubr.f32.mxu0 0.0
      %4603 = vmatmul.mubr.f32.gmra.mrb[0].mxu0 %v4515
      %v4604 = vpop.f32.mrb[0].mxu0
      %v4605 = vadd.f32 0.0, %v4604
      %v4606 = vpop.f32.mrb[0].mxu0
      %4607 = vmatprep.mubr.f32.mxu0 0.0
      %4608 = vmatmul.mubr.f32.gmra.mrb[0].mxu0 %v4517
      %v4609 = vpop.f32.mrb[0].mxu0
      %v4610 = vadd.f32 0.0, %v4609
      %v4611 = vpop.f32.mrb[0].mxu0
      %4612 = vmatprep.mubr.f32.mxu0 0.0
      %4613 = vmatmul.mubr.f32.gmra.mrb[0].mxu0 %v4519
      %v4614 = vpop.f32.mrb[0].mxu0
      %v4615 = vadd.f32 0.0, %v4614
      %v4616 = vpop.f32.mrb[0].mxu0
      %4617 = vmatprep.mubr.f32.mxu0 0.0
      %4618 = vmatmul.mubr.f32.gmra.mrb[0].mxu0 %v4521
      %v4619 = vpop.f32.mrb[0].mxu0
      %v4620 = vadd.f32 0.0, %v4619
      %v4621 = vpop.f32.mrb[0].mxu0
      %4622 = vdwg.mxu0
      %4623 = vrot.lane.b32.xlu0 %v638, 104
      %v4624 = vpop.permute.xlu0 %4623
      %4625 = vrot.lane.b32.xlu0 %v643, 104
      %v4626 = vpop.permute.xlu0 %4625
      %4627 = vrot.lane.b32.xlu0 %v648, 104
      %v4628 = vpop.permute.xlu0 %4627
      %4629 = vrot.lane.b32.xlu0 %v653, 104
      %v4630 = vpop.permute.xlu0 %4629
      %4631 = vrot.lane.b32.xlu0 %v658, 104
      %v4632 = vpop.permute.xlu0 %4631
      %4633 = vrot.lane.b32.xlu0 %v638, 72
      %v4634 = vpop.permute.xlu0 %4633
      %4635 = vrot.lane.b32.xlu0 %v643, 72
      %v4636 = vpop.permute.xlu0 %4635
      %4637 = vrot.lane.b32.xlu0 %v648, 72
      %v4638 = vpop.permute.xlu0 %4637
      %4639 = vrot.lane.b32.xlu0 %v653, 72
      %v4640 = vpop.permute.xlu0 %4639
      %4641 = vrot.lane.b32.xlu0 %v658, 72
      %v4642 = vpop.permute.xlu0 %4641
      %v4643 = vsel %vm736, %v4624, 0
      %v4645 = vsel %vm736, %v4626, 0
      %v4647 = vsel %vm736, %v4628, 0
      %v4649 = vsel %vm736, %v4630, 0
      %v4651 = vsel %vm736, %v4632, 0
      %v4653 = vsel %vm736, %v4634, 0
      %v4655 = vsel %vm736, %v4636, 0
      %v4657 = vsel %vm736, %v4638, 0
      %v4659 = vsel %vm736, %v4640, 0
      %v4661 = vsel %vm736, %v4642, 0
      %4663 = vmatprep.subr.mxu0 0.0
      %4664 = vmatpush1.xpose.msra.mxu0 %v4653
      %4665 = vmatprep.subr.mxu0 0.0
      %4666 = vmatpush1.xpose.msra.mxu0 %v4655
      %4667 = vmatprep.subr.mxu0 0.0
      %4668 = vmatpush1.xpose.msra.mxu0 %v4657
      %4669 = vmatprep.subr.mxu0 0.0
      %4670 = vmatpush1.xpose.msra.mxu0 %v4659
      %4671 = vmatprep.subr.mxu0 0.0
      %4672 = vmatpush1.xpose.msra.mxu0 %v4661
      %4673 = vmatprep.subr.mxu0 0.0
      %4674 = vmatpush1.xpose.msra.mxu0 0.0
      %4675 = vmatprep.subr.mxu0 0.0
      %4676 = vmatpush1.xpose.msra.mxu0 0.0
      %4677 = vmatprep.subr.mxu0 0.0
      %4678 = vmatpush1.xpose.msra.mxu0 0.0
      %4679 = vmatprep.subr.mxu0 0.0
      %4680 = vmatpush1.xpose.msra.mxu0 0.0
      %4681 = vmatprep.subr.mxu0 0.0
      %4682 = vmatpush1.xpose.msra.mxu0 0.0
      %4683 = vmatprep.subr.mxu0 0.0
      %4684 = vmatpush1.xpose.msra.mxu0 0.0
      %4685 = vmatprep.subr.mxu0 0.0
      %4686 = vmatpush1.xpose.msra.mxu0 0.0
      %4687 = vmatprep.subr.mxu0 0.0
      %4688 = vmatpush1.xpose.msra.mxu0 0.0
      %4689 = vmatprep.subr.mxu0 0.0
      %4690 = vmatpush1.xpose.msra.mxu0 0.0
      %4691 = vmatprep.subr.mxu0 0.0
      %4692 = vmatpush1.xpose.msra.mxu0 0.0
      %4693 = vmatprep.subr.mxu0 0.0
      %4694 = vmatpush1.xpose.msra.mxu0 0.0
      %4695 = vmatprep.subr.mxu0 0.0
      %4696 = vmatpush1.xpose.msra.mxu0 0.0
      %4697 = vmatprep.subr.mxu0 0.0
      %4698 = vmatpush1.xpose.msra.mxu0 0.0
      %4699 = vmatprep.subr.mxu0 0.0
      %4700 = vmatpush1.xpose.msra.mxu0 0.0
      %4701 = vmatprep.subr.mxu0 0.0
      %4702 = vmatpush1.xpose.msra.mxu0 0.0
      %4703 = vmatprep.subr.mxu0 0.0
      %4704 = vmatpush1.xpose.msra.mxu0 0.0
      %4705 = vmatprep.subr.mxu0 0.0
      %4706 = vmatpush1.xpose.msra.mxu0 0.0
      %4707 = vmatprep.subr.mxu0 0.0
      %4708 = vmatpush1.xpose.msra.mxu0 0.0
      %4709 = vmatprep.subr.mxu0 0.0
      %4710 = vmatpush1.xpose.msra.mxu0 0.0
      %4711 = vmatprep.subr.mxu0 0.0
      %4712 = vmatpush1.xpose.msra.mxu0 0.0
      %4713 = vmatprep.subr.mxu0 0.0
      %4714 = vmatpush1.xpose.msra.mxu0 0.0
      %4715 = vmatprep.subr.mxu0 0.0
      %4716 = vmatpush1.xpose.msra.mxu0 0.0
      %4717 = vmatprep.subr.mxu0 0.0
      %4718 = vmatpush1.xpose.msra.mxu0 0.0
      %4719 = vmatprep.subr.mxu0 0.0
      %4720 = vmatpush1.xpose.msra.mxu0 0.0
      %4721 = vmatprep.subr.mxu0 0.0
      %4722 = vmatpush1.xpose.msra.mxu0 0.0
      %4723 = vmatprep.subr.mxu0 0.0
      %4724 = vmatpush1.xpose.msra.mxu0 0.0
      %4725 = vmatprep.subr.mxu0 0.0
      %4726 = vmatpush1.xpose.msra.mxu0 0.0
      %4727 = vmatprep.mubr.f32.mxu0 0.0
      %4728 = vmatmul.mubr.f32.gmra.mrb[0].mxu0 %v4643
      %v4729 = vpop.f32.mrb[0].mxu0
      %v4730 = vadd.f32 0.0, %v4729
      %v4731 = vpop.f32.mrb[0].mxu0
      %4732 = vmatprep.mubr.f32.mxu0 0.0
      %4733 = vmatmul.mubr.f32.gmra.mrb[0].mxu0 %v4645
      %v4734 = vpop.f32.mrb[0].mxu0
      %v4735 = vadd.f32 0.0, %v4734
      %v4736 = vpop.f32.mrb[0].mxu0
      %4737 = vmatprep.mubr.f32.mxu0 0.0
      %4738 = vmatmul.mubr.f32.gmra.mrb[0].mxu0 %v4647
      %v4739 = vpop.f32.mrb[0].mxu0
      %v4740 = vadd.f32 0.0, %v4739
      %v4741 = vpop.f32.mrb[0].mxu0
      %4742 = vmatprep.mubr.f32.mxu0 0.0
      %4743 = vmatmul.mubr.f32.gmra.mrb[0].mxu0 %v4649
      %v4744 = vpop.f32.mrb[0].mxu0
      %v4745 = vadd.f32 0.0, %v4744
      %v4746 = vpop.f32.mrb[0].mxu0
      %4747 = vmatprep.mubr.f32.mxu0 0.0
      %4748 = vmatmul.mubr.f32.gmra.mrb[0].mxu0 %v4651
      %v4749 = vpop.f32.mrb[0].mxu0
      %v4750 = vadd.f32 0.0, %v4749
      %v4751 = vpop.f32.mrb[0].mxu0
      %4752 = vdwg.mxu0
      %v4753 = vmul.f32 %v4600, 0.5
      %v4754 = vmul.f32 %v4605, 0.5
      %v4755 = vmul.f32 %v4610, 0.5
      %v4756 = vmul.f32 %v4615, 0.5
      %v4757 = vmul.f32 %v4620, 0.5
      %v4758 = vmul.f32 %v4730, 0.5
      %v4759 = vmul.f32 %v4735, 0.5
      %v4760 = vmul.f32 %v4740, 0.5
      %v4761 = vmul.f32 %v4745, 0.5
      %v4762 = vmul.f32 %v4750, 0.5
      %v4763 = vsel %vm711, %v4753, -1e+09
      %v4764 = vsel %vm712, %v4754, -1e+09
      %v4765 = vsel %vm713, %v4755, -1e+09
      %v4766 = vsel %vm714, %v4756, -1e+09
      %v4767 = vsel %vm715, %v4757, -1e+09
      %v4768 = vsel %vm716, %v4758, -1e+09
      %v4769 = vsel %vm717, %v4759, -1e+09
      %v4770 = vsel %vm718, %v4760, -1e+09
      %v4771 = vsel %vm719, %v4761, -1e+09
      %v4772 = vsel %vm720, %v4762, -1e+09
      %v4773 = vsel %vm992, %v4763, -inf
      %4774 = vmax.xlane.f32.xlu0 %v4773
      %v4775 = vpop.xlane.xlu0 %4774
      %v4776 = vsel %vm992, %v4764, -inf
      %4777 = vmax.xlane.f32.xlu0 %v4776
      %v4778 = vpop.xlane.xlu0 %4777
      %v4779 = vsel %vm992, %v4765, -inf
      %4780 = vmax.xlane.f32.xlu0 %v4779
      %v4781 = vpop.xlane.xlu0 %4780
      %v4782 = vsel %vm992, %v4766, -inf
      %4783 = vmax.xlane.f32.xlu0 %v4782
      %v4784 = vpop.xlane.xlu0 %4783
      %v4785 = vsel %vm992, %v4767, -inf
      %4786 = vmax.xlane.f32.xlu0 %v4785
      %v4787 = vpop.xlane.xlu0 %4786
      %v4788 = vsel %vm992, %v4768, -inf
      %4789 = vmax.xlane.f32.xlu0 %v4788
      %v4790 = vpop.xlane.xlu0 %4789
      %v4791 = vsel %vm992, %v4769, -inf
      %4792 = vmax.xlane.f32.xlu0 %v4791
      %v4793 = vpop.xlane.xlu0 %4792
      %v4794 = vsel %vm992, %v4770, -inf
      %4795 = vmax.xlane.f32.xlu0 %v4794
      %v4796 = vpop.xlane.xlu0 %4795
      %v4797 = vsel %vm992, %v4771, -inf
      %4798 = vmax.xlane.f32.xlu0 %v4797
      %v4799 = vpop.xlane.xlu0 %4798
      %v4800 = vsel %vm992, %v4772, -inf
      %4801 = vmax.xlane.f32.xlu0 %v4800
      %v4802 = vpop.xlane.xlu0 %4801
      %v4803 = vsub.f32 %v4763, %v4775
      %v4804 = vsub.f32 %v4764, %v4778
      %v4805 = vsub.f32 %v4765, %v4781
      %v4806 = vsub.f32 %v4766, %v4784
      %v4807 = vsub.f32 %v4767, %v4787
      %v4808 = vsub.f32 %v4768, %v4790
      %v4809 = vsub.f32 %v4769, %v4793
      %v4810 = vsub.f32 %v4770, %v4796
      %v4811 = vsub.f32 %v4771, %v4799
      %v4812 = vsub.f32 %v4772, %v4802
      %v4813 = vmul.f32 %v4803, 1.442695
      %v4814 = vpow.pop %v4813
      %v4815 = vmul.f32 %v4804, 1.442695
      %v4816 = vpow.pop %v4815
      %v4817 = vmul.f32 %v4805, 1.442695
      %v4818 = vpow.pop %v4817
      %v4819 = vmul.f32 %v4806, 1.442695
      %v4820 = vpow.pop %v4819
      %v4821 = vmul.f32 %v4807, 1.442695
      %v4822 = vpow.pop %v4821
      %v4823 = vmul.f32 %v4808, 1.442695
      %v4824 = vpow.pop %v4823
      %v4825 = vmul.f32 %v4809, 1.442695
      %v4826 = vpow.pop %v4825
      %v4827 = vmul.f32 %v4810, 1.442695
      %v4828 = vpow.pop %v4827
      %v4829 = vmul.f32 %v4811, 1.442695
      %v4830 = vpow.pop %v4829
      %v4831 = vmul.f32 %v4812, 1.442695
      %v4832 = vpow.pop %v4831
      %v4833 = vsel %vm992, %v4814, 0.0
      %4834 = vadd.xlane.f32.xlu0 %v4833
      %v4835 = vpop.xlane.xlu0 %4834
      %v4836 = vsel %vm992, %v4816, 0.0
      %4837 = vadd.xlane.f32.xlu0 %v4836
      %v4838 = vpop.xlane.xlu0 %4837
      %v4839 = vsel %vm992, %v4818, 0.0
      %4840 = vadd.xlane.f32.xlu0 %v4839
      %v4841 = vpop.xlane.xlu0 %4840
      %v4842 = vsel %vm992, %v4820, 0.0
      %4843 = vadd.xlane.f32.xlu0 %v4842
      %v4844 = vpop.xlane.xlu0 %4843
      %v4845 = vsel %vm992, %v4822, 0.0
      %4846 = vadd.xlane.f32.xlu0 %v4845
      %v4847 = vpop.xlane.xlu0 %4846
      %v4848 = vsel %vm992, %v4824, 0.0
      %4849 = vadd.xlane.f32.xlu0 %v4848
      %v4850 = vpop.xlane.xlu0 %4849
      %v4851 = vsel %vm992, %v4826, 0.0
      %4852 = vadd.xlane.f32.xlu0 %v4851
      %v4853 = vpop.xlane.xlu0 %4852
      %v4854 = vsel %vm992, %v4828, 0.0
      %4855 = vadd.xlane.f32.xlu0 %v4854
      %v4856 = vpop.xlane.xlu0 %4855
      %v4857 = vsel %vm992, %v4830, 0.0
      %4858 = vadd.xlane.f32.xlu0 %v4857
      %v4859 = vpop.xlane.xlu0 %4858
      %v4860 = vsel %vm992, %v4832, 0.0
      %4861 = vadd.xlane.f32.xlu0 %v4860
      %v4862 = vpop.xlane.xlu0 %4861
      %v4863 = vrcp.pop %v4835
      %v4864 = vrcp.pop %v4838
      %v4865 = vrcp.pop %v4841
      %v4866 = vrcp.pop %v4844
      %v4867 = vrcp.pop %v4847
      %v4868 = vrcp.pop %v4850
      %v4869 = vrcp.pop %v4853
      %v4870 = vrcp.pop %v4856
      %v4871 = vrcp.pop %v4859
      %v4872 = vrcp.pop %v4862
      %v4873 = vmul.f32 %v4814, %v4863
      %v4874 = vmul.f32 %v4816, %v4864
      %v4875 = vmul.f32 %v4818, %v4865
      %v4876 = vmul.f32 %v4820, %v4866
      %v4877 = vmul.f32 %v4822, %v4867
      %v4878 = vmul.f32 %v4824, %v4868
      %v4879 = vmul.f32 %v4826, %v4869
      %v4880 = vmul.f32 %v4828, %v4870
      %v4881 = vmul.f32 %v4830, %v4871
      %v4882 = vmul.f32 %v4832, %v4872
      %4883 = vrot.lane.b32.xlu0 %v613, 40
      %v4884 = vpop.permute.xlu0 %4883
      %4885 = vrot.lane.b32.xlu0 %v618, 40
      %v4886 = vpop.permute.xlu0 %4885
      %4887 = vrot.lane.b32.xlu0 %v623, 40
      %v4888 = vpop.permute.xlu0 %4887
      %4889 = vrot.lane.b32.xlu0 %v628, 40
      %v4890 = vpop.permute.xlu0 %4889
      %4891 = vrot.lane.b32.xlu0 %v633, 40
      %v4892 = vpop.permute.xlu0 %4891
      %v4899 = vsel %vm992, %v4873, 0
      %v4902 = vsel %vm992, %v4874, 0
      %v4905 = vsel %vm992, %v4875, 0
      %v4908 = vsel %vm992, %v4876, 0
      %v4911 = vsel %vm992, %v4877, 0
      %4913 = vmatprep.subr.mxu0 0.0
      %4914 = vmatpush1.msra.mxu0 %v4884
      %4915 = vmatprep.subr.mxu0 0.0
      %4916 = vmatpush1.msra.mxu0 %v4886
      %4917 = vmatprep.subr.mxu0 0.0
      %4918 = vmatpush1.msra.mxu0 %v4888
      %4919 = vmatprep.subr.mxu0 0.0
      %4920 = vmatpush1.msra.mxu0 %v4890
      %4921 = vmatprep.subr.mxu0 0.0
      %4922 = vmatpush1.msra.mxu0 %v4892
      %4923 = vmatprep.subr.mxu0 0.0
      %4924 = vmatpush1.msra.mxu0 0.0
      %4925 = vmatprep.subr.mxu0 0.0
      %4926 = vmatpush1.msra.mxu0 0.0
      %4927 = vmatprep.subr.mxu0 0.0
      %4928 = vmatpush1.msra.mxu0 0.0
      %4929 = vmatprep.subr.mxu0 0.0
      %4930 = vmatpush1.msra.mxu0 0.0
      %4931 = vmatprep.subr.mxu0 0.0
      %4932 = vmatpush1.msra.mxu0 0.0
      %4933 = vmatprep.subr.mxu0 0.0
      %4934 = vmatpush1.msra.mxu0 0.0
      %4935 = vmatprep.subr.mxu0 0.0
      %4936 = vmatpush1.msra.mxu0 0.0
      %4937 = vmatprep.subr.mxu0 0.0
      %4938 = vmatpush1.msra.mxu0 0.0
      %4939 = vmatprep.subr.mxu0 0.0
      %4940 = vmatpush1.msra.mxu0 0.0
      %4941 = vmatprep.subr.mxu0 0.0
      %4942 = vmatpush1.msra.mxu0 0.0
      %4943 = vmatprep.subr.mxu0 0.0
      %4944 = vmatpush1.msra.mxu0 0.0
      %4945 = vmatprep.subr.mxu0 0.0
      %4946 = vmatpush1.msra.mxu0 0.0
      %4947 = vmatprep.subr.mxu0 0.0
      %4948 = vmatpush1.msra.mxu0 0.0
      %4949 = vmatprep.subr.mxu0 0.0
      %4950 = vmatpush1.msra.mxu0 0.0
      %4951 = vmatprep.subr.mxu0 0.0
      %4952 = vmatpush1.msra.mxu0 0.0
      %4953 = vmatprep.subr.mxu0 0.0
      %4954 = vmatpush1.msra.mxu0 0.0
      %4955 = vmatprep.subr.mxu0 0.0
      %4956 = vmatpush1.msra.mxu0 0.0
      %4957 = vmatprep.subr.mxu0 0.0
      %4958 = vmatpush1.msra.mxu0 0.0
      %4959 = vmatprep.subr.mxu0 0.0
      %4960 = vmatpush1.msra.mxu0 0.0
      %4961 = vmatprep.subr.mxu0 0.0
      %4962 = vmatpush1.msra.mxu0 0.0
      %4963 = vmatprep.subr.mxu0 0.0
      %4964 = vmatpush1.msra.mxu0 0.0
      %4965 = vmatprep.subr.mxu0 0.0
      %4966 = vmatpush1.msra.mxu0 0.0
      %4967 = vmatprep.subr.mxu0 0.0
      %4968 = vmatpush1.msra.mxu0 0.0
      %4969 = vmatprep.subr.mxu0 0.0
      %4970 = vmatpush1.msra.mxu0 0.0
      %4971 = vmatprep.subr.mxu0 0.0
      %4972 = vmatpush1.msra.mxu0 0.0
      %4973 = vmatprep.subr.mxu0 0.0
      %4974 = vmatpush1.msra.mxu0 0.0
      %4975 = vmatprep.subr.mxu0 0.0
      %4976 = vmatpush1.msra.mxu0 0.0
      %4977 = vmatprep.mubr.f32.mxu0 0.0
      %4978 = vmatmul.mubr.f32.gmra.mrb[0].mxu0 %v4899
      %v4979 = vpop.f32.mrb[0].mxu0
      %v4980 = vadd.f32 0.0, %v4979
      %v4981 = vpop.f32.mrb[0].mxu0
      %4982 = vmatprep.mubr.f32.mxu0 0.0
      %4983 = vmatmul.mubr.f32.gmra.mrb[0].mxu0 %v4902
      %v4984 = vpop.f32.mrb[0].mxu0
      %v4985 = vadd.f32 0.0, %v4984
      %v4986 = vpop.f32.mrb[0].mxu0
      %4987 = vmatprep.mubr.f32.mxu0 0.0
      %4988 = vmatmul.mubr.f32.gmra.mrb[0].mxu0 %v4905
      %v4989 = vpop.f32.mrb[0].mxu0
      %v4990 = vadd.f32 0.0, %v4989
      %v4991 = vpop.f32.mrb[0].mxu0
      %4992 = vmatprep.mubr.f32.mxu0 0.0
      %4993 = vmatmul.mubr.f32.gmra.mrb[0].mxu0 %v4908
      %v4994 = vpop.f32.mrb[0].mxu0
      %v4995 = vadd.f32 0.0, %v4994
      %v4996 = vpop.f32.mrb[0].mxu0
      %4997 = vmatprep.mubr.f32.mxu0 0.0
      %4998 = vmatmul.mubr.f32.gmra.mrb[0].mxu0 %v4911
      %v4999 = vpop.f32.mrb[0].mxu0
      %v5000 = vadd.f32 0.0, %v4999
      %v5001 = vpop.f32.mrb[0].mxu0
      %5002 = vdwg.mxu0
      %5003 = vrot.lane.b32.xlu0 %v638, 40
      %v5004 = vpop.permute.xlu0 %5003
      %5005 = vrot.lane.b32.xlu0 %v643, 40
      %v5006 = vpop.permute.xlu0 %5005
      %5007 = vrot.lane.b32.xlu0 %v648, 40
      %v5008 = vpop.permute.xlu0 %5007
      %5009 = vrot.lane.b32.xlu0 %v653, 40
      %v5010 = vpop.permute.xlu0 %5009
      %5011 = vrot.lane.b32.xlu0 %v658, 40
      %v5012 = vpop.permute.xlu0 %5011
      %v5019 = vsel %vm992, %v4878, 0
      %v5022 = vsel %vm992, %v4879, 0
      %v5025 = vsel %vm992, %v4880, 0
      %v5028 = vsel %vm992, %v4881, 0
      %v5031 = vsel %vm992, %v4882, 0
      %5033 = vmatprep.subr.mxu0 0.0
      %5034 = vmatpush1.msra.mxu0 %v5004
      %5035 = vmatprep.subr.mxu0 0.0
      %5036 = vmatpush1.msra.mxu0 %v5006
      %5037 = vmatprep.subr.mxu0 0.0
      %5038 = vmatpush1.msra.mxu0 %v5008
      %5039 = vmatprep.subr.mxu0 0.0
      %5040 = vmatpush1.msra.mxu0 %v5010
      %5041 = vmatprep.subr.mxu0 0.0
      %5042 = vmatpush1.msra.mxu0 %v5012
      %5043 = vmatprep.subr.mxu0 0.0
      %5044 = vmatpush1.msra.mxu0 0.0
      %5045 = vmatprep.subr.mxu0 0.0
      %5046 = vmatpush1.msra.mxu0 0.0
      %5047 = vmatprep.subr.mxu0 0.0
      %5048 = vmatpush1.msra.mxu0 0.0
      %5049 = vmatprep.subr.mxu0 0.0
      %5050 = vmatpush1.msra.mxu0 0.0
      %5051 = vmatprep.subr.mxu0 0.0
      %5052 = vmatpush1.msra.mxu0 0.0
      %5053 = vmatprep.subr.mxu0 0.0
      %5054 = vmatpush1.msra.mxu0 0.0
      %5055 = vmatprep.subr.mxu0 0.0
      %5056 = vmatpush1.msra.mxu0 0.0
      %5057 = vmatprep.subr.mxu0 0.0
      %5058 = vmatpush1.msra.mxu0 0.0
      %5059 = vmatprep.subr.mxu0 0.0
      %5060 = vmatpush1.msra.mxu0 0.0
      %5061 = vmatprep.subr.mxu0 0.0
      %5062 = vmatpush1.msra.mxu0 0.0
      %5063 = vmatprep.subr.mxu0 0.0
      %5064 = vmatpush1.msra.mxu0 0.0
      %5065 = vmatprep.subr.mxu0 0.0
      %5066 = vmatpush1.msra.mxu0 0.0
      %5067 = vmatprep.subr.mxu0 0.0
      %5068 = vmatpush1.msra.mxu0 0.0
      %5069 = vmatprep.subr.mxu0 0.0
      %5070 = vmatpush1.msra.mxu0 0.0
      %5071 = vmatprep.subr.mxu0 0.0
      %5072 = vmatpush1.msra.mxu0 0.0
      %5073 = vmatprep.subr.mxu0 0.0
      %5074 = vmatpush1.msra.mxu0 0.0
      %5075 = vmatprep.subr.mxu0 0.0
      %5076 = vmatpush1.msra.mxu0 0.0
      %5077 = vmatprep.subr.mxu0 0.0
      %5078 = vmatpush1.msra.mxu0 0.0
      %5079 = vmatprep.subr.mxu0 0.0
      %5080 = vmatpush1.msra.mxu0 0.0
      %5081 = vmatprep.subr.mxu0 0.0
      %5082 = vmatpush1.msra.mxu0 0.0
      %5083 = vmatprep.subr.mxu0 0.0
      %5084 = vmatpush1.msra.mxu0 0.0
      %5085 = vmatprep.subr.mxu0 0.0
      %5086 = vmatpush1.msra.mxu0 0.0
      %5087 = vmatprep.subr.mxu0 0.0
      %5088 = vmatpush1.msra.mxu0 0.0
      %5089 = vmatprep.subr.mxu0 0.0
      %5090 = vmatpush1.msra.mxu0 0.0
      %5091 = vmatprep.subr.mxu0 0.0
      %5092 = vmatpush1.msra.mxu0 0.0
      %5093 = vmatprep.subr.mxu0 0.0
      %5094 = vmatpush1.msra.mxu0 0.0
      %5095 = vmatprep.subr.mxu0 0.0
      %5096 = vmatpush1.msra.mxu0 0.0
      %5097 = vmatprep.mubr.f32.mxu0 0.0
      %5098 = vmatmul.mubr.f32.gmra.mrb[0].mxu0 %v5019
      %v5099 = vpop.f32.mrb[0].mxu0
      %v5100 = vadd.f32 0.0, %v5099
      %v5101 = vpop.f32.mrb[0].mxu0
      %5102 = vmatprep.mubr.f32.mxu0 0.0
      %5103 = vmatmul.mubr.f32.gmra.mrb[0].mxu0 %v5022
      %v5104 = vpop.f32.mrb[0].mxu0
      %v5105 = vadd.f32 0.0, %v5104
      %v5106 = vpop.f32.mrb[0].mxu0
      %5107 = vmatprep.mubr.f32.mxu0 0.0
      %5108 = vmatmul.mubr.f32.gmra.mrb[0].mxu0 %v5025
      %v5109 = vpop.f32.mrb[0].mxu0
      %v5110 = vadd.f32 0.0, %v5109
      %v5111 = vpop.f32.mrb[0].mxu0
      %5112 = vmatprep.mubr.f32.mxu0 0.0
      %5113 = vmatmul.mubr.f32.gmra.mrb[0].mxu0 %v5028
      %v5114 = vpop.f32.mrb[0].mxu0
      %v5115 = vadd.f32 0.0, %v5114
      %v5116 = vpop.f32.mrb[0].mxu0
      %5117 = vmatprep.mubr.f32.mxu0 0.0
      %5118 = vmatmul.mubr.f32.gmra.mrb[0].mxu0 %v5031
      %v5119 = vpop.f32.mrb[0].mxu0
      %v5120 = vadd.f32 0.0, %v5119
      %v5121 = vpop.f32.mrb[0].mxu0
      %5122 = vdwg.mxu0
      %5123 = vrot.lane.b32.xlu0 %v613, 100
      %v5124 = vpop.permute.xlu0 %5123
      %5125 = vrot.lane.b32.xlu0 %v618, 100
      %v5126 = vpop.permute.xlu0 %5125
      %5127 = vrot.lane.b32.xlu0 %v623, 100
      %v5128 = vpop.permute.xlu0 %5127
      %5129 = vrot.lane.b32.xlu0 %v628, 100
      %v5130 = vpop.permute.xlu0 %5129
      %5131 = vrot.lane.b32.xlu0 %v633, 100
      %v5132 = vpop.permute.xlu0 %5131
      %5133 = vrot.lane.b32.xlu0 %v613, 68
      %v5134 = vpop.permute.xlu0 %5133
      %5135 = vrot.lane.b32.xlu0 %v618, 68
      %v5136 = vpop.permute.xlu0 %5135
      %5137 = vrot.lane.b32.xlu0 %v623, 68
      %v5138 = vpop.permute.xlu0 %5137
      %5139 = vrot.lane.b32.xlu0 %v628, 68
      %v5140 = vpop.permute.xlu0 %5139
      %5141 = vrot.lane.b32.xlu0 %v633, 68
      %v5142 = vpop.permute.xlu0 %5141
      %v5143 = vsel %vm736, %v5124, 0
      %v5145 = vsel %vm736, %v5126, 0
      %v5147 = vsel %vm736, %v5128, 0
      %v5149 = vsel %vm736, %v5130, 0
      %v5151 = vsel %vm736, %v5132, 0
      %v5153 = vsel %vm736, %v5134, 0
      %v5155 = vsel %vm736, %v5136, 0
      %v5157 = vsel %vm736, %v5138, 0
      %v5159 = vsel %vm736, %v5140, 0
      %v5161 = vsel %vm736, %v5142, 0
      %5163 = vmatprep.subr.mxu0 0.0
      %5164 = vmatpush1.xpose.msra.mxu0 %v5153
      %5165 = vmatprep.subr.mxu0 0.0
      %5166 = vmatpush1.xpose.msra.mxu0 %v5155
      %5167 = vmatprep.subr.mxu0 0.0
      %5168 = vmatpush1.xpose.msra.mxu0 %v5157
      %5169 = vmatprep.subr.mxu0 0.0
      %5170 = vmatpush1.xpose.msra.mxu0 %v5159
      %5171 = vmatprep.subr.mxu0 0.0
      %5172 = vmatpush1.xpose.msra.mxu0 %v5161
      %5173 = vmatprep.subr.mxu0 0.0
      %5174 = vmatpush1.xpose.msra.mxu0 0.0
      %5175 = vmatprep.subr.mxu0 0.0
      %5176 = vmatpush1.xpose.msra.mxu0 0.0
      %5177 = vmatprep.subr.mxu0 0.0
      %5178 = vmatpush1.xpose.msra.mxu0 0.0
      %5179 = vmatprep.subr.mxu0 0.0
      %5180 = vmatpush1.xpose.msra.mxu0 0.0
      %5181 = vmatprep.subr.mxu0 0.0
      %5182 = vmatpush1.xpose.msra.mxu0 0.0
      %5183 = vmatprep.subr.mxu0 0.0
      %5184 = vmatpush1.xpose.msra.mxu0 0.0
      %5185 = vmatprep.subr.mxu0 0.0
      %5186 = vmatpush1.xpose.msra.mxu0 0.0
      %5187 = vmatprep.subr.mxu0 0.0
      %5188 = vmatpush1.xpose.msra.mxu0 0.0
      %5189 = vmatprep.subr.mxu0 0.0
      %5190 = vmatpush1.xpose.msra.mxu0 0.0
      %5191 = vmatprep.subr.mxu0 0.0
      %5192 = vmatpush1.xpose.msra.mxu0 0.0
      %5193 = vmatprep.subr.mxu0 0.0
      %5194 = vmatpush1.xpose.msra.mxu0 0.0
      %5195 = vmatprep.subr.mxu0 0.0
      %5196 = vmatpush1.xpose.msra.mxu0 0.0
      %5197 = vmatprep.subr.mxu0 0.0
      %5198 = vmatpush1.xpose.msra.mxu0 0.0
      %5199 = vmatprep.subr.mxu0 0.0
      %5200 = vmatpush1.xpose.msra.mxu0 0.0
      %5201 = vmatprep.subr.mxu0 0.0
      %5202 = vmatpush1.xpose.msra.mxu0 0.0
      %5203 = vmatprep.subr.mxu0 0.0
      %5204 = vmatpush1.xpose.msra.mxu0 0.0
      %5205 = vmatprep.subr.mxu0 0.0
      %5206 = vmatpush1.xpose.msra.mxu0 0.0
      %5207 = vmatprep.subr.mxu0 0.0
      %5208 = vmatpush1.xpose.msra.mxu0 0.0
      %5209 = vmatprep.subr.mxu0 0.0
      %5210 = vmatpush1.xpose.msra.mxu0 0.0
      %5211 = vmatprep.subr.mxu0 0.0
      %5212 = vmatpush1.xpose.msra.mxu0 0.0
      %5213 = vmatprep.subr.mxu0 0.0
      %5214 = vmatpush1.xpose.msra.mxu0 0.0
      %5215 = vmatprep.subr.mxu0 0.0
      %5216 = vmatpush1.xpose.msra.mxu0 0.0
      %5217 = vmatprep.subr.mxu0 0.0
      %5218 = vmatpush1.xpose.msra.mxu0 0.0
      %5219 = vmatprep.subr.mxu0 0.0
      %5220 = vmatpush1.xpose.msra.mxu0 0.0
      %5221 = vmatprep.subr.mxu0 0.0
      %5222 = vmatpush1.xpose.msra.mxu0 0.0
      %5223 = vmatprep.subr.mxu0 0.0
      %5224 = vmatpush1.xpose.msra.mxu0 0.0
      %5225 = vmatprep.subr.mxu0 0.0
      %5226 = vmatpush1.xpose.msra.mxu0 0.0
      %5227 = vmatprep.mubr.f32.mxu0 0.0
      %5228 = vmatmul.mubr.f32.gmra.mrb[0].mxu0 %v5143
      %v5229 = vpop.f32.mrb[0].mxu0
      %v5230 = vadd.f32 0.0, %v5229
      %v5231 = vpop.f32.mrb[0].mxu0
      %5232 = vmatprep.mubr.f32.mxu0 0.0
      %5233 = vmatmul.mubr.f32.gmra.mrb[0].mxu0 %v5145
      %v5234 = vpop.f32.mrb[0].mxu0
      %v5235 = vadd.f32 0.0, %v5234
      %v5236 = vpop.f32.mrb[0].mxu0
      %5237 = vmatprep.mubr.f32.mxu0 0.0
      %5238 = vmatmul.mubr.f32.gmra.mrb[0].mxu0 %v5147
      %v5239 = vpop.f32.mrb[0].mxu0
      %v5240 = vadd.f32 0.0, %v5239
      %v5241 = vpop.f32.mrb[0].mxu0
      %5242 = vmatprep.mubr.f32.mxu0 0.0
      %5243 = vmatmul.mubr.f32.gmra.mrb[0].mxu0 %v5149
      %v5244 = vpop.f32.mrb[0].mxu0
      %v5245 = vadd.f32 0.0, %v5244
      %v5246 = vpop.f32.mrb[0].mxu0
      %5247 = vmatprep.mubr.f32.mxu0 0.0
      %5248 = vmatmul.mubr.f32.gmra.mrb[0].mxu0 %v5151
      %v5249 = vpop.f32.mrb[0].mxu0
      %v5250 = vadd.f32 0.0, %v5249
      %v5251 = vpop.f32.mrb[0].mxu0
      %5252 = vdwg.mxu0
      %5253 = vrot.lane.b32.xlu0 %v638, 100
      %v5254 = vpop.permute.xlu0 %5253
      %5255 = vrot.lane.b32.xlu0 %v643, 100
      %v5256 = vpop.permute.xlu0 %5255
      %5257 = vrot.lane.b32.xlu0 %v648, 100
      %v5258 = vpop.permute.xlu0 %5257
      %5259 = vrot.lane.b32.xlu0 %v653, 100
      %v5260 = vpop.permute.xlu0 %5259
      %5261 = vrot.lane.b32.xlu0 %v658, 100
      %v5262 = vpop.permute.xlu0 %5261
      %5263 = vrot.lane.b32.xlu0 %v638, 68
      %v5264 = vpop.permute.xlu0 %5263
      %5265 = vrot.lane.b32.xlu0 %v643, 68
      %v5266 = vpop.permute.xlu0 %5265
      %5267 = vrot.lane.b32.xlu0 %v648, 68
      %v5268 = vpop.permute.xlu0 %5267
      %5269 = vrot.lane.b32.xlu0 %v653, 68
      %v5270 = vpop.permute.xlu0 %5269
      %5271 = vrot.lane.b32.xlu0 %v658, 68
      %v5272 = vpop.permute.xlu0 %5271
      %v5273 = vsel %vm736, %v5254, 0
      %v5275 = vsel %vm736, %v5256, 0
      %v5277 = vsel %vm736, %v5258, 0
      %v5279 = vsel %vm736, %v5260, 0
      %v5281 = vsel %vm736, %v5262, 0
      %v5283 = vsel %vm736, %v5264, 0
      %v5285 = vsel %vm736, %v5266, 0
      %v5287 = vsel %vm736, %v5268, 0
      %v5289 = vsel %vm736, %v5270, 0
      %v5291 = vsel %vm736, %v5272, 0
      %5293 = vmatprep.subr.mxu0 0.0
      %5294 = vmatpush1.xpose.msra.mxu0 %v5283
      %5295 = vmatprep.subr.mxu0 0.0
      %5296 = vmatpush1.xpose.msra.mxu0 %v5285
      %5297 = vmatprep.subr.mxu0 0.0
      %5298 = vmatpush1.xpose.msra.mxu0 %v5287
      %5299 = vmatprep.subr.mxu0 0.0
      %5300 = vmatpush1.xpose.msra.mxu0 %v5289
      %5301 = vmatprep.subr.mxu0 0.0
      %5302 = vmatpush1.xpose.msra.mxu0 %v5291
      %5303 = vmatprep.subr.mxu0 0.0
      %5304 = vmatpush1.xpose.msra.mxu0 0.0
      %5305 = vmatprep.subr.mxu0 0.0
      %5306 = vmatpush1.xpose.msra.mxu0 0.0
      %5307 = vmatprep.subr.mxu0 0.0
      %5308 = vmatpush1.xpose.msra.mxu0 0.0
      %5309 = vmatprep.subr.mxu0 0.0
      %5310 = vmatpush1.xpose.msra.mxu0 0.0
      %5311 = vmatprep.subr.mxu0 0.0
      %5312 = vmatpush1.xpose.msra.mxu0 0.0
      %5313 = vmatprep.subr.mxu0 0.0
      %5314 = vmatpush1.xpose.msra.mxu0 0.0
      %5315 = vmatprep.subr.mxu0 0.0
      %5316 = vmatpush1.xpose.msra.mxu0 0.0
      %5317 = vmatprep.subr.mxu0 0.0
      %5318 = vmatpush1.xpose.msra.mxu0 0.0
      %5319 = vmatprep.subr.mxu0 0.0
      %5320 = vmatpush1.xpose.msra.mxu0 0.0
      %5321 = vmatprep.subr.mxu0 0.0
      %5322 = vmatpush1.xpose.msra.mxu0 0.0
      %5323 = vmatprep.subr.mxu0 0.0
      %5324 = vmatpush1.xpose.msra.mxu0 0.0
      %5325 = vmatprep.subr.mxu0 0.0
      %5326 = vmatpush1.xpose.msra.mxu0 0.0
      %5327 = vmatprep.subr.mxu0 0.0
      %5328 = vmatpush1.xpose.msra.mxu0 0.0
      %5329 = vmatprep.subr.mxu0 0.0
      %5330 = vmatpush1.xpose.msra.mxu0 0.0
      %5331 = vmatprep.subr.mxu0 0.0
      %5332 = vmatpush1.xpose.msra.mxu0 0.0
      %5333 = vmatprep.subr.mxu0 0.0
      %5334 = vmatpush1.xpose.msra.mxu0 0.0
      %5335 = vmatprep.subr.mxu0 0.0
      %5336 = vmatpush1.xpose.msra.mxu0 0.0
      %5337 = vmatprep.subr.mxu0 0.0
      %5338 = vmatpush1.xpose.msra.mxu0 0.0
      %5339 = vmatprep.subr.mxu0 0.0
      %5340 = vmatpush1.xpose.msra.mxu0 0.0
      %5341 = vmatprep.subr.mxu0 0.0
      %5342 = vmatpush1.xpose.msra.mxu0 0.0
      %5343 = vmatprep.subr.mxu0 0.0
      %5344 = vmatpush1.xpose.msra.mxu0 0.0
      %5345 = vmatprep.subr.mxu0 0.0
      %5346 = vmatpush1.xpose.msra.mxu0 0.0
      %5347 = vmatprep.subr.mxu0 0.0
      %5348 = vmatpush1.xpose.msra.mxu0 0.0
      %5349 = vmatprep.subr.mxu0 0.0
      %5350 = vmatpush1.xpose.msra.mxu0 0.0
      %5351 = vmatprep.subr.mxu0 0.0
      %5352 = vmatpush1.xpose.msra.mxu0 0.0
      %5353 = vmatprep.subr.mxu0 0.0
      %5354 = vmatpush1.xpose.msra.mxu0 0.0
      %5355 = vmatprep.subr.mxu0 0.0
      %5356 = vmatpush1.xpose.msra.mxu0 0.0
      %5357 = vmatprep.mubr.f32.mxu0 0.0
      %5358 = vmatmul.mubr.f32.gmra.mrb[0].mxu0 %v5273
      %v5359 = vpop.f32.mrb[0].mxu0
      %v5360 = vadd.f32 0.0, %v5359
      %v5361 = vpop.f32.mrb[0].mxu0
      %5362 = vmatprep.mubr.f32.mxu0 0.0
      %5363 = vmatmul.mubr.f32.gmra.mrb[0].mxu0 %v5275
      %v5364 = vpop.f32.mrb[0].mxu0
      %v5365 = vadd.f32 0.0, %v5364
      %v5366 = vpop.f32.mrb[0].mxu0
      %5367 = vmatprep.mubr.f32.mxu0 0.0
      %5368 = vmatmul.mubr.f32.gmra.mrb[0].mxu0 %v5277
      %v5369 = vpop.f32.mrb[0].mxu0
      %v5370 = vadd.f32 0.0, %v5369
      %v5371 = vpop.f32.mrb[0].mxu0
      %5372 = vmatprep.mubr.f32.mxu0 0.0
      %5373 = vmatmul.mubr.f32.gmra.mrb[0].mxu0 %v5279
      %v5374 = vpop.f32.mrb[0].mxu0
      %v5375 = vadd.f32 0.0, %v5374
      %v5376 = vpop.f32.mrb[0].mxu0
      %5377 = vmatprep.mubr.f32.mxu0 0.0
      %5378 = vmatmul.mubr.f32.gmra.mrb[0].mxu0 %v5281
      %v5379 = vpop.f32.mrb[0].mxu0
      %v5380 = vadd.f32 0.0, %v5379
      %v5381 = vpop.f32.mrb[0].mxu0
      %5382 = vdwg.mxu0
      %v5383 = vmul.f32 %v5230, 0.5
      %v5384 = vmul.f32 %v5235, 0.5
      %v5385 = vmul.f32 %v5240, 0.5
      %v5386 = vmul.f32 %v5245, 0.5
      %v5387 = vmul.f32 %v5250, 0.5
      %v5388 = vmul.f32 %v5360, 0.5
      %v5389 = vmul.f32 %v5365, 0.5
      %v5390 = vmul.f32 %v5370, 0.5
      %v5391 = vmul.f32 %v5375, 0.5
      %v5392 = vmul.f32 %v5380, 0.5
      %v5393 = vsel %vm711, %v5383, -1e+09
      %v5394 = vsel %vm712, %v5384, -1e+09
      %v5395 = vsel %vm713, %v5385, -1e+09
      %v5396 = vsel %vm714, %v5386, -1e+09
      %v5397 = vsel %vm715, %v5387, -1e+09
      %v5398 = vsel %vm716, %v5388, -1e+09
      %v5399 = vsel %vm717, %v5389, -1e+09
      %v5400 = vsel %vm718, %v5390, -1e+09
      %v5401 = vsel %vm719, %v5391, -1e+09
      %v5402 = vsel %vm720, %v5392, -1e+09
      %v5403 = vsel %vm992, %v5393, -inf
      %5404 = vmax.xlane.f32.xlu0 %v5403
      %v5405 = vpop.xlane.xlu0 %5404
      %v5406 = vsel %vm992, %v5394, -inf
      %5407 = vmax.xlane.f32.xlu0 %v5406
      %v5408 = vpop.xlane.xlu0 %5407
      %v5409 = vsel %vm992, %v5395, -inf
      %5410 = vmax.xlane.f32.xlu0 %v5409
      %v5411 = vpop.xlane.xlu0 %5410
      %v5412 = vsel %vm992, %v5396, -inf
      %5413 = vmax.xlane.f32.xlu0 %v5412
      %v5414 = vpop.xlane.xlu0 %5413
      %v5415 = vsel %vm992, %v5397, -inf
      %5416 = vmax.xlane.f32.xlu0 %v5415
      %v5417 = vpop.xlane.xlu0 %5416
      %v5418 = vsel %vm992, %v5398, -inf
      %5419 = vmax.xlane.f32.xlu0 %v5418
      %v5420 = vpop.xlane.xlu0 %5419
      %v5421 = vsel %vm992, %v5399, -inf
      %5422 = vmax.xlane.f32.xlu0 %v5421
      %v5423 = vpop.xlane.xlu0 %5422
      %v5424 = vsel %vm992, %v5400, -inf
      %5425 = vmax.xlane.f32.xlu0 %v5424
      %v5426 = vpop.xlane.xlu0 %5425
      %v5427 = vsel %vm992, %v5401, -inf
      %5428 = vmax.xlane.f32.xlu0 %v5427
      %v5429 = vpop.xlane.xlu0 %5428
      %v5430 = vsel %vm992, %v5402, -inf
      %5431 = vmax.xlane.f32.xlu0 %v5430
      %v5432 = vpop.xlane.xlu0 %5431
      %v5433 = vsub.f32 %v5393, %v5405
      %v5434 = vsub.f32 %v5394, %v5408
      %v5435 = vsub.f32 %v5395, %v5411
      %v5436 = vsub.f32 %v5396, %v5414
      %v5437 = vsub.f32 %v5397, %v5417
      %v5438 = vsub.f32 %v5398, %v5420
      %v5439 = vsub.f32 %v5399, %v5423
      %v5440 = vsub.f32 %v5400, %v5426
      %v5441 = vsub.f32 %v5401, %v5429
      %v5442 = vsub.f32 %v5402, %v5432
      %v5443 = vmul.f32 %v5433, 1.442695
      %v5444 = vpow.pop %v5443
      %v5445 = vmul.f32 %v5434, 1.442695
      %v5446 = vpow.pop %v5445
      %v5447 = vmul.f32 %v5435, 1.442695
      %v5448 = vpow.pop %v5447
      %v5449 = vmul.f32 %v5436, 1.442695
      %v5450 = vpow.pop %v5449
      %v5451 = vmul.f32 %v5437, 1.442695
      %v5452 = vpow.pop %v5451
      %v5453 = vmul.f32 %v5438, 1.442695
      %v5454 = vpow.pop %v5453
      %v5455 = vmul.f32 %v5439, 1.442695
      %v5456 = vpow.pop %v5455
      %v5457 = vmul.f32 %v5440, 1.442695
      %v5458 = vpow.pop %v5457
      %v5459 = vmul.f32 %v5441, 1.442695
      %v5460 = vpow.pop %v5459
      %v5461 = vmul.f32 %v5442, 1.442695
      %v5462 = vpow.pop %v5461
      %v5463 = vsel %vm992, %v5444, 0.0
      %5464 = vadd.xlane.f32.xlu0 %v5463
      %v5465 = vpop.xlane.xlu0 %5464
      %v5466 = vsel %vm992, %v5446, 0.0
      %5467 = vadd.xlane.f32.xlu0 %v5466
      %v5468 = vpop.xlane.xlu0 %5467
      %v5469 = vsel %vm992, %v5448, 0.0
      %5470 = vadd.xlane.f32.xlu0 %v5469
      %v5471 = vpop.xlane.xlu0 %5470
      %v5472 = vsel %vm992, %v5450, 0.0
      %5473 = vadd.xlane.f32.xlu0 %v5472
      %v5474 = vpop.xlane.xlu0 %5473
      %v5475 = vsel %vm992, %v5452, 0.0
      %5476 = vadd.xlane.f32.xlu0 %v5475
      %v5477 = vpop.xlane.xlu0 %5476
      %v5478 = vsel %vm992, %v5454, 0.0
      %5479 = vadd.xlane.f32.xlu0 %v5478
      %v5480 = vpop.xlane.xlu0 %5479
      %v5481 = vsel %vm992, %v5456, 0.0
      %5482 = vadd.xlane.f32.xlu0 %v5481
      %v5483 = vpop.xlane.xlu0 %5482
      %v5484 = vsel %vm992, %v5458, 0.0
      %5485 = vadd.xlane.f32.xlu0 %v5484
      %v5486 = vpop.xlane.xlu0 %5485
      %v5487 = vsel %vm992, %v5460, 0.0
      %5488 = vadd.xlane.f32.xlu0 %v5487
      %v5489 = vpop.xlane.xlu0 %5488
      %v5490 = vsel %vm992, %v5462, 0.0
      %5491 = vadd.xlane.f32.xlu0 %v5490
      %v5492 = vpop.xlane.xlu0 %5491
      %v5493 = vrcp.pop %v5465
      %v5494 = vrcp.pop %v5468
      %v5495 = vrcp.pop %v5471
      %v5496 = vrcp.pop %v5474
      %v5497 = vrcp.pop %v5477
      %v5498 = vrcp.pop %v5480
      %v5499 = vrcp.pop %v5483
      %v5500 = vrcp.pop %v5486
      %v5501 = vrcp.pop %v5489
      %v5502 = vrcp.pop %v5492
      %v5503 = vmul.f32 %v5444, %v5493
      %v5504 = vmul.f32 %v5446, %v5494
      %v5505 = vmul.f32 %v5448, %v5495
      %v5506 = vmul.f32 %v5450, %v5496
      %v5507 = vmul.f32 %v5452, %v5497
      %v5508 = vmul.f32 %v5454, %v5498
      %v5509 = vmul.f32 %v5456, %v5499
      %v5510 = vmul.f32 %v5458, %v5500
      %v5511 = vmul.f32 %v5460, %v5501
      %v5512 = vmul.f32 %v5462, %v5502
      %5513 = vrot.lane.b32.xlu0 %v613, 36
      %v5514 = vpop.permute.xlu0 %5513
      %5515 = vrot.lane.b32.xlu0 %v618, 36
      %v5516 = vpop.permute.xlu0 %5515
      %5517 = vrot.lane.b32.xlu0 %v623, 36
      %v5518 = vpop.permute.xlu0 %5517
      %5519 = vrot.lane.b32.xlu0 %v628, 36
      %v5520 = vpop.permute.xlu0 %5519
      %5521 = vrot.lane.b32.xlu0 %v633, 36
      %v5522 = vpop.permute.xlu0 %5521
      %v5529 = vsel %vm992, %v5503, 0
      %v5532 = vsel %vm992, %v5504, 0
      %v5535 = vsel %vm992, %v5505, 0
      %v5538 = vsel %vm992, %v5506, 0
      %v5541 = vsel %vm992, %v5507, 0
      %5543 = vmatprep.subr.mxu0 0.0
      %5544 = vmatpush1.msra.mxu0 %v5514
      %5545 = vmatprep.subr.mxu0 0.0
      %5546 = vmatpush1.msra.mxu0 %v5516
      %5547 = vmatprep.subr.mxu0 0.0
      %5548 = vmatpush1.msra.mxu0 %v5518
      %5549 = vmatprep.subr.mxu0 0.0
      %5550 = vmatpush1.msra.mxu0 %v5520
      %5551 = vmatprep.subr.mxu0 0.0
      %5552 = vmatpush1.msra.mxu0 %v5522
      %5553 = vmatprep.subr.mxu0 0.0
      %5554 = vmatpush1.msra.mxu0 0.0
      %5555 = vmatprep.subr.mxu0 0.0
      %5556 = vmatpush1.msra.mxu0 0.0
      %5557 = vmatprep.subr.mxu0 0.0
      %5558 = vmatpush1.msra.mxu0 0.0
      %5559 = vmatprep.subr.mxu0 0.0
      %5560 = vmatpush1.msra.mxu0 0.0
      %5561 = vmatprep.subr.mxu0 0.0
      %5562 = vmatpush1.msra.mxu0 0.0
      %5563 = vmatprep.subr.mxu0 0.0
      %5564 = vmatpush1.msra.mxu0 0.0
      %5565 = vmatprep.subr.mxu0 0.0
      %5566 = vmatpush1.msra.mxu0 0.0
      %5567 = vmatprep.subr.mxu0 0.0
      %5568 = vmatpush1.msra.mxu0 0.0
      %5569 = vmatprep.subr.mxu0 0.0
      %5570 = vmatpush1.msra.mxu0 0.0
      %5571 = vmatprep.subr.mxu0 0.0
      %5572 = vmatpush1.msra.mxu0 0.0
      %5573 = vmatprep.subr.mxu0 0.0
      %5574 = vmatpush1.msra.mxu0 0.0
      %5575 = vmatprep.subr.mxu0 0.0
      %5576 = vmatpush1.msra.mxu0 0.0
      %5577 = vmatprep.subr.mxu0 0.0
      %5578 = vmatpush1.msra.mxu0 0.0
      %5579 = vmatprep.subr.mxu0 0.0
      %5580 = vmatpush1.msra.mxu0 0.0
      %5581 = vmatprep.subr.mxu0 0.0
      %5582 = vmatpush1.msra.mxu0 0.0
      %5583 = vmatprep.subr.mxu0 0.0
      %5584 = vmatpush1.msra.mxu0 0.0
      %5585 = vmatprep.subr.mxu0 0.0
      %5586 = vmatpush1.msra.mxu0 0.0
      %5587 = vmatprep.subr.mxu0 0.0
      %5588 = vmatpush1.msra.mxu0 0.0
      %5589 = vmatprep.subr.mxu0 0.0
      %5590 = vmatpush1.msra.mxu0 0.0
      %5591 = vmatprep.subr.mxu0 0.0
      %5592 = vmatpush1.msra.mxu0 0.0
      %5593 = vmatprep.subr.mxu0 0.0
      %5594 = vmatpush1.msra.mxu0 0.0
      %5595 = vmatprep.subr.mxu0 0.0
      %5596 = vmatpush1.msra.mxu0 0.0
      %5597 = vmatprep.subr.mxu0 0.0
      %5598 = vmatpush1.msra.mxu0 0.0
      %5599 = vmatprep.subr.mxu0 0.0
      %5600 = vmatpush1.msra.mxu0 0.0
      %5601 = vmatprep.subr.mxu0 0.0
      %5602 = vmatpush1.msra.mxu0 0.0
      %5603 = vmatprep.subr.mxu0 0.0
      %5604 = vmatpush1.msra.mxu0 0.0
      %5605 = vmatprep.subr.mxu0 0.0
      %5606 = vmatpush1.msra.mxu0 0.0
      %5607 = vmatprep.mubr.f32.mxu0 0.0
      %5608 = vmatmul.mubr.f32.gmra.mrb[0].mxu0 %v5529
      %v5609 = vpop.f32.mrb[0].mxu0
      %v5610 = vadd.f32 0.0, %v5609
      %v5611 = vpop.f32.mrb[0].mxu0
      %5612 = vmatprep.mubr.f32.mxu0 0.0
      %5613 = vmatmul.mubr.f32.gmra.mrb[0].mxu0 %v5532
      %v5614 = vpop.f32.mrb[0].mxu0
      %v5615 = vadd.f32 0.0, %v5614
      %v5616 = vpop.f32.mrb[0].mxu0
      %5617 = vmatprep.mubr.f32.mxu0 0.0
      %5618 = vmatmul.mubr.f32.gmra.mrb[0].mxu0 %v5535
      %v5619 = vpop.f32.mrb[0].mxu0
      %v5620 = vadd.f32 0.0, %v5619
      %v5621 = vpop.f32.mrb[0].mxu0
      %5622 = vmatprep.mubr.f32.mxu0 0.0
      %5623 = vmatmul.mubr.f32.gmra.mrb[0].mxu0 %v5538
      %v5624 = vpop.f32.mrb[0].mxu0
      %v5625 = vadd.f32 0.0, %v5624
      %v5626 = vpop.f32.mrb[0].mxu0
      %5627 = vmatprep.mubr.f32.mxu0 0.0
      %5628 = vmatmul.mubr.f32.gmra.mrb[0].mxu0 %v5541
      %v5629 = vpop.f32.mrb[0].mxu0
      %v5630 = vadd.f32 0.0, %v5629
      %v5631 = vpop.f32.mrb[0].mxu0
      %5632 = vdwg.mxu0
      %5633 = vrot.lane.b32.xlu0 %v638, 36
      %v5634 = vpop.permute.xlu0 %5633
      %5635 = vrot.lane.b32.xlu0 %v643, 36
      %v5636 = vpop.permute.xlu0 %5635
      %5637 = vrot.lane.b32.xlu0 %v648, 36
      %v5638 = vpop.permute.xlu0 %5637
      %5639 = vrot.lane.b32.xlu0 %v653, 36
      %v5640 = vpop.permute.xlu0 %5639
      %5641 = vrot.lane.b32.xlu0 %v658, 36
      %v5642 = vpop.permute.xlu0 %5641
      %v5649 = vsel %vm992, %v5508, 0
      %v5652 = vsel %vm992, %v5509, 0
      %v5655 = vsel %vm992, %v5510, 0
      %v5658 = vsel %vm992, %v5511, 0
      %v5661 = vsel %vm992, %v5512, 0
      %5663 = vmatprep.subr.mxu0 0.0
      %5664 = vmatpush1.msra.mxu0 %v5634
      %5665 = vmatprep.subr.mxu0 0.0
      %5666 = vmatpush1.msra.mxu0 %v5636
      %5667 = vmatprep.subr.mxu0 0.0
      %5668 = vmatpush1.msra.mxu0 %v5638
      %5669 = vmatprep.subr.mxu0 0.0
      %5670 = vmatpush1.msra.mxu0 %v5640
      %5671 = vmatprep.subr.mxu0 0.0
      %5672 = vmatpush1.msra.mxu0 %v5642
      %5673 = vmatprep.subr.mxu0 0.0
      %5674 = vmatpush1.msra.mxu0 0.0
      %5675 = vmatprep.subr.mxu0 0.0
      %5676 = vmatpush1.msra.mxu0 0.0
      %5677 = vmatprep.subr.mxu0 0.0
      %5678 = vmatpush1.msra.mxu0 0.0
      %5679 = vmatprep.subr.mxu0 0.0
      %5680 = vmatpush1.msra.mxu0 0.0
      %5681 = vmatprep.subr.mxu0 0.0
      %5682 = vmatpush1.msra.mxu0 0.0
      %5683 = vmatprep.subr.mxu0 0.0
      %5684 = vmatpush1.msra.mxu0 0.0
      %5685 = vmatprep.subr.mxu0 0.0
      %5686 = vmatpush1.msra.mxu0 0.0
      %5687 = vmatprep.subr.mxu0 0.0
      %5688 = vmatpush1.msra.mxu0 0.0
      %5689 = vmatprep.subr.mxu0 0.0
      %5690 = vmatpush1.msra.mxu0 0.0
      %5691 = vmatprep.subr.mxu0 0.0
      %5692 = vmatpush1.msra.mxu0 0.0
      %5693 = vmatprep.subr.mxu0 0.0
      %5694 = vmatpush1.msra.mxu0 0.0
      %5695 = vmatprep.subr.mxu0 0.0
      %5696 = vmatpush1.msra.mxu0 0.0
      %5697 = vmatprep.subr.mxu0 0.0
      %5698 = vmatpush1.msra.mxu0 0.0
      %5699 = vmatprep.subr.mxu0 0.0
      %5700 = vmatpush1.msra.mxu0 0.0
      %5701 = vmatprep.subr.mxu0 0.0
      %5702 = vmatpush1.msra.mxu0 0.0
      %5703 = vmatprep.subr.mxu0 0.0
      %5704 = vmatpush1.msra.mxu0 0.0
      %5705 = vmatprep.subr.mxu0 0.0
      %5706 = vmatpush1.msra.mxu0 0.0
      %5707 = vmatprep.subr.mxu0 0.0
      %5708 = vmatpush1.msra.mxu0 0.0
      %5709 = vmatprep.subr.mxu0 0.0
      %5710 = vmatpush1.msra.mxu0 0.0
      %5711 = vmatprep.subr.mxu0 0.0
      %5712 = vmatpush1.msra.mxu0 0.0
      %5713 = vmatprep.subr.mxu0 0.0
      %5714 = vmatpush1.msra.mxu0 0.0
      %5715 = vmatprep.subr.mxu0 0.0
      %5716 = vmatpush1.msra.mxu0 0.0
      %5717 = vmatprep.subr.mxu0 0.0
      %5718 = vmatpush1.msra.mxu0 0.0
      %5719 = vmatprep.subr.mxu0 0.0
      %5720 = vmatpush1.msra.mxu0 0.0
      %5721 = vmatprep.subr.mxu0 0.0
      %5722 = vmatpush1.msra.mxu0 0.0
      %5723 = vmatprep.subr.mxu0 0.0
      %5724 = vmatpush1.msra.mxu0 0.0
      %5725 = vmatprep.subr.mxu0 0.0
      %5726 = vmatpush1.msra.mxu0 0.0
      %5727 = vmatprep.mubr.f32.mxu0 0.0
      %5728 = vmatmul.mubr.f32.gmra.mrb[0].mxu0 %v5649
      %v5729 = vpop.f32.mrb[0].mxu0
      %v5730 = vadd.f32 0.0, %v5729
      %v5731 = vpop.f32.mrb[0].mxu0
      %5732 = vmatprep.mubr.f32.mxu0 0.0
      %5733 = vmatmul.mubr.f32.gmra.mrb[0].mxu0 %v5652
      %v5734 = vpop.f32.mrb[0].mxu0
      %v5735 = vadd.f32 0.0, %v5734
      %v5736 = vpop.f32.mrb[0].mxu0
      %5737 = vmatprep.mubr.f32.mxu0 0.0
      %5738 = vmatmul.mubr.f32.gmra.mrb[0].mxu0 %v5655
      %v5739 = vpop.f32.mrb[0].mxu0
      %v5740 = vadd.f32 0.0, %v5739
      %v5741 = vpop.f32.mrb[0].mxu0
      %5742 = vmatprep.mubr.f32.mxu0 0.0
      %5743 = vmatmul.mubr.f32.gmra.mrb[0].mxu0 %v5658
      %v5744 = vpop.f32.mrb[0].mxu0
      %v5745 = vadd.f32 0.0, %v5744
      %v5746 = vpop.f32.mrb[0].mxu0
      %5747 = vmatprep.mubr.f32.mxu0 0.0
      %5748 = vmatmul.mubr.f32.gmra.mrb[0].mxu0 %v5661
      %v5749 = vpop.f32.mrb[0].mxu0
      %v5750 = vadd.f32 0.0, %v5749
      %v5751 = vpop.f32.mrb[0].mxu0
      %5752 = vdwg.mxu0
      %5763 = vrot.lane.b32.xlu0 %v1830, 4
      %v5764 = vpop.permute.xlu0 %5763
      %5765 = vrot.lane.b32.xlu0 %v1835, 4
      %v5766 = vpop.permute.xlu0 %5765
      %5767 = vrot.lane.b32.xlu0 %v1840, 4
      %v5768 = vpop.permute.xlu0 %5767
      %5769 = vrot.lane.b32.xlu0 %v1845, 4
      %v5770 = vpop.permute.xlu0 %5769
      %5771 = vrot.lane.b32.xlu0 %v1850, 4
      %v5772 = vpop.permute.xlu0 %5771
      %5773 = vrot.lane.b32.xlu0 %v1950, 4
      %v5774 = vpop.permute.xlu0 %5773
      %5775 = vrot.lane.b32.xlu0 %v1955, 4
      %v5776 = vpop.permute.xlu0 %5775
      %5777 = vrot.lane.b32.xlu0 %v1960, 4
      %v5778 = vpop.permute.xlu0 %5777
      %5779 = vrot.lane.b32.xlu0 %v1965, 4
      %v5780 = vpop.permute.xlu0 %5779
      %5781 = vrot.lane.b32.xlu0 %v1970, 4
      %v5782 = vpop.permute.xlu0 %5781
      %5803 = vrot.lane.b32.xlu0 %v2460, 8
      %v5804 = vpop.permute.xlu0 %5803
      %5805 = vrot.lane.b32.xlu0 %v2465, 8
      %v5806 = vpop.permute.xlu0 %5805
      %5807 = vrot.lane.b32.xlu0 %v2470, 8
      %v5808 = vpop.permute.xlu0 %5807
      %5809 = vrot.lane.b32.xlu0 %v2475, 8
      %v5810 = vpop.permute.xlu0 %5809
      %5811 = vrot.lane.b32.xlu0 %v2480, 8
      %v5812 = vpop.permute.xlu0 %5811
      %5813 = vrot.lane.b32.xlu0 %v2580, 8
      %v5814 = vpop.permute.xlu0 %5813
      %5815 = vrot.lane.b32.xlu0 %v2585, 8
      %v5816 = vpop.permute.xlu0 %5815
      %5817 = vrot.lane.b32.xlu0 %v2590, 8
      %v5818 = vpop.permute.xlu0 %5817
      %5819 = vrot.lane.b32.xlu0 %v2595, 8
      %v5820 = vpop.permute.xlu0 %5819
      %5821 = vrot.lane.b32.xlu0 %v2600, 8
      %v5822 = vpop.permute.xlu0 %5821
      %5843 = vrot.lane.b32.xlu0 %v3090, 12
      %v5844 = vpop.permute.xlu0 %5843
      %5845 = vrot.lane.b32.xlu0 %v3095, 12
      %v5846 = vpop.permute.xlu0 %5845
      %5847 = vrot.lane.b32.xlu0 %v3100, 12
      %v5848 = vpop.permute.xlu0 %5847
      %5849 = vrot.lane.b32.xlu0 %v3105, 12
      %v5850 = vpop.permute.xlu0 %5849
      %5851 = vrot.lane.b32.xlu0 %v3110, 12
      %v5852 = vpop.permute.xlu0 %5851
      %5853 = vrot.lane.b32.xlu0 %v3210, 12
      %v5854 = vpop.permute.xlu0 %5853
      %5855 = vrot.lane.b32.xlu0 %v3215, 12
      %v5856 = vpop.permute.xlu0 %5855
      %5857 = vrot.lane.b32.xlu0 %v3220, 12
      %v5858 = vpop.permute.xlu0 %5857
      %5859 = vrot.lane.b32.xlu0 %v3225, 12
      %v5860 = vpop.permute.xlu0 %5859
      %5861 = vrot.lane.b32.xlu0 %v3230, 12
      %v5862 = vpop.permute.xlu0 %5861
      %5883 = vrot.lane.b32.xlu0 %v3720, 16
      %v5884 = vpop.permute.xlu0 %5883
      %5885 = vrot.lane.b32.xlu0 %v3725, 16
      %v5886 = vpop.permute.xlu0 %5885
      %5887 = vrot.lane.b32.xlu0 %v3730, 16
      %v5888 = vpop.permute.xlu0 %5887
      %5889 = vrot.lane.b32.xlu0 %v3735, 16
      %v5890 = vpop.permute.xlu0 %5889
      %5891 = vrot.lane.b32.xlu0 %v3740, 16
      %v5892 = vpop.permute.xlu0 %5891
      %5893 = vrot.lane.b32.xlu0 %v3840, 16
      %v5894 = vpop.permute.xlu0 %5893
      %5895 = vrot.lane.b32.xlu0 %v3845, 16
      %v5896 = vpop.permute.xlu0 %5895
      %5897 = vrot.lane.b32.xlu0 %v3850, 16
      %v5898 = vpop.permute.xlu0 %5897
      %5899 = vrot.lane.b32.xlu0 %v3855, 16
      %v5900 = vpop.permute.xlu0 %5899
      %5901 = vrot.lane.b32.xlu0 %v3860, 16
      %v5902 = vpop.permute.xlu0 %5901
      %5923 = vrot.lane.b32.xlu0 %v4350, 20
      %v5924 = vpop.permute.xlu0 %5923
      %5925 = vrot.lane.b32.xlu0 %v4355, 20
      %v5926 = vpop.permute.xlu0 %5925
      %5927 = vrot.lane.b32.xlu0 %v4360, 20
      %v5928 = vpop.permute.xlu0 %5927
      %5929 = vrot.lane.b32.xlu0 %v4365, 20
      %v5930 = vpop.permute.xlu0 %5929
      %5931 = vrot.lane.b32.xlu0 %v4370, 20
      %v5932 = vpop.permute.xlu0 %5931
      %5933 = vrot.lane.b32.xlu0 %v4470, 20
      %v5934 = vpop.permute.xlu0 %5933
      %5935 = vrot.lane.b32.xlu0 %v4475, 20
      %v5936 = vpop.permute.xlu0 %5935
      %5937 = vrot.lane.b32.xlu0 %v4480, 20
      %v5938 = vpop.permute.xlu0 %5937
      %5939 = vrot.lane.b32.xlu0 %v4485, 20
      %v5940 = vpop.permute.xlu0 %5939
      %5941 = vrot.lane.b32.xlu0 %v4490, 20
      %v5942 = vpop.permute.xlu0 %5941
      %5963 = vrot.lane.b32.xlu0 %v4980, 24
      %v5964 = vpop.permute.xlu0 %5963
      %5965 = vrot.lane.b32.xlu0 %v4985, 24
      %v5966 = vpop.permute.xlu0 %5965
      %5967 = vrot.lane.b32.xlu0 %v4990, 24
      %v5968 = vpop.permute.xlu0 %5967
      %5969 = vrot.lane.b32.xlu0 %v4995, 24
      %v5970 = vpop.permute.xlu0 %5969
      %5971 = vrot.lane.b32.xlu0 %v5000, 24
      %v5972 = vpop.permute.xlu0 %5971
      %5973 = vrot.lane.b32.xlu0 %v5100, 24
      %v5974 = vpop.permute.xlu0 %5973
      %5975 = vrot.lane.b32.xlu0 %v5105, 24
      %v5976 = vpop.permute.xlu0 %5975
      %5977 = vrot.lane.b32.xlu0 %v5110, 24
      %v5978 = vpop.permute.xlu0 %5977
      %5979 = vrot.lane.b32.xlu0 %v5115, 24
      %v5980 = vpop.permute.xlu0 %5979
      %5981 = vrot.lane.b32.xlu0 %v5120, 24
      %v5982 = vpop.permute.xlu0 %5981
      %6003 = vrot.lane.b32.xlu0 %v5610, 28
      %v6004 = vpop.permute.xlu0 %6003
      %6005 = vrot.lane.b32.xlu0 %v5615, 28
      %v6006 = vpop.permute.xlu0 %6005
      %6007 = vrot.lane.b32.xlu0 %v5620, 28
      %v6008 = vpop.permute.xlu0 %6007
      %6009 = vrot.lane.b32.xlu0 %v5625, 28
      %v6010 = vpop.permute.xlu0 %6009
      %6011 = vrot.lane.b32.xlu0 %v5630, 28
      %v6012 = vpop.permute.xlu0 %6011
      %6013 = vrot.lane.b32.xlu0 %v5730, 28
      %v6014 = vpop.permute.xlu0 %6013
      %6015 = vrot.lane.b32.xlu0 %v5735, 28
      %v6016 = vpop.permute.xlu0 %6015
      %6017 = vrot.lane.b32.xlu0 %v5740, 28
      %v6018 = vpop.permute.xlu0 %6017
      %6019 = vrot.lane.b32.xlu0 %v5745, 28
      %v6020 = vpop.permute.xlu0 %6019
      %6021 = vrot.lane.b32.xlu0 %v5750, 28
      %v6022 = vpop.permute.xlu0 %6021
      %v6033 = vsel %vm736, %v1200, %v5764
      %v6034 = vsel %vm736, %v1205, %v5766
      %v6035 = vsel %vm736, %v1210, %v5768
      %v6036 = vsel %vm736, %v1215, %v5770
      %v6037 = vsel %vm736, %v1220, %v5772
      %v6038 = vsel %vm736, %v1320, %v5774
      %v6039 = vsel %vm736, %v1325, %v5776
      %v6040 = vsel %vm736, %v1330, %v5778
      %v6041 = vsel %vm736, %v1335, %v5780
      %v6042 = vsel %vm736, %v1340, %v5782
      %vm6043 = vcmask 64512
      %v6044 = vsel %vm6043, %v6033, %v5804
      %v6045 = vsel %vm6043, %v6034, %v5806
      %v6046 = vsel %vm6043, %v6035, %v5808
      %v6047 = vsel %vm6043, %v6036, %v5810
      %v6048 = vsel %vm6043, %v6037, %v5812
      %v6049 = vsel %vm6043, %v6038, %v5814
      %v6050 = vsel %vm6043, %v6039, %v5816
      %v6051 = vsel %vm6043, %v6040, %v5818
      %v6052 = vsel %vm6043, %v6041, %v5820
      %v6053 = vsel %vm6043, %v6042, %v5822
      %vm6054 = vcmask 97280
      %v6055 = vsel %vm6054, %v6044, %v5844
      %v6056 = vsel %vm6054, %v6045, %v5846
      %v6057 = vsel %vm6054, %v6046, %v5848
      %v6058 = vsel %vm6054, %v6047, %v5850
      %v6059 = vsel %vm6054, %v6048, %v5852
      %v6060 = vsel %vm6054, %v6049, %v5854
      %v6061 = vsel %vm6054, %v6050, %v5856
      %v6062 = vsel %vm6054, %v6051, %v5858
      %v6063 = vsel %vm6054, %v6052, %v5860
      %v6064 = vsel %vm6054, %v6053, %v5862
      %vm6065 = vcmask 130048
      %v6066 = vsel %vm6065, %v6055, %v5884
      %v6067 = vsel %vm6065, %v6056, %v5886
      %v6068 = vsel %vm6065, %v6057, %v5888
      %v6069 = vsel %vm6065, %v6058, %v5890
      %v6070 = vsel %vm6065, %v6059, %v5892
      %v6071 = vsel %vm6065, %v6060, %v5894
      %v6072 = vsel %vm6065, %v6061, %v5896
      %v6073 = vsel %vm6065, %v6062, %v5898
      %v6074 = vsel %vm6065, %v6063, %v5900
      %v6075 = vsel %vm6065, %v6064, %v5902
      %vm6076 = vcmask 162816
      %v6077 = vsel %vm6076, %v6066, %v5924
      %v6078 = vsel %vm6076, %v6067, %v5926
      %v6079 = vsel %vm6076, %v6068, %v5928
      %v6080 = vsel %vm6076, %v6069, %v5930
      %v6081 = vsel %vm6076, %v6070, %v5932
      %v6082 = vsel %vm6076, %v6071, %v5934
      %v6083 = vsel %vm6076, %v6072, %v5936
      %v6084 = vsel %vm6076, %v6073, %v5938
      %v6085 = vsel %vm6076, %v6074, %v5940
      %v6086 = vsel %vm6076, %v6075, %v5942
      %vm6087 = vcmask 195584
      %v6088 = vsel %vm6087, %v6077, %v5964
      %v6089 = vsel %vm6087, %v6078, %v5966
      %v6090 = vsel %vm6087, %v6079, %v5968
      %v6091 = vsel %vm6087, %v6080, %v5970
      %v6092 = vsel %vm6087, %v6081, %v5972
      %v6093 = vsel %vm6087, %v6082, %v5974
      %v6094 = vsel %vm6087, %v6083, %v5976
      %v6095 = vsel %vm6087, %v6084, %v5978
      %v6096 = vsel %vm6087, %v6085, %v5980
      %v6097 = vsel %vm6087, %v6086, %v5982
      %vm6098 = vcmask 228352
      %v6099 = vsel %vm6098, %v6088, %v6004
      %v6100 = vsel %vm6098, %v6089, %v6006
      %v6101 = vsel %vm6098, %v6090, %v6008
      %v6102 = vsel %vm6098, %v6091, %v6010
      %v6103 = vsel %vm6098, %v6092, %v6012
      %v6104 = vsel %vm6098, %v6093, %v6014
      %v6105 = vsel %vm6098, %v6094, %v6016
      %v6106 = vsel %vm6098, %v6095, %v6018
      %v6107 = vsel %vm6098, %v6096, %v6020
      %v6108 = vsel %vm6098, %v6097, %v6022
      %v6109 = vld [vmem:[%s5] sm:$0xff]
      %v6110 = vld [vmem:[%s5 + $0x8] sm:$0xff]
      %v6111 = vld [vmem:[%s5 + $0x10] sm:$0xff]
      %v6112 = vld [vmem:[%s5 + $0x18] sm:$0xff]
      %v6113 = vld [vmem:[%s6] sm:$0x1]
      %v6115 = vlaneseq
      %v6116 = vshrl.u32 %v6115, 7
      %v6117 = vsub.s32 0, %v6116
      %v6118 = vrot.slane %v6113, %v6117
      %v6121 = vsel %vm515, %v6099, 0
      %v6124 = vsel %vm515, %v6100, 0
      %v6127 = vsel %vm515, %v6101, 0
      %v6130 = vsel %vm515, %v6102, 0
      %v6133 = vsel %vm515, %v6103, 0
      %v6136 = vsel %vm515, %v6104, 0
      %v6139 = vsel %vm515, %v6105, 0
      %v6142 = vsel %vm515, %v6106, 0
      %v6145 = vsel %vm515, %v6107, 0
      %v6148 = vsel %vm515, %v6108, 0
      %6150 = vmatprep.subr.mxu0 0.0
      %6151 = vmatpush1.msra.mxu0 %v6109
      %6152 = vmatprep.subr.mxu0 0.0
      %6153 = vmatpush1.msra.mxu0 %v6110
      %6154 = vmatprep.subr.mxu0 0.0
      %6155 = vmatpush1.msra.mxu0 %v6111
      %6156 = vmatprep.subr.mxu0 0.0
      %6157 = vmatpush1.msra.mxu0 %v6112
      %6158 = vmatprep.subr.mxu0 0.0
      %6159 = vmatpush1.msra.mxu0 0.0
      %6160 = vmatprep.subr.mxu0 0.0
      %6161 = vmatpush1.msra.mxu0 0.0
      %6162 = vmatprep.subr.mxu0 0.0
      %6163 = vmatpush1.msra.mxu0 0.0
      %6164 = vmatprep.subr.mxu0 0.0
      %6165 = vmatpush1.msra.mxu0 0.0
      %6166 = vmatprep.subr.mxu0 0.0
      %6167 = vmatpush1.msra.mxu0 0.0
      %6168 = vmatprep.subr.mxu0 0.0
      %6169 = vmatpush1.msra.mxu0 0.0
      %6170 = vmatprep.subr.mxu0 0.0
      %6171 = vmatpush1.msra.mxu0 0.0
      %6172 = vmatprep.subr.mxu0 0.0
      %6173 = vmatpush1.msra.mxu0 0.0
      %6174 = vmatprep.subr.mxu0 0.0
      %6175 = vmatpush1.msra.mxu0 0.0
      %6176 = vmatprep.subr.mxu0 0.0
      %6177 = vmatpush1.msra.mxu0 0.0
      %6178 = vmatprep.subr.mxu0 0.0
      %6179 = vmatpush1.msra.mxu0 0.0
      %6180 = vmatprep.subr.mxu0 0.0
      %6181 = vmatpush1.msra.mxu0 0.0
      %6182 = vmatprep.subr.mxu0 0.0
      %6183 = vmatpush1.msra.mxu0 0.0
      %6184 = vmatprep.subr.mxu0 0.0
      %6185 = vmatpush1.msra.mxu0 0.0
      %6186 = vmatprep.subr.mxu0 0.0
      %6187 = vmatpush1.msra.mxu0 0.0
      %6188 = vmatprep.subr.mxu0 0.0
      %6189 = vmatpush1.msra.mxu0 0.0
      %6190 = vmatprep.subr.mxu0 0.0
      %6191 = vmatpush1.msra.mxu0 0.0
      %6192 = vmatprep.subr.mxu0 0.0
      %6193 = vmatpush1.msra.mxu0 0.0
      %6194 = vmatprep.subr.mxu0 0.0
      %6195 = vmatpush1.msra.mxu0 0.0
      %6196 = vmatprep.subr.mxu0 0.0
      %6197 = vmatpush1.msra.mxu0 0.0
      %6198 = vmatprep.subr.mxu0 0.0
      %6199 = vmatpush1.msra.mxu0 0.0
      %6200 = vmatprep.subr.mxu0 0.0
      %6201 = vmatpush1.msra.mxu0 0.0
      %6202 = vmatprep.subr.mxu0 0.0
      %6203 = vmatpush1.msra.mxu0 0.0
      %6204 = vmatprep.subr.mxu0 0.0
      %6205 = vmatpush1.msra.mxu0 0.0
      %6206 = vmatprep.subr.mxu0 0.0
      %6207 = vmatpush1.msra.mxu0 0.0
      %6208 = vmatprep.subr.mxu0 0.0
      %6209 = vmatpush1.msra.mxu0 0.0
      %6210 = vmatprep.subr.mxu0 0.0
      %6211 = vmatpush1.msra.mxu0 0.0
      %6212 = vmatprep.subr.mxu0 0.0
      %6213 = vmatpush1.msra.mxu0 0.0
      %6214 = vmatprep.mubr.f32.mxu0 0.0
      %6215 = vmatmul.mubr.f32.gmra.mrb[0].mxu0 %v6121
      %v6216 = vpop.f32.mrb[0].mxu0
      %v6217 = vadd.f32 %v6118, %v6216
      %v6218 = vpop.f32.mrb[0].mxu0
      %6219 = vmatprep.mubr.f32.mxu0 0.0
      %6220 = vmatmul.mubr.f32.gmra.mrb[0].mxu0 %v6124
      %v6221 = vpop.f32.mrb[0].mxu0
      %v6222 = vadd.f32 %v6118, %v6221
      %v6223 = vpop.f32.mrb[0].mxu0
      %6224 = vmatprep.mubr.f32.mxu0 0.0
      %6225 = vmatmul.mubr.f32.gmra.mrb[0].mxu0 %v6127
      %v6226 = vpop.f32.mrb[0].mxu0
      %v6227 = vadd.f32 %v6118, %v6226
      %v6228 = vpop.f32.mrb[0].mxu0
      %6229 = vmatprep.mubr.f32.mxu0 0.0
      %6230 = vmatmul.mubr.f32.gmra.mrb[0].mxu0 %v6130
      %v6231 = vpop.f32.mrb[0].mxu0
      %v6232 = vadd.f32 %v6118, %v6231
      %v6233 = vpop.f32.mrb[0].mxu0
      %6234 = vmatprep.mubr.f32.mxu0 0.0
      %6235 = vmatmul.mubr.f32.gmra.mrb[0].mxu0 %v6133
      %v6236 = vpop.f32.mrb[0].mxu0
      %v6237 = vadd.f32 %v6118, %v6236
      %v6238 = vpop.f32.mrb[0].mxu0
      %6239 = vmatprep.mubr.f32.mxu0 0.0
      %6240 = vmatmul.mubr.f32.gmra.mrb[0].mxu0 %v6136
      %v6241 = vpop.f32.mrb[0].mxu0
      %v6242 = vadd.f32 %v6118, %v6241
      %v6243 = vpop.f32.mrb[0].mxu0
      %6244 = vmatprep.mubr.f32.mxu0 0.0
      %6245 = vmatmul.mubr.f32.gmra.mrb[0].mxu0 %v6139
      %v6246 = vpop.f32.mrb[0].mxu0
      %v6247 = vadd.f32 %v6118, %v6246
      %v6248 = vpop.f32.mrb[0].mxu0
      %6249 = vmatprep.mubr.f32.mxu0 0.0
      %6250 = vmatmul.mubr.f32.gmra.mrb[0].mxu0 %v6142
      %v6251 = vpop.f32.mrb[0].mxu0
      %v6252 = vadd.f32 %v6118, %v6251
      %v6253 = vpop.f32.mrb[0].mxu0
      %6254 = vmatprep.mubr.f32.mxu0 0.0
      %6255 = vmatmul.mubr.f32.gmra.mrb[0].mxu0 %v6145
      %v6256 = vpop.f32.mrb[0].mxu0
      %v6257 = vadd.f32 %v6118, %v6256
      %v6258 = vpop.f32.mrb[0].mxu0
      %6259 = vmatprep.mubr.f32.mxu0 0.0
      %6260 = vmatmul.mubr.f32.gmra.mrb[0].mxu0 %v6148
      %v6261 = vpop.f32.mrb[0].mxu0
      %v6262 = vadd.f32 %v6118, %v6261
      %v6263 = vpop.f32.mrb[0].mxu0
      %6264 = vdwg.mxu0
      %6265 = vst.msk [vmem:[%s492] sm:$0xff] %vm515, %v6217
      %6266 = vst.msk [vmem:[%s492 + $0x8] sm:$0xff] %vm515, %v6222
      %6267 = vst.msk [vmem:[%s492 + $0x10] sm:$0xff] %vm515, %v6227
      %6268 = vst.msk [vmem:[%s492 + $0x18] sm:$0xff] %vm515, %v6232
      %6269 = vst.msk [vmem:[%s492 + $0x20] sm:$0xff] %vm515, %v6237
      %6270 = vst.msk [vmem:[%s492 + $0x28] sm:$0xff] %vm515, %v6242
      %6271 = vst.msk [vmem:[%s492 + $0x30] sm:$0xff] %vm515, %v6247
      %6272 = vst.msk [vmem:[%s492 + $0x38] sm:$0xff] %vm515, %v6252
      %6273 = vst.msk [vmem:[%s492 + $0x40] sm:$0xff] %vm515, %v6257
      %6274 = vst.msk [vmem:[%s492 + $0x48] sm:$0xff] %vm515, %v6262
      %s6275 = smul.u32 10, %s18
      %p6276 = scmp.lt.s32.totalorder %s6275, 39
      %s6277 = scalar_select %p6276, %s6275, 39
      %s6278 = smul.addr %s6277, 8
      %s6279 = scalar_lea.vmem %s7, %s6278
      // Predicated region
      $region49: #{tpu_custom_call.1} parent=47 // pred_check
        %p6280 = pneg %p246
      $region50: #{tpu_custom_call.1} parent=47 // pred_check_branch
        %6282 = sbr.rel (%p6280) target = $region52
      $region51: #{tpu_custom_call.1} parent=47 // pred_region
        %s6283 = smul.u32 10, %s18
      $region52: #{tpu_custom_call.1} parent=47 // pred_fallthru
        _
    $region48: #{tpu_custom_call.1} parent=5 // pred_fallthru
      _
    %p6284 = scmp.le.s32.totalorder 2, %s13
    // Predicated region
    $region53: #{tpu_custom_call.1} parent=5 // pred_check
      %p6285 = pneg %p6284
    $region54: #{tpu_custom_call.1} parent=5 // pred_check_branch
      %6287 = sbr.rel (%p6285) target = $region56
    $region55: #{tpu_custom_call.1} parent=5 // pred_region
      %s6288 = ssub.s32 %s13, 2
      // Predicated region
      $region57: #{tpu_custom_call.1} parent=55 // pred_check
        %p6289 = pneg %p252
      $region58: #{tpu_custom_call.1} parent=55 // pred_check_branch
        %6291 = sbr.rel (%p6289) target = $region60
      $region59: #{tpu_custom_call.1} parent=55 // pred_region
        %s6292 = smul.u32 10, %s19
        %p6293 = scmp.lt.s32.totalorder %s6292, 39
        %s6294 = scalar_select %p6293, %s6292, 39
        %s6295 = smul.addr %s6294, 8
        %s6296 = scalar_lea.vmem %s7, %s6295
      $region60: #{tpu_custom_call.1} parent=55 // pred_fallthru
        _
    $region56: #{tpu_custom_call.1} parent=5 // pred_fallthru
      _
  $region6: #{tpu_custom_call.1} parent=0 // loop_footer
    %s17 = sadd.s32 1, %s13
  $region7: #{tpu_custom_call.1} parent=0 // loop_footer_branch
    %12 = sbr.rel target = $region3
  $region8: #{tpu_custom_call.1} parent=0 // loop_exit
    _

</llo_original>
